<compile_context>
chip_gen: v7x
topology: tpu7x:2x2x1
jax: 0.10.0
libtpu: 0.0.40
codegen_flags: <defaults>
</compile_context>

<pallas_src>
import functools

import jax
import jax.numpy as jnp
from jax.experimental import pallas as pl
from jax.experimental.pallas import tpu as pltpu

_LN_EPS = 1e-5


# ----------------------------------------------------------------------------
# Kernel
# ----------------------------------------------------------------------------
def _layernorm(v, gamma, beta, eps):
    mean = jnp.mean(v, axis=-1, keepdims=True)
    c = v - mean
    var = jnp.mean(c * c, axis=-1, keepdims=True)
    return c * (1.0 / jnp.sqrt(var + eps)) * gamma + beta


def _fused_block_kernel(x_ref, wq_ref, wk_ref, wv_ref, wu_ref, bu_ref,
                        g1_ref, be1_ref, w1_ref, b1_ref, w2_ref, b2_ref,
                        g2_ref, be2_ref, o_ref, *, heads, eps):
    """One batch element per grid step: attention + unify + LN1 + FF + LN2."""
    x = x_ref[0].astype(jnp.float32)                     # (t, e)
    t, e = x.shape

    # --- SelfAttentionWide (e**-0.25 scaling folded into wq/wk) --------------
    # Shared LHS broadcast once (hoisted; JAX doesn't CSE broadcast_in_dim).
    xh = jnp.broadcast_to(x, (heads, t, e))              # (h, t, e)
    q = jnp.einsum('hte,hed->htd', xh, wq_ref[...],
                   preferred_element_type=jnp.float32)    # (h, t, e)
    k = jnp.einsum('hte,hed->htd', xh, wk_ref[...],
                   preferred_element_type=jnp.float32)
    v = jnp.einsum('hte,hed->htd', xh, wv_ref[...],
                   preferred_element_type=jnp.float32)

    s = jnp.einsum('hqd,hkd->hqk', q, k,
                   preferred_element_type=jnp.float32)    # (h, t, t)
    s = s - jnp.max(s, axis=-1, keepdims=True)
    p = jnp.exp(s)
    # Exact reciprocal: EUP slot is idle anyway, keeps the test tolerance tight.
    p = p * pl.reciprocal(jnp.sum(p, axis=-1, keepdims=True), approx=False)

    out = jnp.einsum('hqk,hkd->hqd', p, v,
                     preferred_element_type=jnp.float32)  # (h, t, e)

    # unifyheads: per-head (t,e)@(e,e) summed over heads == (t, h*e) @ Wu^T,
    # without ever materializing the (t, h*e) concatenation / relayout.
    att = jnp.einsum('hqd,hdm->hqm', out, wu_ref[...],
                     preferred_element_type=jnp.float32)  # (h, t, e)
    attended = bu_ref[...].astype(jnp.float32)            # (1, e) -> broadcasts
    for h in range(heads):                                # short static unroll
        attended = attended + att[h]

    # --- TransformerBlock tail (dropout p=0 is the identity) -----------------
    h1 = _layernorm(attended + x, g1_ref[...], be1_ref[...], eps)
    ff = jnp.dot(h1, w1_ref[...], preferred_element_type=jnp.float32) + b1_ref[...]
    ff = jnp.maximum(ff, 0.0)
    ff = jnp.dot(ff, w2_ref[...], preferred_element_type=jnp.float32) + b2_ref[...]
    y = _layernorm(ff + h1, g2_ref[...], be2_ref[...], eps)
    o_ref[0] = y.astype(o_ref.dtype)


# ----------------------------------------------------------------------------
# Wrapper
# ----------------------------------------------------------------------------
def pallas_transformer_block(x, prep, *, heads, emb):
    b, t, e = x.shape
    hf = prep["ff_w1t"].shape[1]
    kernel = functools.partial(_fused_block_kernel, heads=heads, eps=_LN_EPS)

    row3 = lambda i: (i, 0, 0)
    full3 = lambda i: (0, 0, 0)
    full2 = lambda i: (0, 0)

    cost = pl.CostEstimate(
        flops=(8 * b * heads * t * e * e          # q, k, v, unify projections
               + 4 * b * heads * t * t * e        # qk^T and p@v
               + 4 * b * t * e * hf               # feed-forward
               + 30 * b * t * e),                 # elementwise / layernorm
        transcendentals=b * heads * t * t + 2 * b * t,
        bytes_accessed=4 * (2 * b * t * e + 4 * heads * e * e + 2 * e * hf
                            + 6 * e + hf),
    )

    return pl.pallas_call(
        kernel,
        out_shape=jax.ShapeDtypeStruct((b, t, e), x.dtype),
        grid_spec=pltpu.PrefetchScalarGridSpec(
            num_scalar_prefetch=0,
            grid=(b,),
            in_specs=[
                pl.BlockSpec((1, t, e), row3),        # x (attn input + residual)
                pl.BlockSpec((heads, e, e), full3),   # Wq per-head (scale folded)
                pl.BlockSpec((heads, e, e), full3),   # Wk per-head (scale folded)
                pl.BlockSpec((heads, e, e), full3),   # Wv per-head
                pl.BlockSpec((heads, e, e), full3),   # unify W per-head
                pl.BlockSpec((1, e), full2),          # unify bias
                pl.BlockSpec((1, e), full2),          # ln1 gamma
                pl.BlockSpec((1, e), full2),          # ln1 beta
                pl.BlockSpec((e, hf), full2),         # ff w1 (pre-transposed)
                pl.BlockSpec((1, hf), full2),         # ff b1
                pl.BlockSpec((hf, e), full2),         # ff w2 (pre-transposed)
                pl.BlockSpec((1, e), full2),          # ff b2
                pl.BlockSpec((1, e), full2),          # ln2 gamma
                pl.BlockSpec((1, e), full2),          # ln2 beta
            ],
            out_specs=pl.BlockSpec((1, t, e), row3),
        ),
        compiler_params=pltpu.CompilerParams(
            dimension_semantics=("parallel",),        # 2-wide -> both v7x TCs busy
            vmem_limit_bytes=32 * 1024 * 1024,        # safe on v5e/v6e/v7x
        ),
        cost_estimate=cost,
    )(x, prep["wq"], prep["wk"], prep["wv"], prep["wu"], prep["unify_b"],
      prep["ln1_g"], prep["ln1_b"],
      prep["ff_w1t"], prep["ff_b1"], prep["ff_w2t"], prep["ff_b2"],
      prep["ln2_g"], prep["ln2_b"])


def prepare_params(params, emb, heads):
    """One-time parameter prep (outside the hot path): per-head reshapes,
    weight transposes, and the e**-0.25 q/k scaling folded into Wq/Wk."""
    scale = float(emb) ** (-0.25)

    def per_head_in(w, s=1.0):
        # nn.Linear(e, h*e, bias=False).weight is (h*e, e); x @ w.T selects
        # columns [h*e:(h+1)*e] of w.T for head h -> (heads, e_in, e_out).
        return (w.T * s).reshape(emb, heads, emb).transpose(1, 0, 2)

    return {
        "wq": per_head_in(params["toqueries_w"], scale),       # (h, e, e)
        "wk": per_head_in(params["tokeys_w"], scale),          # (h, e, e)
        "wv": per_head_in(params["tovalues_w"]),               # (h, e, e)
        # unifyheads: (t, h*e) @ unify_w.T; rows [h*e:(h+1)*e] belong to head h.
        "wu": params["unify_w"].T.reshape(heads, emb, emb),    # (h, e, e)
        "unify_b": params["unify_b"].reshape(1, emb),
        "ln1_g": params["ln1_g"].reshape(1, emb),
        "ln1_b": params["ln1_b"].reshape(1, emb),
        "ff_w1t": params["ff_w1"].T,                           # (e, 4e)
        "ff_b1": params["ff_b1"].reshape(1, -1),
        "ff_w2t": params["ff_w2"].T,                           # (4e, e)
        "ff_b2": params["ff_b2"].reshape(1, emb),
        "ln2_g": params["ln2_g"].reshape(1, emb),
        "ln2_b": params["ln2_b"].reshape(1, emb),
    }


@functools.partial(jax.jit, static_argnames=("heads", "emb"))
def basic_transformer_forward(x, prep, *, heads, emb):
    """BasicTransformer.forward (mask=False, dropout=0, no attention dump)."""
    return pallas_transformer_block(x, prep, heads=heads, emb=emb)


# ----------------------------------------------------------------------------
# Pure-JAX reference (mirrors the PyTorch module)
# ----------------------------------------------------------------------------
def _layer_norm_ref(v, g, beta, eps=_LN_EPS):
    mean = jnp.mean(v, axis=-1, keepdims=True)
    var = jnp.mean((v - mean) ** 2, axis=-1, keepdims=True)
    return (v - mean) / jnp.sqrt(var + eps) * g + beta


def reference(x, params, heads):
    b, t, e = x.shape
    h = heads
    keys = (x @ params["tokeys_w"].T).reshape(b, t, h, e)
    queries = (x @ params["toqueries_w"].T).reshape(b, t, h, e)
    values = (x @ params["tovalues_w"].T).reshape(b, t, h, e)
    keys = jnp.transpose(keys, (0, 2, 1, 3)).reshape(b * h, t, e)
    queries = jnp.transpose(queries, (0, 2, 1, 3)).reshape(b * h, t, e)
    values = jnp.transpose(values, (0, 2, 1, 3)).reshape(b * h, t, e)
    queries = queries / e ** 0.25
    keys = keys / e ** 0.25
    dot = jnp.einsum("bqe,bke->bqk", queries, keys)
    dot = jax.nn.softmax(dot, axis=2)
    out = jnp.einsum("bqk,bke->bqe", dot, values).reshape(b, h, t, e)
    out = jnp.transpose(out, (0, 2, 1, 3)).reshape(b, t, h * e)
    attended = out @ params["unify_w"].T + params["unify_b"]
    h1 = _layer_norm_ref(attended + x, params["ln1_g"], params["ln1_b"])
    ff = jnp.maximum(h1 @ params["ff_w1"].T + params["ff_b1"], 0.0)
    ff = ff @ params["ff_w2"].T + params["ff_b2"]
    return _layer_norm_ref(ff + h1, params["ln2_g"], params["ln2_b"])


# ----------------------------------------------------------------------------
# Main
# ----------------------------------------------------------------------------
if __name__ == "__main__":
    b, t, emb, heads = 2, 8, 32, 8
    ff_hidden = 4 * emb

    key = jax.random.PRNGKey(0)
    ks = jax.random.split(key, 16)

    def rnd(k, shape, s=0.05):
        return jax.random.normal(k, shape, jnp.float32) * s

    params = {
        # nn.Linear(emb, emb*heads, bias=False): weight (emb*heads, emb)
        "tokeys_w": rnd(ks[0], (emb * heads, emb)),
        "toqueries_w": rnd(ks[1], (emb * heads, emb)),
        "tovalues_w": rnd(ks[2], (emb * heads, emb)),
        # nn.Linear(heads*emb, emb)
        "unify_w": rnd(ks[3], (emb, heads * emb)),
        "unify_b": rnd(ks[4], (emb,)),
        # LayerNorm(emb) x2
        "ln1_g": 1.0 + rnd(ks[5], (emb,), 0.1),
        "ln1_b": rnd(ks[6], (emb,), 0.1),
        "ln2_g": 1.0 + rnd(ks[7], (emb,), 0.1),
        "ln2_b": rnd(ks[8], (emb,), 0.1),
        # FF: Linear(emb, 4*emb) -> ReLU -> Linear(4*emb, emb)
        "ff_w1": rnd(ks[9], (ff_hidden, emb)),
        "ff_b1": rnd(ks[10], (ff_hidden,)),
        "ff_w2": rnd(ks[11], (emb, ff_hidden)),
        "ff_b2": rnd(ks[12], (emb,)),
    }

    x = jax.random.normal(ks[13], (b, t, emb), jnp.float32)

    prep = prepare_params(params, emb, heads)
    y = basic_transformer_forward(x, prep, heads=heads, emb=emb)
    y = jax.block_until_ready(y)

    with jax.default_matmul_precision("highest"):
        y_ref = reference(x, params, heads)

    assert y.shape == (b, t, emb)
    # Exact softmax reciprocal + f32 accumulation everywhere -> tight tolerance.
    assert jnp.allclose(y, y_ref, atol=2e-3, rtol=2e-3), "mismatch vs reference"

    print("KERNEL_OK")
</pallas_src>

<mosaic_0001>
module attributes {stable_mosaic.version = 11 : i64} {
  func.func @_fused_block_kernel(%arg0: i32, %arg1: memref<1x8x32xf32, #tpu.memory_space<vmem>>, %arg2: memref<8x32x32xf32, #tpu.memory_space<vmem>>, %arg3: memref<8x32x32xf32, #tpu.memory_space<vmem>>, %arg4: memref<8x32x32xf32, #tpu.memory_space<vmem>>, %arg5: memref<8x32x32xf32, #tpu.memory_space<vmem>>, %arg6: memref<1x32xf32, #tpu.memory_space<vmem>>, %arg7: memref<1x32xf32, #tpu.memory_space<vmem>>, %arg8: memref<1x32xf32, #tpu.memory_space<vmem>>, %arg9: memref<32x128xf32, #tpu.memory_space<vmem>>, %arg10: memref<1x128xf32, #tpu.memory_space<vmem>>, %arg11: memref<128x32xf32, #tpu.memory_space<vmem>>, %arg12: memref<1x32xf32, #tpu.memory_space<vmem>>, %arg13: memref<1x32xf32, #tpu.memory_space<vmem>>, %arg14: memref<1x32xf32, #tpu.memory_space<vmem>>, %arg15: memref<1x8x32xf32, #tpu.memory_space<vmem>>) attributes {dimension_semantics = [#tpu.dimension_semantics<parallel>], iteration_bounds = array<i64: 2>, scalar_prefetch = 0 : i64, scratch_operands = 0 : i64, tpu.core_type = #tpu.core_type<tc>, window_params = [{transform_indices = @transform_0, window_bounds = array<i64: 1, 8, 32>}, {pipeline_mode = #tpu.pipeline_mode<synchronous>, transform_indices = @transform_1, window_bounds = array<i64: 8, 32, 32>}, {pipeline_mode = #tpu.pipeline_mode<synchronous>, transform_indices = @transform_2, window_bounds = array<i64: 8, 32, 32>}, {pipeline_mode = #tpu.pipeline_mode<synchronous>, transform_indices = @transform_3, window_bounds = array<i64: 8, 32, 32>}, {pipeline_mode = #tpu.pipeline_mode<synchronous>, transform_indices = @transform_4, window_bounds = array<i64: 8, 32, 32>}, {pipeline_mode = #tpu.pipeline_mode<synchronous>, transform_indices = @transform_5, window_bounds = array<i64: 1, 32>}, {pipeline_mode = #tpu.pipeline_mode<synchronous>, transform_indices = @transform_6, window_bounds = array<i64: 1, 32>}, {pipeline_mode = #tpu.pipeline_mode<synchronous>, transform_indices = @transform_7, window_bounds = array<i64: 1, 32>}, {pipeline_mode = #tpu.pipeline_mode<synchronous>, transform_indices = @transform_8, window_bounds = array<i64: 32, 128>}, {pipeline_mode = #tpu.pipeline_mode<synchronous>, transform_indices = @transform_9, window_bounds = array<i64: 1, 128>}, {pipeline_mode = #tpu.pipeline_mode<synchronous>, transform_indices = @transform_10, window_bounds = array<i64: 128, 32>}, {pipeline_mode = #tpu.pipeline_mode<synchronous>, transform_indices = @transform_11, window_bounds = array<i64: 1, 32>}, {pipeline_mode = #tpu.pipeline_mode<synchronous>, transform_indices = @transform_12, window_bounds = array<i64: 1, 32>}, {pipeline_mode = #tpu.pipeline_mode<synchronous>, transform_indices = @transform_13, window_bounds = array<i64: 1, 32>}, {transform_indices = @transform_14, window_bounds = array<i64: 1, 8, 32>}]} {
    %c0 = arith.constant 0 : index
    %c0_0 = arith.constant 0 : index
    %c0_1 = arith.constant 0 : index
    %0 = vector.load %arg1[%c0, %c0_0, %c0_1] : memref<1x8x32xf32, #tpu.memory_space<vmem>>, vector<1x8x32xf32>
    %1 = vector.shape_cast %0 : vector<1x8x32xf32> to vector<8x32xf32>
    %2 = vector.shape_cast %1 : vector<8x32xf32> to vector<1x8x32xf32>
    %3 = vector.broadcast %2 : vector<1x8x32xf32> to vector<8x8x32xf32>
    %c0_2 = arith.constant 0 : index
    %c0_3 = arith.constant 0 : index
    %c0_4 = arith.constant 0 : index
    %4 = vector.load %arg2[%c0_2, %c0_3, %c0_4] : memref<8x32x32xf32, #tpu.memory_space<vmem>>, vector<8x32x32xf32>
    "tpu.trace_start"() <{level = 10 : i32, message = "hte,hed->htd"}> : () -> ()
    %cst = arith.constant dense<0.000000e+00> : vector<8x8x32xf32>
    %5 = tpu.matmul %3, %4, %cst {dimension_numbers = #tpu.dot_dimension_numbers<[2], [1], [1], [2], [0, 0, 0, 1, 1, 2], [0], [0]>} : vector<8x8x32xf32>, vector<8x32x32xf32>, vector<8x8x32xf32> -> vector<8x8x32xf32>
    "tpu.trace_stop"() : () -> ()
    %c0_5 = arith.constant 0 : index
    %c0_6 = arith.constant 0 : index
    %c0_7 = arith.constant 0 : index
    %6 = vector.load %arg3[%c0_5, %c0_6, %c0_7] : memref<8x32x32xf32, #tpu.memory_space<vmem>>, vector<8x32x32xf32>
    "tpu.trace_start"() <{level = 10 : i32, message = "hte,hed->htd"}> : () -> ()
    %cst_8 = arith.constant dense<0.000000e+00> : vector<8x8x32xf32>
    %7 = tpu.matmul %3, %6, %cst_8 {dimension_numbers = #tpu.dot_dimension_numbers<[2], [1], [1], [2], [0, 0, 0, 1, 1, 2], [0], [0]>} : vector<8x8x32xf32>, vector<8x32x32xf32>, vector<8x8x32xf32> -> vector<8x8x32xf32>
    "tpu.trace_stop"() : () -> ()
    %c0_9 = arith.constant 0 : index
    %c0_10 = arith.constant 0 : index
    %c0_11 = arith.constant 0 : index
    %8 = vector.load %arg4[%c0_9, %c0_10, %c0_11] : memref<8x32x32xf32, #tpu.memory_space<vmem>>, vector<8x32x32xf32>
    "tpu.trace_start"() <{level = 10 : i32, message = "hte,hed->htd"}> : () -> ()
    %cst_12 = arith.constant dense<0.000000e+00> : vector<8x8x32xf32>
    %9 = tpu.matmul %3, %8, %cst_12 {dimension_numbers = #tpu.dot_dimension_numbers<[2], [1], [1], [2], [0, 0, 0, 1, 1, 2], [0], [0]>} : vector<8x8x32xf32>, vector<8x32x32xf32>, vector<8x8x32xf32> -> vector<8x8x32xf32>
    "tpu.trace_stop"() : () -> ()
    "tpu.trace_start"() <{level = 10 : i32, message = "hqd,hkd->hqk"}> : () -> ()
    %cst_13 = arith.constant dense<0.000000e+00> : vector<8x8x8xf32>
    %10 = tpu.matmul %5, %7, %cst_13 {dimension_numbers = #tpu.dot_dimension_numbers<[2], [2], [1], [1], [0, 0, 0, 1, 1, 1], [0], [0]>} : vector<8x8x32xf32>, vector<8x8x32xf32>, vector<8x8x8xf32> -> vector<8x8x8xf32>
    "tpu.trace_stop"() : () -> ()
    %cst_14 = arith.constant dense<0xFF800000> : vector<8x8xf32>
    %11 = vector.multi_reduction <maximumf>, %10, %cst_14 [2] : vector<8x8x8xf32> to vector<8x8xf32>
    %12 = vector.shape_cast %11 : vector<8x8xf32> to vector<8x8x1xf32>
    %13 = vector.broadcast %12 : vector<8x8x1xf32> to vector<8x8x8xf32>
    %14 = arith.subf %10, %13 : vector<8x8x8xf32>
    %15 = math.exp %14 : vector<8x8x8xf32>
    %cst_15 = arith.constant dense<0.000000e+00> : vector<8x8xf32>
    %16 = vector.multi_reduction <add>, %15, %cst_15 [2] : vector<8x8x8xf32> to vector<8x8xf32>
    %17 = vector.shape_cast %16 : vector<8x8xf32> to vector<8x8x1xf32>
    %18 = tpu.reciprocal %17 : vector<8x8x1xf32> -> vector<8x8x1xf32>
    %19 = vector.broadcast %18 : vector<8x8x1xf32> to vector<8x8x8xf32>
    %20 = arith.mulf %15, %19 : vector<8x8x8xf32>
    "tpu.trace_start"() <{level = 10 : i32, message = "hqk,hkd->hqd"}> : () -> ()
    %cst_16 = arith.constant dense<0.000000e+00> : vector<8x8x32xf32>
    %21 = tpu.matmul %20, %9, %cst_16 {dimension_numbers = #tpu.dot_dimension_numbers<[2], [1], [1], [2], [0, 0, 0, 1, 1, 2], [0], [0]>} : vector<8x8x8xf32>, vector<8x8x32xf32>, vector<8x8x32xf32> -> vector<8x8x32xf32>
    "tpu.trace_stop"() : () -> ()
    %c0_17 = arith.constant 0 : index
    %c0_18 = arith.constant 0 : index
    %c0_19 = arith.constant 0 : index
    %22 = vector.load %arg5[%c0_17, %c0_18, %c0_19] : memref<8x32x32xf32, #tpu.memory_space<vmem>>, vector<8x32x32xf32>
    "tpu.trace_start"() <{level = 10 : i32, message = "hqd,hdm->hqm"}> : () -> ()
    %cst_20 = arith.constant dense<0.000000e+00> : vector<8x8x32xf32>
    %23 = tpu.matmul %21, %22, %cst_20 {dimension_numbers = #tpu.dot_dimension_numbers<[2], [1], [1], [2], [0, 0, 0, 1, 1, 2], [0], [0]>} : vector<8x8x32xf32>, vector<8x32x32xf32>, vector<8x8x32xf32> -> vector<8x8x32xf32>
    "tpu.trace_stop"() : () -> ()
    %c0_21 = arith.constant 0 : index
    %c0_22 = arith.constant 0 : index
    %24 = vector.load %arg6[%c0_21, %c0_22] : memref<1x32xf32, #tpu.memory_space<vmem>>, vector<1x32xf32>
    %25 = vector.extract_strided_slice %23 {offsets = [0, 0, 0], sizes = [1, 8, 32], strides = [1, 1, 1]} : vector<8x8x32xf32> to vector<1x8x32xf32>
    %26 = vector.shape_cast %25 : vector<1x8x32xf32> to vector<8x32xf32>
    %27 = vector.broadcast %24 : vector<1x32xf32> to vector<8x32xf32>
    %28 = arith.addf %27, %26 : vector<8x32xf32>
    %29 = vector.extract_strided_slice %23 {offsets = [1, 0, 0], sizes = [1, 8, 32], strides = [1, 1, 1]} : vector<8x8x32xf32> to vector<1x8x32xf32>
    %30 = vector.shape_cast %29 : vector<1x8x32xf32> to vector<8x32xf32>
    %31 = arith.addf %28, %30 : vector<8x32xf32>
    %32 = vector.extract_strided_slice %23 {offsets = [2, 0, 0], sizes = [1, 8, 32], strides = [1, 1, 1]} : vector<8x8x32xf32> to vector<1x8x32xf32>
    %33 = vector.shape_cast %32 : vector<1x8x32xf32> to vector<8x32xf32>
    %34 = arith.addf %31, %33 : vector<8x32xf32>
    %35 = vector.extract_strided_slice %23 {offsets = [3, 0, 0], sizes = [1, 8, 32], strides = [1, 1, 1]} : vector<8x8x32xf32> to vector<1x8x32xf32>
    %36 = vector.shape_cast %35 : vector<1x8x32xf32> to vector<8x32xf32>
    %37 = arith.addf %34, %36 : vector<8x32xf32>
    %38 = vector.extract_strided_slice %23 {offsets = [4, 0, 0], sizes = [1, 8, 32], strides = [1, 1, 1]} : vector<8x8x32xf32> to vector<1x8x32xf32>
    %39 = vector.shape_cast %38 : vector<1x8x32xf32> to vector<8x32xf32>
    %40 = arith.addf %37, %39 : vector<8x32xf32>
    %41 = vector.extract_strided_slice %23 {offsets = [5, 0, 0], sizes = [1, 8, 32], strides = [1, 1, 1]} : vector<8x8x32xf32> to vector<1x8x32xf32>
    %42 = vector.shape_cast %41 : vector<1x8x32xf32> to vector<8x32xf32>
    %43 = arith.addf %40, %42 : vector<8x32xf32>
    %44 = vector.extract_strided_slice %23 {offsets = [6, 0, 0], sizes = [1, 8, 32], strides = [1, 1, 1]} : vector<8x8x32xf32> to vector<1x8x32xf32>
    %45 = vector.shape_cast %44 : vector<1x8x32xf32> to vector<8x32xf32>
    %46 = arith.addf %43, %45 : vector<8x32xf32>
    %47 = vector.extract_strided_slice %23 {offsets = [7, 0, 0], sizes = [1, 8, 32], strides = [1, 1, 1]} : vector<8x8x32xf32> to vector<1x8x32xf32>
    %48 = vector.shape_cast %47 : vector<1x8x32xf32> to vector<8x32xf32>
    %49 = arith.addf %46, %48 : vector<8x32xf32>
    %50 = arith.addf %49, %1 : vector<8x32xf32>
    %c0_23 = arith.constant 0 : index
    %c0_24 = arith.constant 0 : index
    %51 = vector.load %arg7[%c0_23, %c0_24] : memref<1x32xf32, #tpu.memory_space<vmem>>, vector<1x32xf32>
    %c0_25 = arith.constant 0 : index
    %c0_26 = arith.constant 0 : index
    %52 = vector.load %arg8[%c0_25, %c0_26] : memref<1x32xf32, #tpu.memory_space<vmem>>, vector<1x32xf32>
    %cst_27 = arith.constant dense<0.000000e+00> : vector<8xf32>
    %53 = vector.multi_reduction <add>, %50, %cst_27 [1] : vector<8x32xf32> to vector<8xf32>
    %54 = vector.shape_cast %53 : vector<8xf32> to vector<8x1xf32>
    %cst_28 = arith.constant 3.200000e+01 : f32
    %55 = vector.broadcast %cst_28 : f32 to vector<8x1xf32>
    %56 = arith.divf %54, %55 : vector<8x1xf32>
    %57 = vector.broadcast %56 : vector<8x1xf32> to vector<8x32xf32>
    %58 = arith.subf %50, %57 : vector<8x32xf32>
    %59 = arith.mulf %58, %58 : vector<8x32xf32>
    %cst_29 = arith.constant dense<0.000000e+00> : vector<8xf32>
    %60 = vector.multi_reduction <add>, %59, %cst_29 [1] : vector<8x32xf32> to vector<8xf32>
    %61 = vector.shape_cast %60 : vector<8xf32> to vector<8x1xf32>
    %cst_30 = arith.constant 3.200000e+01 : f32
    %62 = vector.broadcast %cst_30 : f32 to vector<8x1xf32>
    %63 = arith.divf %61, %62 : vector<8x1xf32>
    %cst_31 = arith.constant 9.99999974E-6 : f32
    %64 = vector.broadcast %cst_31 : f32 to vector<8x1xf32>
    %65 = arith.addf %63, %64 : vector<8x1xf32>
    %66 = math.sqrt %65 : vector<8x1xf32>
    %cst_32 = arith.constant 1.000000e+00 : f32
    %67 = vector.broadcast %cst_32 : f32 to vector<8x1xf32>
    %68 = arith.divf %67, %66 : vector<8x1xf32>
    %69 = vector.broadcast %68 : vector<8x1xf32> to vector<8x32xf32>
    %70 = arith.mulf %58, %69 : vector<8x32xf32>
    %71 = vector.broadcast %51 : vector<1x32xf32> to vector<8x32xf32>
    %72 = arith.mulf %70, %71 : vector<8x32xf32>
    %73 = vector.broadcast %52 : vector<1x32xf32> to vector<8x32xf32>
    %74 = arith.addf %72, %73 : vector<8x32xf32>
    %c0_33 = arith.constant 0 : index
    %c0_34 = arith.constant 0 : index
    %75 = vector.load %arg9[%c0_33, %c0_34] : memref<32x128xf32, #tpu.memory_space<vmem>>, vector<32x128xf32>
    %cst_35 = arith.constant dense<0.000000e+00> : vector<8x128xf32>
    %76 = tpu.matmul %74, %75, %cst_35 {dimension_numbers = #tpu.dot_dimension_numbers<[1], [0], [0], [1], [0, 0, 1, 1], [], []>} : vector<8x32xf32>, vector<32x128xf32>, vector<8x128xf32> -> vector<8x128xf32>
    %c0_36 = arith.constant 0 : index
    %c0_37 = arith.constant 0 : index
    %77 = vector.load %arg10[%c0_36, %c0_37] : memref<1x128xf32, #tpu.memory_space<vmem>>, vector<1x128xf32>
    %78 = vector.broadcast %77 : vector<1x128xf32> to vector<8x128xf32>
    %79 = arith.addf %76, %78 : vector<8x128xf32>
    %cst_38 = arith.constant 0.000000e+00 : f32
    %80 = vector.broadcast %cst_38 : f32 to vector<8x128xf32>
    %81 = arith.maximumf %79, %80 : vector<8x128xf32>
    %c0_39 = arith.constant 0 : index
    %c0_40 = arith.constant 0 : index
    %82 = vector.load %arg11[%c0_39, %c0_40] : memref<128x32xf32, #tpu.memory_space<vmem>>, vector<128x32xf32>
    %cst_41 = arith.constant dense<0.000000e+00> : vector<8x32xf32>
    %83 = tpu.matmul %81, %82, %cst_41 {dimension_numbers = #tpu.dot_dimension_numbers<[1], [0], [0], [1], [0, 0, 1, 1], [], []>} : vector<8x128xf32>, vector<128x32xf32>, vector<8x32xf32> -> vector<8x32xf32>
    %c0_42 = arith.constant 0 : index
    %c0_43 = arith.constant 0 : index
    %84 = vector.load %arg12[%c0_42, %c0_43] : memref<1x32xf32, #tpu.memory_space<vmem>>, vector<1x32xf32>
    %85 = vector.broadcast %84 : vector<1x32xf32> to vector<8x32xf32>
    %86 = arith.addf %83, %85 : vector<8x32xf32>
    %87 = arith.addf %86, %74 : vector<8x32xf32>
    %c0_44 = arith.constant 0 : index
    %c0_45 = arith.constant 0 : index
    %88 = vector.load %arg13[%c0_44, %c0_45] : memref<1x32xf32, #tpu.memory_space<vmem>>, vector<1x32xf32>
    %c0_46 = arith.constant 0 : index
    %c0_47 = arith.constant 0 : index
    %89 = vector.load %arg14[%c0_46, %c0_47] : memref<1x32xf32, #tpu.memory_space<vmem>>, vector<1x32xf32>
    %cst_48 = arith.constant dense<0.000000e+00> : vector<8xf32>
    %90 = vector.multi_reduction <add>, %87, %cst_48 [1] : vector<8x32xf32> to vector<8xf32>
    %91 = vector.shape_cast %90 : vector<8xf32> to vector<8x1xf32>
    %cst_49 = arith.constant 3.200000e+01 : f32
    %92 = vector.broadcast %cst_49 : f32 to vector<8x1xf32>
    %93 = arith.divf %91, %92 : vector<8x1xf32>
    %94 = vector.broadcast %93 : vector<8x1xf32> to vector<8x32xf32>
    %95 = arith.subf %87, %94 : vector<8x32xf32>
    %96 = arith.mulf %95, %95 : vector<8x32xf32>
    %cst_50 = arith.constant dense<0.000000e+00> : vector<8xf32>
    %97 = vector.multi_reduction <add>, %96, %cst_50 [1] : vector<8x32xf32> to vector<8xf32>
    %98 = vector.shape_cast %97 : vector<8xf32> to vector<8x1xf32>
    %cst_51 = arith.constant 3.200000e+01 : f32
    %99 = vector.broadcast %cst_51 : f32 to vector<8x1xf32>
    %100 = arith.divf %98, %99 : vector<8x1xf32>
    %cst_52 = arith.constant 9.99999974E-6 : f32
    %101 = vector.broadcast %cst_52 : f32 to vector<8x1xf32>
    %102 = arith.addf %100, %101 : vector<8x1xf32>
    %103 = math.sqrt %102 : vector<8x1xf32>
    %cst_53 = arith.constant 1.000000e+00 : f32
    %104 = vector.broadcast %cst_53 : f32 to vector<8x1xf32>
    %105 = arith.divf %104, %103 : vector<8x1xf32>
    %106 = vector.broadcast %105 : vector<8x1xf32> to vector<8x32xf32>
    %107 = arith.mulf %95, %106 : vector<8x32xf32>
    %108 = vector.broadcast %88 : vector<1x32xf32> to vector<8x32xf32>
    %109 = arith.mulf %107, %108 : vector<8x32xf32>
    %110 = vector.broadcast %89 : vector<1x32xf32> to vector<8x32xf32>
    %111 = arith.addf %109, %110 : vector<8x32xf32>
    %c0_54 = arith.constant 0 : index
    %c0_55 = arith.constant 0 : index
    %c0_56 = arith.constant 0 : index
    %112 = vector.load %arg15[%c0_54, %c0_55, %c0_56] : memref<1x8x32xf32, #tpu.memory_space<vmem>>, vector<1x8x32xf32>
    %113 = vector.shape_cast %112 : vector<1x8x32xf32> to vector<8x32xf32>
    %114 = vector.shape_cast %111 : vector<8x32xf32> to vector<1x8x32xf32>
    tpu.vector_store %arg15[%c0_54, %c0_55, %c0_56], %114 {strides = array<i32>} : memref<1x8x32xf32, #tpu.memory_space<vmem>>, vector<1x8x32xf32>,
    return
  }
  func.func @transform_0(%arg0: i32) -> (i32, i32, i32) {
    %c0_i32 = arith.constant 0 : i32
    %c0_i32_0 = arith.constant 0 : i32
    %c0_i32_1 = arith.constant 0 : i32
    return %arg0, %c0_i32, %c0_i32_0 : i32, i32, i32
  }
  func.func @transform_1(%arg0: i32) -> (i32, i32, i32) {
    %c0_i32 = arith.constant 0 : i32
    %c0_i32_0 = arith.constant 0 : i32
    %c0_i32_1 = arith.constant 0 : i32
    %c0_i32_2 = arith.constant 0 : i32
    return %c0_i32, %c0_i32_0, %c0_i32_1 : i32, i32, i32
  }
  func.func @transform_2(%arg0: i32) -> (i32, i32, i32) {
    %c0_i32 = arith.constant 0 : i32
    %c0_i32_0 = arith.constant 0 : i32
    %c0_i32_1 = arith.constant 0 : i32
    %c0_i32_2 = arith.constant 0 : i32
    return %c0_i32, %c0_i32_0, %c0_i32_1 : i32, i32, i32
  }
  func.func @transform_3(%arg0: i32) -> (i32, i32, i32) {
    %c0_i32 = arith.constant 0 : i32
    %c0_i32_0 = arith.constant 0 : i32
    %c0_i32_1 = arith.constant 0 : i32
    %c0_i32_2 = arith.constant 0 : i32
    return %c0_i32, %c0_i32_0, %c0_i32_1 : i32, i32, i32
  }
  func.func @transform_4(%arg0: i32) -> (i32, i32, i32) {
    %c0_i32 = arith.constant 0 : i32
    %c0_i32_0 = arith.constant 0 : i32
    %c0_i32_1 = arith.constant 0 : i32
    %c0_i32_2 = arith.constant 0 : i32
    return %c0_i32, %c0_i32_0, %c0_i32_1 : i32, i32, i32
  }
  func.func @transform_5(%arg0: i32) -> (i32, i32) {
    %c0_i32 = arith.constant 0 : i32
    %c0_i32_0 = arith.constant 0 : i32
    %c0_i32_1 = arith.constant 0 : i32
    return %c0_i32, %c0_i32_0 : i32, i32
  }
  func.func @transform_6(%arg0: i32) -> (i32, i32) {
    %c0_i32 = arith.constant 0 : i32
    %c0_i32_0 = arith.constant 0 : i32
    %c0_i32_1 = arith.constant 0 : i32
    return %c0_i32, %c0_i32_0 : i32, i32
  }
  func.func @transform_7(%arg0: i32) -> (i32, i32) {
    %c0_i32 = arith.constant 0 : i32
    %c0_i32_0 = arith.constant 0 : i32
    %c0_i32_1 = arith.constant 0 : i32
    return %c0_i32, %c0_i32_0 : i32, i32
  }
  func.func @transform_8(%arg0: i32) -> (i32, i32) {
    %c0_i32 = arith.constant 0 : i32
    %c0_i32_0 = arith.constant 0 : i32
    %c0_i32_1 = arith.constant 0 : i32
    return %c0_i32, %c0_i32_0 : i32, i32
  }
  func.func @transform_9(%arg0: i32) -> (i32, i32) {
    %c0_i32 = arith.constant 0 : i32
    %c0_i32_0 = arith.constant 0 : i32
    %c0_i32_1 = arith.constant 0 : i32
    return %c0_i32, %c0_i32_0 : i32, i32
  }
  func.func @transform_10(%arg0: i32) -> (i32, i32) {
    %c0_i32 = arith.constant 0 : i32
    %c0_i32_0 = arith.constant 0 : i32
    %c0_i32_1 = arith.constant 0 : i32
    return %c0_i32, %c0_i32_0 : i32, i32
  }
  func.func @transform_11(%arg0: i32) -> (i32, i32) {
    %c0_i32 = arith.constant 0 : i32
    %c0_i32_0 = arith.constant 0 : i32
    %c0_i32_1 = arith.constant 0 : i32
    return %c0_i32, %c0_i32_0 : i32, i32
  }
  func.func @transform_12(%arg0: i32) -> (i32, i32) {
    %c0_i32 = arith.constant 0 : i32
    %c0_i32_0 = arith.constant 0 : i32
    %c0_i32_1 = arith.constant 0 : i32
    return %c0_i32, %c0_i32_0 : i32, i32
  }
  func.func @transform_13(%arg0: i32) -> (i32, i32) {
    %c0_i32 = arith.constant 0 : i32
    %c0_i32_0 = arith.constant 0 : i32
    %c0_i32_1 = arith.constant 0 : i32
    return %c0_i32, %c0_i32_0 : i32, i32
  }
  func.func @transform_14(%arg0: i32) -> (i32, i32, i32) {
    %c0_i32 = arith.constant 0 : i32
    %c0_i32_0 = arith.constant 0 : i32
    %c0_i32_1 = arith.constant 0 : i32
    return %arg0, %c0_i32, %c0_i32_0 : i32, i32, i32
  }
}

</mosaic_0001>

<llo_original>
// kernel: basic_transformer_forward.1
$region0: #{basic_transformer_forward.1}
  #allocation0 [shape = 'u32[]', space=smem, size = 0x4, offset = 0x4, fixed_abs, tag = 'smem constant byte address 0x4 - core index']
  #allocation1 [shape = 'u32[144,128]{1,0:T(1,128)}', space=vmem, size = 0x12000, scoped, tag = 'internal scratch']
  %s0 = inlined_call_operand.vmem [shape: f32[2,8,32], index: 0, kind: input, shape index: {}]
  %s1 = inlined_call_operand.hbm [shape: f32[8,32,32], index: 1, kind: input, shape index: {}]
  %s2 = inlined_call_operand.hbm [shape: f32[8,32,32], index: 2, kind: input, shape index: {}]
  %s3 = inlined_call_operand.hbm [shape: f32[8,32,32], index: 3, kind: input, shape index: {}]
  %s4 = inlined_call_operand.hbm [shape: f32[8,32,32], index: 4, kind: input, shape index: {}]
  %s5 = inlined_call_operand.vmem [shape: f32[1,32], index: 5, kind: input, shape index: {}]
  %s6 = inlined_call_operand.vmem [shape: f32[1,32], index: 6, kind: input, shape index: {}]
  %s7 = inlined_call_operand.vmem [shape: f32[1,32], index: 7, kind: input, shape index: {}]
  %s8 = inlined_call_operand.vmem [shape: f32[32,128], index: 8, kind: input, shape index: {}]
  %s9 = inlined_call_operand.vmem [shape: f32[1,128], index: 9, kind: input, shape index: {}]
  %s10 = inlined_call_operand.vmem [shape: f32[128,32], index: 10, kind: input, shape index: {}]
  %s11 = inlined_call_operand.vmem [shape: f32[1,32], index: 11, kind: input, shape index: {}]
  %s12 = inlined_call_operand.vmem [shape: f32[1,32], index: 12, kind: input, shape index: {}]
  %s13 = inlined_call_operand.vmem [shape: f32[1,32], index: 13, kind: input, shape index: {}]
  %s14 = inlined_call_operand.hbm [shape: f32[2,8,32], index: 14, kind: output, shape index: {}]
  %s15 = sld [smem:[#allocation0]]
  $region105: #{basic_transformer_forward.1} parent=0
    _
  %s17 = ssub.s32 1, %s15
  %s18 = scalar_select 0, %s17, %s15
  $region1: #{basic_transformer_forward.1} parent=0
    #allocation2 [shape = 'u8[131072]{0}', space=vmem, size = 0x20000, scoped, tag = 'input window, operand 1, single buffered']
    #allocation3 [shape = 's32[2]{0}', space=sflag, size = 0x8, scoped, tag = 'scoped memory for basic_transformer_forward.1']
    #allocation4 [shape = 's32[2]{0}', space=sflag, size = 0x8, scoped, tag = 'scoped memory for basic_transformer_forward.1']
    #allocation5 [shape = 'u8[131072]{0}', space=vmem, size = 0x20000, scoped, tag = 'input window, operand 2, single buffered']
    #allocation6 [shape = 's32[1]{0}', space=sflag, size = 0x4, scoped, tag = 'scoped memory for basic_transformer_forward.1']
    #allocation7 [shape = 'u8[131072]{0}', space=vmem, size = 0x20000, scoped, tag = 'input window, operand 3, single buffered']
    #allocation8 [shape = 'u8[131072]{0}', space=vmem, size = 0x20000, scoped, tag = 'input window, operand 4, single buffered']
    #allocation9 [shape = 's32[1]{0}', space=sflag, size = 0x4, scoped, tag = 'scoped memory for basic_transformer_forward.1']
    #allocation10 [shape = 'u8[8192]{0}', space=vmem, size = 0x2000, scoped, tag = 'output window, operand 0']
    %19 = vsyncpa [#allocation3], 0
    %20 = vsyncpa [#allocation6], 0
    %21 = vsyncpa [#allocation9], 0
    %22 = vsyncpa [#allocation4], 0
    %s23 = scalar_lea.sflag [#allocation4], 1
    %24 = vsyncpa %s23, 0
    loop: start=0, step=1, limit=4
    $region2: #{basic_transformer_forward.1} parent=1 // loop_pre_header
      _
    $region3: #{basic_transformer_forward.1} parent=1 // loop_header
      %s26 = sphi 0, %s30
      %p27 = scmp.ge.s32.totalorder %s26, 4
      %s36 = sphi 0, %s38
      %s39 = sphi 0, %s36
      %s40 = sphi 0, %s39
      %s56 = sphi 0, %s40
      %s60 = sphi 0, %s60
      %s62 = sphi 0, %s60
      %s63 = sphi 0, %s62
      %s77 = sphi 0, %s63
      %s81 = sphi 0, %s81
      %s83 = sphi 0, %s81
      %s84 = sphi 0, %s83
      %s98 = sphi 0, %s84
      %s102 = sphi 0, %s102
      %s104 = sphi 0, %s102
      %s105 = sphi 0, %s104
      %s119 = sphi 0, %s105
      %s123 = sphi 0, %s123
      %s125 = sphi 0, %s123
      %s126 = sphi 0, %s125
      %s140 = sphi 0, %s126
      %s144 = sphi 0, %s144
      %s146 = sphi 0, %s144
      %s147 = sphi 0, %s146
      %s161 = sphi 0, %s147
      %s165 = sphi 0, %s165
      %s167 = sphi 0, %s165
      %s168 = sphi 0, %s167
      %s182 = sphi 0, %s168
      %s186 = sphi 0, %s186
      %s188 = sphi 0, %s186
      %s189 = sphi 0, %s188
      %s203 = sphi 0, %s189
      %s207 = sphi 0, %s207
      %s209 = sphi 0, %s207
      %s210 = sphi 0, %s209
      %s224 = sphi 0, %s210
      %s228 = sphi 0, %s228
      %s230 = sphi 0, %s228
      %s231 = sphi 0, %s230
      %s245 = sphi 0, %s231
      %s249 = sphi 0, %s249
      %s251 = sphi 0, %s249
      %s252 = sphi 0, %s251
      %s266 = sphi 0, %s252
      %s270 = sphi 0, %s270
      %s272 = sphi 0, %s270
      %s273 = sphi 0, %s272
      %s287 = sphi 0, %s273
      %s291 = sphi 0, %s291
      %s293 = sphi 0, %s291
      %s294 = sphi 0, %s293
      %s308 = sphi 0, %s294
      %s312 = sphi 0, %s312
      %s314 = sphi 0, %s312
      %s315 = sphi 0, %s314
      %s329 = sphi 0, %s315
      %s335 = sphi 0, %s337
      %s338 = sphi 0, %s335
      %s339 = sphi 0, %s338
      %s355 = sphi 0, %s339
    $region4: #{basic_transformer_forward.1} parent=1 // loop_header_branch
      %29 = sbr.rel (%p27) target = $region8
    $region5: #{basic_transformer_forward.1} parent=1 // loop_body
      %s31 = ssub.s32 %s26, 1
      %s32 = ssub.s32 %s26, 2
      %s33 = sadd.s32 %s26, 1
      %s34 = ssub.s32 %s26, %s33
      %p35 = scmp.eq.s32.totalorder %s34, 0
      %s37 = sadd.s32 %s36, 1
      %s38 = scalar_select %p35, %s36, %s37
      %p41 = pneg %p35
      %p42 = scmp.eq.s32.totalorder %s26, 1
      %p43 = por %p41, %p42
      %p44 = scmp.ne.s32.totalorder %s36, %s39
      %p45 = scmp.eq.s32.totalorder %s26, 0
      %p46 = por %p44, %p45
      %p47 = scmp.ne.s32.totalorder %s36, %s39
      %p48 = scmp.eq.s32.totalorder %s31, 1
      %p49 = por %p47, %p48
      %p50 = scmp.ne.s32.totalorder %s39, %s40
      %p51 = scmp.eq.s32.totalorder %s31, 0
      %p52 = por %p50, %p51
      %p53 = scmp.ne.s32.totalorder %s39, %s40
      %p54 = scmp.eq.s32.totalorder %s32, 1
      %p55 = por %p53, %p54
      %p57 = scmp.ne.s32.totalorder %s40, %s56
      %p58 = scmp.eq.s32.totalorder %s32, 0
      %p59 = por %p57, %p58
      %s61 = sadd.s32 %s60, 1
      %p64 = scmp.eq.s32.totalorder %s26, 1
      %p65 = scmp.ne.s32.totalorder %s60, %s62
      %p66 = scmp.eq.s32.totalorder %s26, 0
      %p67 = por %p65, %p66
      %p68 = scmp.ne.s32.totalorder %s60, %s62
      %p69 = scmp.eq.s32.totalorder %s31, 1
      %p70 = por %p68, %p69
      %p71 = scmp.ne.s32.totalorder %s62, %s63
      %p72 = scmp.eq.s32.totalorder %s31, 0
      %p73 = por %p71, %p72
      %p74 = scmp.ne.s32.totalorder %s62, %s63
      %p75 = scmp.eq.s32.totalorder %s32, 1
      %p76 = por %p74, %p75
      %p78 = scmp.ne.s32.totalorder %s63, %s77
      %p79 = scmp.eq.s32.totalorder %s32, 0
      %p80 = por %p78, %p79
      %s82 = sadd.s32 %s81, 1
      %p85 = scmp.eq.s32.totalorder %s26, 1
      %p86 = scmp.ne.s32.totalorder %s81, %s83
      %p87 = scmp.eq.s32.totalorder %s26, 0
      %p88 = por %p86, %p87
      %p89 = scmp.ne.s32.totalorder %s81, %s83
      %p90 = scmp.eq.s32.totalorder %s31, 1
      %p91 = por %p89, %p90
      %p92 = scmp.ne.s32.totalorder %s83, %s84
      %p93 = scmp.eq.s32.totalorder %s31, 0
      %p94 = por %p92, %p93
      %p95 = scmp.ne.s32.totalorder %s83, %s84
      %p96 = scmp.eq.s32.totalorder %s32, 1
      %p97 = por %p95, %p96
      %p99 = scmp.ne.s32.totalorder %s84, %s98
      %p100 = scmp.eq.s32.totalorder %s32, 0
      %p101 = por %p99, %p100
      %s103 = sadd.s32 %s102, 1
      %p106 = scmp.eq.s32.totalorder %s26, 1
      %p107 = scmp.ne.s32.totalorder %s102, %s104
      %p108 = scmp.eq.s32.totalorder %s26, 0
      %p109 = por %p107, %p108
      %p110 = scmp.ne.s32.totalorder %s102, %s104
      %p111 = scmp.eq.s32.totalorder %s31, 1
      %p112 = por %p110, %p111
      %p113 = scmp.ne.s32.totalorder %s104, %s105
      %p114 = scmp.eq.s32.totalorder %s31, 0
      %p115 = por %p113, %p114
      %p116 = scmp.ne.s32.totalorder %s104, %s105
      %p117 = scmp.eq.s32.totalorder %s32, 1
      %p118 = por %p116, %p117
      %p120 = scmp.ne.s32.totalorder %s105, %s119
      %p121 = scmp.eq.s32.totalorder %s32, 0
      %p122 = por %p120, %p121
      %s124 = sadd.s32 %s123, 1
      %p127 = scmp.eq.s32.totalorder %s26, 1
      %p128 = scmp.ne.s32.totalorder %s123, %s125
      %p129 = scmp.eq.s32.totalorder %s26, 0
      %p130 = por %p128, %p129
      %p131 = scmp.ne.s32.totalorder %s123, %s125
      %p132 = scmp.eq.s32.totalorder %s31, 1
      %p133 = por %p131, %p132
      %p134 = scmp.ne.s32.totalorder %s125, %s126
      %p135 = scmp.eq.s32.totalorder %s31, 0
      %p136 = por %p134, %p135
      %p137 = scmp.ne.s32.totalorder %s125, %s126
      %p138 = scmp.eq.s32.totalorder %s32, 1
      %p139 = por %p137, %p138
      %p141 = scmp.ne.s32.totalorder %s126, %s140
      %p142 = scmp.eq.s32.totalorder %s32, 0
      %p143 = por %p141, %p142
      %s145 = sadd.s32 %s144, 1
      %p148 = scmp.eq.s32.totalorder %s26, 1
      %p149 = scmp.ne.s32.totalorder %s144, %s146
      %p150 = scmp.eq.s32.totalorder %s26, 0
      %p151 = por %p149, %p150
      %p152 = scmp.ne.s32.totalorder %s144, %s146
      %p153 = scmp.eq.s32.totalorder %s31, 1
      %p154 = por %p152, %p153
      %p155 = scmp.ne.s32.totalorder %s146, %s147
      %p156 = scmp.eq.s32.totalorder %s31, 0
      %p157 = por %p155, %p156
      %p158 = scmp.ne.s32.totalorder %s146, %s147
      %p159 = scmp.eq.s32.totalorder %s32, 1
      %p160 = por %p158, %p159
      %p162 = scmp.ne.s32.totalorder %s147, %s161
      %p163 = scmp.eq.s32.totalorder %s32, 0
      %p164 = por %p162, %p163
      %s166 = sadd.s32 %s165, 1
      %p169 = scmp.eq.s32.totalorder %s26, 1
      %p170 = scmp.ne.s32.totalorder %s165, %s167
      %p171 = scmp.eq.s32.totalorder %s26, 0
      %p172 = por %p170, %p171
      %p173 = scmp.ne.s32.totalorder %s165, %s167
      %p174 = scmp.eq.s32.totalorder %s31, 1
      %p175 = por %p173, %p174
      %p176 = scmp.ne.s32.totalorder %s167, %s168
      %p177 = scmp.eq.s32.totalorder %s31, 0
      %p178 = por %p176, %p177
      %p179 = scmp.ne.s32.totalorder %s167, %s168
      %p180 = scmp.eq.s32.totalorder %s32, 1
      %p181 = por %p179, %p180
      %p183 = scmp.ne.s32.totalorder %s168, %s182
      %p184 = scmp.eq.s32.totalorder %s32, 0
      %p185 = por %p183, %p184
      %s187 = sadd.s32 %s186, 1
      %p190 = scmp.eq.s32.totalorder %s26, 1
      %p191 = scmp.ne.s32.totalorder %s186, %s188
      %p192 = scmp.eq.s32.totalorder %s26, 0
      %p193 = por %p191, %p192
      %p194 = scmp.ne.s32.totalorder %s186, %s188
      %p195 = scmp.eq.s32.totalorder %s31, 1
      %p196 = por %p194, %p195
      %p197 = scmp.ne.s32.totalorder %s188, %s189
      %p198 = scmp.eq.s32.totalorder %s31, 0
      %p199 = por %p197, %p198
      %p200 = scmp.ne.s32.totalorder %s188, %s189
      %p201 = scmp.eq.s32.totalorder %s32, 1
      %p202 = por %p200, %p201
      %p204 = scmp.ne.s32.totalorder %s189, %s203
      %p205 = scmp.eq.s32.totalorder %s32, 0
      %p206 = por %p204, %p205
      %s208 = sadd.s32 %s207, 1
      %p211 = scmp.eq.s32.totalorder %s26, 1
      %p212 = scmp.ne.s32.totalorder %s207, %s209
      %p213 = scmp.eq.s32.totalorder %s26, 0
      %p214 = por %p212, %p213
      %p215 = scmp.ne.s32.totalorder %s207, %s209
      %p216 = scmp.eq.s32.totalorder %s31, 1
      %p217 = por %p215, %p216
      %p218 = scmp.ne.s32.totalorder %s209, %s210
      %p219 = scmp.eq.s32.totalorder %s31, 0
      %p220 = por %p218, %p219
      %p221 = scmp.ne.s32.totalorder %s209, %s210
      %p222 = scmp.eq.s32.totalorder %s32, 1
      %p223 = por %p221, %p222
      %p225 = scmp.ne.s32.totalorder %s210, %s224
      %p226 = scmp.eq.s32.totalorder %s32, 0
      %p227 = por %p225, %p226
      %s229 = sadd.s32 %s228, 1
      %p232 = scmp.eq.s32.totalorder %s26, 1
      %p233 = scmp.ne.s32.totalorder %s228, %s230
      %p234 = scmp.eq.s32.totalorder %s26, 0
      %p235 = por %p233, %p234
      %p236 = scmp.ne.s32.totalorder %s228, %s230
      %p237 = scmp.eq.s32.totalorder %s31, 1
      %p238 = por %p236, %p237
      %p239 = scmp.ne.s32.totalorder %s230, %s231
      %p240 = scmp.eq.s32.totalorder %s31, 0
      %p241 = por %p239, %p240
      %p242 = scmp.ne.s32.totalorder %s230, %s231
      %p243 = scmp.eq.s32.totalorder %s32, 1
      %p244 = por %p242, %p243
      %p246 = scmp.ne.s32.totalorder %s231, %s245
      %p247 = scmp.eq.s32.totalorder %s32, 0
      %p248 = por %p246, %p247
      %s250 = sadd.s32 %s249, 1
      %p253 = scmp.eq.s32.totalorder %s26, 1
      %p254 = scmp.ne.s32.totalorder %s249, %s251
      %p255 = scmp.eq.s32.totalorder %s26, 0
      %p256 = por %p254, %p255
      %p257 = scmp.ne.s32.totalorder %s249, %s251
      %p258 = scmp.eq.s32.totalorder %s31, 1
      %p259 = por %p257, %p258
      %p260 = scmp.ne.s32.totalorder %s251, %s252
      %p261 = scmp.eq.s32.totalorder %s31, 0
      %p262 = por %p260, %p261
      %p263 = scmp.ne.s32.totalorder %s251, %s252
      %p264 = scmp.eq.s32.totalorder %s32, 1
      %p265 = por %p263, %p264
      %p267 = scmp.ne.s32.totalorder %s252, %s266
      %p268 = scmp.eq.s32.totalorder %s32, 0
      %p269 = por %p267, %p268
      %s271 = sadd.s32 %s270, 1
      %p274 = scmp.eq.s32.totalorder %s26, 1
      %p275 = scmp.ne.s32.totalorder %s270, %s272
      %p276 = scmp.eq.s32.totalorder %s26, 0
      %p277 = por %p275, %p276
      %p278 = scmp.ne.s32.totalorder %s270, %s272
      %p279 = scmp.eq.s32.totalorder %s31, 1
      %p280 = por %p278, %p279
      %p281 = scmp.ne.s32.totalorder %s272, %s273
      %p282 = scmp.eq.s32.totalorder %s31, 0
      %p283 = por %p281, %p282
      %p284 = scmp.ne.s32.totalorder %s272, %s273
      %p285 = scmp.eq.s32.totalorder %s32, 1
      %p286 = por %p284, %p285
      %p288 = scmp.ne.s32.totalorder %s273, %s287
      %p289 = scmp.eq.s32.totalorder %s32, 0
      %p290 = por %p288, %p289
      %s292 = sadd.s32 %s291, 1
      %p295 = scmp.eq.s32.totalorder %s26, 1
      %p296 = scmp.ne.s32.totalorder %s291, %s293
      %p297 = scmp.eq.s32.totalorder %s26, 0
      %p298 = por %p296, %p297
      %p299 = scmp.ne.s32.totalorder %s291, %s293
      %p300 = scmp.eq.s32.totalorder %s31, 1
      %p301 = por %p299, %p300
      %p302 = scmp.ne.s32.totalorder %s293, %s294
      %p303 = scmp.eq.s32.totalorder %s31, 0
      %p304 = por %p302, %p303
      %p305 = scmp.ne.s32.totalorder %s293, %s294
      %p306 = scmp.eq.s32.totalorder %s32, 1
      %p307 = por %p305, %p306
      %p309 = scmp.ne.s32.totalorder %s294, %s308
      %p310 = scmp.eq.s32.totalorder %s32, 0
      %p311 = por %p309, %p310
      %s313 = sadd.s32 %s312, 1
      %p316 = scmp.eq.s32.totalorder %s26, 1
      %p317 = scmp.ne.s32.totalorder %s312, %s314
      %p318 = scmp.eq.s32.totalorder %s26, 0
      %p319 = por %p317, %p318
      %p320 = scmp.ne.s32.totalorder %s312, %s314
      %p321 = scmp.eq.s32.totalorder %s31, 1
      %p322 = por %p320, %p321
      %p323 = scmp.ne.s32.totalorder %s314, %s315
      %p324 = scmp.eq.s32.totalorder %s31, 0
      %p325 = por %p323, %p324
      %p326 = scmp.ne.s32.totalorder %s314, %s315
      %p327 = scmp.eq.s32.totalorder %s32, 1
      %p328 = por %p326, %p327
      %p330 = scmp.ne.s32.totalorder %s315, %s329
      %p331 = scmp.eq.s32.totalorder %s32, 0
      %p332 = por %p330, %p331
      %s333 = ssub.s32 %s26, %s33
      %p334 = scmp.eq.s32.totalorder %s333, 0
      %s336 = sadd.s32 %s335, 1
      %s337 = scalar_select %p334, %s335, %s336
      %p340 = pneg %p334
      %p341 = scmp.eq.s32.totalorder %s26, 1
      %p342 = por %p340, %p341
      %p343 = scmp.ne.s32.totalorder %s335, %s338
      %p344 = scmp.eq.s32.totalorder %s26, 0
      %p345 = por %p343, %p344
      %p346 = scmp.ne.s32.totalorder %s335, %s338
      %p347 = scmp.eq.s32.totalorder %s31, 1
      %p348 = por %p346, %p347
      %p349 = scmp.ne.s32.totalorder %s338, %s339
      %p350 = scmp.eq.s32.totalorder %s31, 0
      %p351 = por %p349, %p350
      %p352 = scmp.ne.s32.totalorder %s338, %s339
      %p353 = scmp.eq.s32.totalorder %s32, 1
      %p354 = por %p352, %p353
      %p356 = scmp.ne.s32.totalorder %s339, %s355
      %p357 = scmp.eq.s32.totalorder %s32, 0
      %p358 = por %p356, %p357
      %p359 = scmp.le.s32.totalorder 1, %s26
      %p360 = scmp.lt.s32.totalorder %s26, 3
      %p361 = pnand %p359, %p360
      %p362 = pneg %p361
      // Predicated region
      $region9: #{basic_transformer_forward.1} parent=5 // pred_check
        _
      $region10: #{basic_transformer_forward.1} parent=5 // pred_check_branch
        %364 = sbr.rel (%p361) target = $region12
      $region11: #{basic_transformer_forward.1} parent=5 // pred_region
        %s365 = ssub.s32 %s26, 1
        // Predicated region
        $region13: #{basic_transformer_forward.1} parent=11 // pred_check
          %p366 = pneg %p73
        $region14: #{basic_transformer_forward.1} parent=11 // pred_check_branch
          %368 = sbr.rel (%p366) target = $region16
        $region15: #{basic_transformer_forward.1} parent=11 // pred_region
          %s370 = ssub.s32 4096, 4096
          %371 = vsyncadd [#allocation3], %s370
          %s372 = sshll.u32 [#allocation2], 4
          %s373 = int_to_ptr.vmem [resolvable:$true] %s372
          %378 = dma.hbm_to_vmem [thread:$0]  %s1, 4096, %s373, [#allocation3], 128, 128, 8
        $region16: #{basic_transformer_forward.1} parent=11 // pred_fallthru
          _
        // Predicated region
        $region17: #{basic_transformer_forward.1} parent=11 // pred_check
          %p379 = pneg %p94
        $region18: #{basic_transformer_forward.1} parent=11 // pred_check_branch
          %381 = sbr.rel (%p379) target = $region20
        $region19: #{basic_transformer_forward.1} parent=11 // pred_region
          %s383 = ssub.s32 4096, 4096
          %384 = vsyncadd [#allocation6], %s383
          %s385 = sshll.u32 [#allocation5], 4
          %s386 = int_to_ptr.vmem [resolvable:$true] %s385
          %391 = dma.hbm_to_vmem [thread:$0]  %s2, 4096, %s386, [#allocation6], 128, 128, 8
        $region20: #{basic_transformer_forward.1} parent=11 // pred_fallthru
          _
        // Predicated region
        $region21: #{basic_transformer_forward.1} parent=11 // pred_check
          %p392 = pneg %p115
        $region22: #{basic_transformer_forward.1} parent=11 // pred_check_branch
          %394 = sbr.rel (%p392) target = $region24
        $region23: #{basic_transformer_forward.1} parent=11 // pred_region
          %s396 = ssub.s32 4096, 4096
          %397 = vsyncadd [#allocation6], %s396
          %s398 = sshll.u32 [#allocation7], 4
          %s399 = int_to_ptr.vmem [resolvable:$true] %s398
          %404 = dma.hbm_to_vmem [thread:$0]  %s3, 4096, %s399, [#allocation6], 128, 128, 8
        $region24: #{basic_transformer_forward.1} parent=11 // pred_fallthru
          _
        // Predicated region
        $region25: #{basic_transformer_forward.1} parent=11 // pred_check
          %p405 = pneg %p136
        $region26: #{basic_transformer_forward.1} parent=11 // pred_check_branch
          %407 = sbr.rel (%p405) target = $region28
        $region27: #{basic_transformer_forward.1} parent=11 // pred_region
          %s409 = ssub.s32 4096, 4096
          %410 = vsyncadd [#allocation9], %s409
          %s411 = sshll.u32 [#allocation8], 4
          %s412 = int_to_ptr.vmem [resolvable:$true] %s411
          %417 = dma.hbm_to_vmem [thread:$0]  %s4, 4096, %s412, [#allocation9], 128, 128, 8
        $region28: #{basic_transformer_forward.1} parent=11 // pred_fallthru
          _
        // Predicated region
        $region29: #{basic_transformer_forward.1} parent=11 // pred_check
          %p418 = pneg %p157
        $region30: #{basic_transformer_forward.1} parent=11 // pred_check_branch
          %420 = sbr.rel (%p418) target = $region32
        $region31: #{basic_transformer_forward.1} parent=11 // pred_region
          _
        $region32: #{basic_transformer_forward.1} parent=11 // pred_fallthru
          _
        // Predicated region
        $region33: #{basic_transformer_forward.1} parent=11 // pred_check
          %p421 = pneg %p178
        $region34: #{basic_transformer_forward.1} parent=11 // pred_check_branch
          %423 = sbr.rel (%p421) target = $region36
        $region35: #{basic_transformer_forward.1} parent=11 // pred_region
          _
        $region36: #{basic_transformer_forward.1} parent=11 // pred_fallthru
          _
        // Predicated region
        $region37: #{basic_transformer_forward.1} parent=11 // pred_check
          %p424 = pneg %p199
        $region38: #{basic_transformer_forward.1} parent=11 // pred_check_branch
          %426 = sbr.rel (%p424) target = $region40
        $region39: #{basic_transformer_forward.1} parent=11 // pred_region
          _
        $region40: #{basic_transformer_forward.1} parent=11 // pred_fallthru
          _
        // Predicated region
        $region41: #{basic_transformer_forward.1} parent=11 // pred_check
          %p427 = pneg %p220
        $region42: #{basic_transformer_forward.1} parent=11 // pred_check_branch
          %429 = sbr.rel (%p427) target = $region44
        $region43: #{basic_transformer_forward.1} parent=11 // pred_region
          _
        $region44: #{basic_transformer_forward.1} parent=11 // pred_fallthru
          _
        // Predicated region
        $region45: #{basic_transformer_forward.1} parent=11 // pred_check
          %p430 = pneg %p241
        $region46: #{basic_transformer_forward.1} parent=11 // pred_check_branch
          %432 = sbr.rel (%p430) target = $region48
        $region47: #{basic_transformer_forward.1} parent=11 // pred_region
          _
        $region48: #{basic_transformer_forward.1} parent=11 // pred_fallthru
          _
        // Predicated region
        $region49: #{basic_transformer_forward.1} parent=11 // pred_check
          %p433 = pneg %p262
        $region50: #{basic_transformer_forward.1} parent=11 // pred_check_branch
          %435 = sbr.rel (%p433) target = $region52
        $region51: #{basic_transformer_forward.1} parent=11 // pred_region
          _
        $region52: #{basic_transformer_forward.1} parent=11 // pred_fallthru
          _
        // Predicated region
        $region53: #{basic_transformer_forward.1} parent=11 // pred_check
          %p436 = pneg %p283
        $region54: #{basic_transformer_forward.1} parent=11 // pred_check_branch
          %438 = sbr.rel (%p436) target = $region56
        $region55: #{basic_transformer_forward.1} parent=11 // pred_region
          _
        $region56: #{basic_transformer_forward.1} parent=11 // pred_fallthru
          _
        // Predicated region
        $region57: #{basic_transformer_forward.1} parent=11 // pred_check
          %p439 = pneg %p304
        $region58: #{basic_transformer_forward.1} parent=11 // pred_check_branch
          %441 = sbr.rel (%p439) target = $region60
        $region59: #{basic_transformer_forward.1} parent=11 // pred_region
          _
        $region60: #{basic_transformer_forward.1} parent=11 // pred_fallthru
          _
        // Predicated region
        $region61: #{basic_transformer_forward.1} parent=11 // pred_check
          %p442 = pneg %p325
        $region62: #{basic_transformer_forward.1} parent=11 // pred_check_branch
          %444 = sbr.rel (%p442) target = $region64
        $region63: #{basic_transformer_forward.1} parent=11 // pred_region
          _
        $region64: #{basic_transformer_forward.1} parent=11 // pred_fallthru
          _
      $region12: #{basic_transformer_forward.1} parent=5 // pred_fallthru
        _
      %p445 = scmp.lt.s32.totalorder %s26, 2
      // Predicated region
      $region65: #{basic_transformer_forward.1} parent=5 // pred_check
        %p446 = pneg %p445
      $region66: #{basic_transformer_forward.1} parent=5 // pred_check_branch
        %448 = sbr.rel (%p446) target = $region68
      $region67: #{basic_transformer_forward.1} parent=5 // pred_region
        // Predicated region
        $region69: #{basic_transformer_forward.1} parent=67 // pred_check
          %p449 = pneg %p46
        $region70: #{basic_transformer_forward.1} parent=67 // pred_check_branch
          %451 = sbr.rel (%p449) target = $region72
        $region71: #{basic_transformer_forward.1} parent=67 // pred_region
          %p452 = scmp.lt.s32.totalorder %s26, 1
          %s453 = scalar_select %p452, %s26, 1
          %s454 = smul.addr %s453, 8
          %s455 = scalar_lea.vmem %s0, %s454
        $region72: #{basic_transformer_forward.1} parent=67 // pred_fallthru
          _
      $region68: #{basic_transformer_forward.1} parent=5 // pred_fallthru
        _
      %p456 = scmp.le.s32.totalorder 1, %s26
      %p457 = scmp.lt.s32.totalorder %s26, 3
      %p458 = pnand %p456, %p457
      %p459 = pneg %p458
      // Predicated region
      $region73: #{basic_transformer_forward.1} parent=5 // pred_check
        _
      $region74: #{basic_transformer_forward.1} parent=5 // pred_check_branch
        %461 = sbr.rel (%p458) target = $region76
      $region75: #{basic_transformer_forward.1} parent=5 // pred_region
        %s462 = ssub.s32 %s26, 1
        // Predicated region
        $region77: #{basic_transformer_forward.1} parent=75 // pred_check
          %p463 = pneg %p73
        $region78: #{basic_transformer_forward.1} parent=75 // pred_check_branch
          %465 = sbr.rel (%p463) target = $region80
        $region79: #{basic_transformer_forward.1} parent=75 // pred_region
          %466 = dma.done [#allocation3], 4096
        $region80: #{basic_transformer_forward.1} parent=75 // pred_fallthru
          _
        // Predicated region
        $region81: #{basic_transformer_forward.1} parent=75 // pred_check
          %p467 = pneg %p94
        $region82: #{basic_transformer_forward.1} parent=75 // pred_check_branch
          %469 = sbr.rel (%p467) target = $region84
        $region83: #{basic_transformer_forward.1} parent=75 // pred_region
          %470 = dma.done [#allocation6], 4096
        $region84: #{basic_transformer_forward.1} parent=75 // pred_fallthru
          _
        // Predicated region
        $region85: #{basic_transformer_forward.1} parent=75 // pred_check
          %p471 = pneg %p115
        $region86: #{basic_transformer_forward.1} parent=75 // pred_check_branch
          %473 = sbr.rel (%p471) target = $region88
        $region87: #{basic_transformer_forward.1} parent=75 // pred_region
          %474 = dma.done [#allocation6], 4096
        $region88: #{basic_transformer_forward.1} parent=75 // pred_fallthru
          _
        // Predicated region
        $region89: #{basic_transformer_forward.1} parent=75 // pred_check
          %p475 = pneg %p136
        $region90: #{basic_transformer_forward.1} parent=75 // pred_check_branch
          %477 = sbr.rel (%p475) target = $region92
        $region91: #{basic_transformer_forward.1} parent=75 // pred_region
          %478 = dma.done [#allocation9], 4096
        $region92: #{basic_transformer_forward.1} parent=75 // pred_fallthru
          _
        %p479 = scmp.lt.s32.totalorder %s31, 1
        %s480 = scalar_select %p479, %s31, 1
        %s481 = smul.addr %s480, 8
        %s482 = scalar_lea.vmem %s0, %s481
        %p483 = pneg %p52
        %p484 = pneg %p49
        %p485 = pneg %p73
        %p486 = pneg %p70
        %p487 = pneg %p94
        %p488 = pneg %p91
        %p489 = pneg %p115
        %p490 = pneg %p112
        %p491 = pneg %p136
        %p492 = pneg %p133
        %p493 = pneg %p157
        %p494 = pneg %p154
        %p495 = pneg %p178
        %p496 = pneg %p175
        %p497 = pneg %p199
        %p498 = pneg %p196
        %p499 = pneg %p220
        %p500 = pneg %p217
        %p501 = pneg %p241
        %p502 = pneg %p238
        %p503 = pneg %p262
        %p504 = pneg %p259
        %p505 = pneg %p283
        %p506 = pneg %p280
        %p507 = pneg %p304
        %p508 = pneg %p301
        %p509 = pneg %p325
        %p510 = pneg %p322
        %p511 = pneg %p351
        %p512 = pneg %p348
        %s513 = sand.u32 %s338, 1
        %s514 = scalar_lea.sflag [#allocation4], %s513
        %s515 = sand.u32 %s338, 1
        %s516 = smul.addr %s515, 8
        %s517 = scalar_lea.vmem [#allocation10], %s516
        %p518 = scmp.lt.s32.totalorder %s31, 1
        %s519 = scalar_select %p518, %s31, 1
        %s520 = smul.addr %s519, 8
        %s521 = scalar_lea.vmem %s0, %s520
        %v522 = vld [vmem:[%s521] sm:$0xff]
        %v523 = vld [vmem:[#allocation2] sm:$0xff]
        %v524 = vld [vmem:[#allocation2 + $0x8] sm:$0xff]
        %v525 = vld [vmem:[#allocation2 + $0x10] sm:$0xff]
        %v526 = vld [vmem:[#allocation2 + $0x18] sm:$0xff]
        %v527 = vld [vmem:[#allocation2 + $0x20] sm:$0xff]
        %v528 = vld [vmem:[#allocation2 + $0x28] sm:$0xff]
        %v529 = vld [vmem:[#allocation2 + $0x30] sm:$0xff]
        %v530 = vld [vmem:[#allocation2 + $0x38] sm:$0xff]
        %v531 = vld [vmem:[#allocation2 + $0x40] sm:$0xff]
        %v532 = vld [vmem:[#allocation2 + $0x48] sm:$0xff]
        %v533 = vld [vmem:[#allocation2 + $0x50] sm:$0xff]
        %v534 = vld [vmem:[#allocation2 + $0x58] sm:$0xff]
        %v535 = vld [vmem:[#allocation2 + $0x60] sm:$0xff]
        %v536 = vld [vmem:[#allocation2 + $0x68] sm:$0xff]
        %v537 = vld [vmem:[#allocation2 + $0x70] sm:$0xff]
        %v538 = vld [vmem:[#allocation2 + $0x78] sm:$0xff]
        %v539 = vld [vmem:[#allocation2 + $0x80] sm:$0xff]
        %v540 = vld [vmem:[#allocation2 + $0x88] sm:$0xff]
        %v541 = vld [vmem:[#allocation2 + $0x90] sm:$0xff]
        %v542 = vld [vmem:[#allocation2 + $0x98] sm:$0xff]
        %v543 = vld [vmem:[#allocation2 + $0xa0] sm:$0xff]
        %v544 = vld [vmem:[#allocation2 + $0xa8] sm:$0xff]
        %v545 = vld [vmem:[#allocation2 + $0xb0] sm:$0xff]
        %v546 = vld [vmem:[#allocation2 + $0xb8] sm:$0xff]
        %v547 = vld [vmem:[#allocation2 + $0xc0] sm:$0xff]
        %v548 = vld [vmem:[#allocation2 + $0xc8] sm:$0xff]
        %v549 = vld [vmem:[#allocation2 + $0xd0] sm:$0xff]
        %v550 = vld [vmem:[#allocation2 + $0xd8] sm:$0xff]
        %v551 = vld [vmem:[#allocation2 + $0xe0] sm:$0xff]
        %v552 = vld [vmem:[#allocation2 + $0xe8] sm:$0xff]
        %v553 = vld [vmem:[#allocation2 + $0xf0] sm:$0xff]
        %v554 = vld [vmem:[#allocation2 + $0xf8] sm:$0xff]
        %vm555 = vcmask 261120
        %v557 = vsel %vm555, %v522, 0
        %559 = vmatprep.subr.mxu0 0.0
        %560 = vmatpush1.msra.mxu0 %v523
        %561 = vmatprep.subr.mxu0 0.0
        %562 = vmatpush1.msra.mxu0 %v524
        %563 = vmatprep.subr.mxu0 0.0
        %564 = vmatpush1.msra.mxu0 %v525
        %565 = vmatprep.subr.mxu0 0.0
        %566 = vmatpush1.msra.mxu0 %v526
        %567 = vmatprep.subr.mxu0 0.0
        %568 = vmatpush1.msra.mxu0 0.0
        %569 = vmatprep.subr.mxu0 0.0
        %570 = vmatpush1.msra.mxu0 0.0
        %571 = vmatprep.subr.mxu0 0.0
        %572 = vmatpush1.msra.mxu0 0.0
        %573 = vmatprep.subr.mxu0 0.0
        %574 = vmatpush1.msra.mxu0 0.0
        %575 = vmatprep.subr.mxu0 0.0
        %576 = vmatpush1.msra.mxu0 0.0
        %577 = vmatprep.subr.mxu0 0.0
        %578 = vmatpush1.msra.mxu0 0.0
        %579 = vmatprep.subr.mxu0 0.0
        %580 = vmatpush1.msra.mxu0 0.0
        %581 = vmatprep.subr.mxu0 0.0
        %582 = vmatpush1.msra.mxu0 0.0
        %583 = vmatprep.subr.mxu0 0.0
        %584 = vmatpush1.msra.mxu0 0.0
        %585 = vmatprep.subr.mxu0 0.0
        %586 = vmatpush1.msra.mxu0 0.0
        %587 = vmatprep.subr.mxu0 0.0
        %588 = vmatpush1.msra.mxu0 0.0
        %589 = vmatprep.subr.mxu0 0.0
        %590 = vmatpush1.msra.mxu0 0.0
        %591 = vmatprep.subr.mxu0 0.0
        %592 = vmatpush1.msra.mxu0 0.0
        %593 = vmatprep.subr.mxu0 0.0
        %594 = vmatpush1.msra.mxu0 0.0
        %595 = vmatprep.subr.mxu0 0.0
        %596 = vmatpush1.msra.mxu0 0.0
        %597 = vmatprep.subr.mxu0 0.0
        %598 = vmatpush1.msra.mxu0 0.0
        %599 = vmatprep.subr.mxu0 0.0
        %600 = vmatpush1.msra.mxu0 0.0
        %601 = vmatprep.subr.mxu0 0.0
        %602 = vmatpush1.msra.mxu0 0.0
        %603 = vmatprep.subr.mxu0 0.0
        %604 = vmatpush1.msra.mxu0 0.0
        %605 = vmatprep.subr.mxu0 0.0
        %606 = vmatpush1.msra.mxu0 0.0
        %607 = vmatprep.subr.mxu0 0.0
        %608 = vmatpush1.msra.mxu0 0.0
        %609 = vmatprep.subr.mxu0 0.0
        %610 = vmatpush1.msra.mxu0 0.0
        %611 = vmatprep.subr.mxu0 0.0
        %612 = vmatpush1.msra.mxu0 0.0
        %613 = vmatprep.subr.mxu0 0.0
        %614 = vmatpush1.msra.mxu0 0.0
        %615 = vmatprep.subr.mxu0 0.0
        %616 = vmatpush1.msra.mxu0 0.0
        %617 = vmatprep.subr.mxu0 0.0
        %618 = vmatpush1.msra.mxu0 0.0
        %619 = vmatprep.subr.mxu0 0.0
        %620 = vmatpush1.msra.mxu0 0.0
        %621 = vmatprep.subr.mxu0 0.0
        %622 = vmatpush1.msra.mxu0 0.0
        %623 = vmatprep.mubr.f32.mxu0 0.0
        %624 = vmatmul.mubr.f32.gmra.mrb[0].mxu0 %v557
        %v625 = vpop.f32.mrb[0].mxu0
        %v626 = vadd.f32 0.0, %v625
        %v627 = vpop.f32.mrb[0].mxu0
        %628 = vdwg.mxu0
        %629 = vmatprep.subr.mxu0 0.0
        %630 = vmatpush1.msra.mxu0 %v527
        %631 = vmatprep.subr.mxu0 0.0
        %632 = vmatpush1.msra.mxu0 %v528
        %633 = vmatprep.subr.mxu0 0.0
        %634 = vmatpush1.msra.mxu0 %v529
        %635 = vmatprep.subr.mxu0 0.0
        %636 = vmatpush1.msra.mxu0 %v530
        %637 = vmatprep.subr.mxu0 0.0
        %638 = vmatpush1.msra.mxu0 0.0
        %639 = vmatprep.subr.mxu0 0.0
        %640 = vmatpush1.msra.mxu0 0.0
        %641 = vmatprep.subr.mxu0 0.0
        %642 = vmatpush1.msra.mxu0 0.0
        %643 = vmatprep.subr.mxu0 0.0
        %644 = vmatpush1.msra.mxu0 0.0
        %645 = vmatprep.subr.mxu0 0.0
        %646 = vmatpush1.msra.mxu0 0.0
        %647 = vmatprep.subr.mxu0 0.0
        %648 = vmatpush1.msra.mxu0 0.0
        %649 = vmatprep.subr.mxu0 0.0
        %650 = vmatpush1.msra.mxu0 0.0
        %651 = vmatprep.subr.mxu0 0.0
        %652 = vmatpush1.msra.mxu0 0.0
        %653 = vmatprep.subr.mxu0 0.0
        %654 = vmatpush1.msra.mxu0 0.0
        %655 = vmatprep.subr.mxu0 0.0
        %656 = vmatpush1.msra.mxu0 0.0
        %657 = vmatprep.subr.mxu0 0.0
        %658 = vmatpush1.msra.mxu0 0.0
        %659 = vmatprep.subr.mxu0 0.0
        %660 = vmatpush1.msra.mxu0 0.0
        %661 = vmatprep.subr.mxu0 0.0
        %662 = vmatpush1.msra.mxu0 0.0
        %663 = vmatprep.subr.mxu0 0.0
        %664 = vmatpush1.msra.mxu0 0.0
        %665 = vmatprep.subr.mxu0 0.0
        %666 = vmatpush1.msra.mxu0 0.0
        %667 = vmatprep.subr.mxu0 0.0
        %668 = vmatpush1.msra.mxu0 0.0
        %669 = vmatprep.subr.mxu0 0.0
        %670 = vmatpush1.msra.mxu0 0.0
        %671 = vmatprep.subr.mxu0 0.0
        %672 = vmatpush1.msra.mxu0 0.0
        %673 = vmatprep.subr.mxu0 0.0
        %674 = vmatpush1.msra.mxu0 0.0
        %675 = vmatprep.subr.mxu0 0.0
        %676 = vmatpush1.msra.mxu0 0.0
        %677 = vmatprep.subr.mxu0 0.0
        %678 = vmatpush1.msra.mxu0 0.0
        %679 = vmatprep.subr.mxu0 0.0
        %680 = vmatpush1.msra.mxu0 0.0
        %681 = vmatprep.subr.mxu0 0.0
        %682 = vmatpush1.msra.mxu0 0.0
        %683 = vmatprep.subr.mxu0 0.0
        %684 = vmatpush1.msra.mxu0 0.0
        %685 = vmatprep.subr.mxu0 0.0
        %686 = vmatpush1.msra.mxu0 0.0
        %687 = vmatprep.subr.mxu0 0.0
        %688 = vmatpush1.msra.mxu0 0.0
        %689 = vmatprep.subr.mxu0 0.0
        %690 = vmatpush1.msra.mxu0 0.0
        %691 = vmatprep.subr.mxu0 0.0
        %692 = vmatpush1.msra.mxu0 0.0
        %693 = vmatprep.mubr.f32.mxu0 0.0
        %694 = vmatmul.mubr.f32.gmra.mrb[0].mxu0 %v557
        %v695 = vpop.f32.mrb[0].mxu0
        %v696 = vadd.f32 0.0, %v695
        %v697 = vpop.f32.mrb[0].mxu0
        %698 = vdwg.mxu0
        %699 = vmatprep.subr.mxu0 0.0
        %700 = vmatpush1.msra.mxu0 %v531
        %701 = vmatprep.subr.mxu0 0.0
        %702 = vmatpush1.msra.mxu0 %v532
        %703 = vmatprep.subr.mxu0 0.0
        %704 = vmatpush1.msra.mxu0 %v533
        %705 = vmatprep.subr.mxu0 0.0
        %706 = vmatpush1.msra.mxu0 %v534
        %707 = vmatprep.subr.mxu0 0.0
        %708 = vmatpush1.msra.mxu0 0.0
        %709 = vmatprep.subr.mxu0 0.0
        %710 = vmatpush1.msra.mxu0 0.0
        %711 = vmatprep.subr.mxu0 0.0
        %712 = vmatpush1.msra.mxu0 0.0
        %713 = vmatprep.subr.mxu0 0.0
        %714 = vmatpush1.msra.mxu0 0.0
        %715 = vmatprep.subr.mxu0 0.0
        %716 = vmatpush1.msra.mxu0 0.0
        %717 = vmatprep.subr.mxu0 0.0
        %718 = vmatpush1.msra.mxu0 0.0
        %719 = vmatprep.subr.mxu0 0.0
        %720 = vmatpush1.msra.mxu0 0.0
        %721 = vmatprep.subr.mxu0 0.0
        %722 = vmatpush1.msra.mxu0 0.0
        %723 = vmatprep.subr.mxu0 0.0
        %724 = vmatpush1.msra.mxu0 0.0
        %725 = vmatprep.subr.mxu0 0.0
        %726 = vmatpush1.msra.mxu0 0.0
        %727 = vmatprep.subr.mxu0 0.0
        %728 = vmatpush1.msra.mxu0 0.0
        %729 = vmatprep.subr.mxu0 0.0
        %730 = vmatpush1.msra.mxu0 0.0
        %731 = vmatprep.subr.mxu0 0.0
        %732 = vmatpush1.msra.mxu0 0.0
        %733 = vmatprep.subr.mxu0 0.0
        %734 = vmatpush1.msra.mxu0 0.0
        %735 = vmatprep.subr.mxu0 0.0
        %736 = vmatpush1.msra.mxu0 0.0
        %737 = vmatprep.subr.mxu0 0.0
        %738 = vmatpush1.msra.mxu0 0.0
        %739 = vmatprep.subr.mxu0 0.0
        %740 = vmatpush1.msra.mxu0 0.0
        %741 = vmatprep.subr.mxu0 0.0
        %742 = vmatpush1.msra.mxu0 0.0
        %743 = vmatprep.subr.mxu0 0.0
        %744 = vmatpush1.msra.mxu0 0.0
        %745 = vmatprep.subr.mxu0 0.0
        %746 = vmatpush1.msra.mxu0 0.0
        %747 = vmatprep.subr.mxu0 0.0
        %748 = vmatpush1.msra.mxu0 0.0
        %749 = vmatprep.subr.mxu0 0.0
        %750 = vmatpush1.msra.mxu0 0.0
        %751 = vmatprep.subr.mxu0 0.0
        %752 = vmatpush1.msra.mxu0 0.0
        %753 = vmatprep.subr.mxu0 0.0
        %754 = vmatpush1.msra.mxu0 0.0
        %755 = vmatprep.subr.mxu0 0.0
        %756 = vmatpush1.msra.mxu0 0.0
        %757 = vmatprep.subr.mxu0 0.0
        %758 = vmatpush1.msra.mxu0 0.0
        %759 = vmatprep.subr.mxu0 0.0
        %760 = vmatpush1.msra.mxu0 0.0
        %761 = vmatprep.subr.mxu0 0.0
        %762 = vmatpush1.msra.mxu0 0.0
        %763 = vmatprep.mubr.f32.mxu0 0.0
        %764 = vmatmul.mubr.f32.gmra.mrb[0].mxu0 %v557
        %v765 = vpop.f32.mrb[0].mxu0
        %v766 = vadd.f32 0.0, %v765
        %v767 = vpop.f32.mrb[0].mxu0
        %768 = vdwg.mxu0
        %769 = vmatprep.subr.mxu0 0.0
        %770 = vmatpush1.msra.mxu0 %v535
        %771 = vmatprep.subr.mxu0 0.0
        %772 = vmatpush1.msra.mxu0 %v536
        %773 = vmatprep.subr.mxu0 0.0
        %774 = vmatpush1.msra.mxu0 %v537
        %775 = vmatprep.subr.mxu0 0.0
        %776 = vmatpush1.msra.mxu0 %v538
        %777 = vmatprep.subr.mxu0 0.0
        %778 = vmatpush1.msra.mxu0 0.0
        %779 = vmatprep.subr.mxu0 0.0
        %780 = vmatpush1.msra.mxu0 0.0
        %781 = vmatprep.subr.mxu0 0.0
        %782 = vmatpush1.msra.mxu0 0.0
        %783 = vmatprep.subr.mxu0 0.0
        %784 = vmatpush1.msra.mxu0 0.0
        %785 = vmatprep.subr.mxu0 0.0
        %786 = vmatpush1.msra.mxu0 0.0
        %787 = vmatprep.subr.mxu0 0.0
        %788 = vmatpush1.msra.mxu0 0.0
        %789 = vmatprep.subr.mxu0 0.0
        %790 = vmatpush1.msra.mxu0 0.0
        %791 = vmatprep.subr.mxu0 0.0
        %792 = vmatpush1.msra.mxu0 0.0
        %793 = vmatprep.subr.mxu0 0.0
        %794 = vmatpush1.msra.mxu0 0.0
        %795 = vmatprep.subr.mxu0 0.0
        %796 = vmatpush1.msra.mxu0 0.0
        %797 = vmatprep.subr.mxu0 0.0
        %798 = vmatpush1.msra.mxu0 0.0
        %799 = vmatprep.subr.mxu0 0.0
        %800 = vmatpush1.msra.mxu0 0.0
        %801 = vmatprep.subr.mxu0 0.0
        %802 = vmatpush1.msra.mxu0 0.0
        %803 = vmatprep.subr.mxu0 0.0
        %804 = vmatpush1.msra.mxu0 0.0
        %805 = vmatprep.subr.mxu0 0.0
        %806 = vmatpush1.msra.mxu0 0.0
        %807 = vmatprep.subr.mxu0 0.0
        %808 = vmatpush1.msra.mxu0 0.0
        %809 = vmatprep.subr.mxu0 0.0
        %810 = vmatpush1.msra.mxu0 0.0
        %811 = vmatprep.subr.mxu0 0.0
        %812 = vmatpush1.msra.mxu0 0.0
        %813 = vmatprep.subr.mxu0 0.0
        %814 = vmatpush1.msra.mxu0 0.0
        %815 = vmatprep.subr.mxu0 0.0
        %816 = vmatpush1.msra.mxu0 0.0
        %817 = vmatprep.subr.mxu0 0.0
        %818 = vmatpush1.msra.mxu0 0.0
        %819 = vmatprep.subr.mxu0 0.0
        %820 = vmatpush1.msra.mxu0 0.0
        %821 = vmatprep.subr.mxu0 0.0
        %822 = vmatpush1.msra.mxu0 0.0
        %823 = vmatprep.subr.mxu0 0.0
        %824 = vmatpush1.msra.mxu0 0.0
        %825 = vmatprep.subr.mxu0 0.0
        %826 = vmatpush1.msra.mxu0 0.0
        %827 = vmatprep.subr.mxu0 0.0
        %828 = vmatpush1.msra.mxu0 0.0
        %829 = vmatprep.subr.mxu0 0.0
        %830 = vmatpush1.msra.mxu0 0.0
        %831 = vmatprep.subr.mxu0 0.0
        %832 = vmatpush1.msra.mxu0 0.0
        %833 = vmatprep.mubr.f32.mxu0 0.0
        %834 = vmatmul.mubr.f32.gmra.mrb[0].mxu0 %v557
        %v835 = vpop.f32.mrb[0].mxu0
        %v836 = vadd.f32 0.0, %v835
        %v837 = vpop.f32.mrb[0].mxu0
        %838 = vdwg.mxu0
        %839 = vmatprep.subr.mxu0 0.0
        %840 = vmatpush1.msra.mxu0 %v539
        %841 = vmatprep.subr.mxu0 0.0
        %842 = vmatpush1.msra.mxu0 %v540
        %843 = vmatprep.subr.mxu0 0.0
        %844 = vmatpush1.msra.mxu0 %v541
        %845 = vmatprep.subr.mxu0 0.0
        %846 = vmatpush1.msra.mxu0 %v542
        %847 = vmatprep.subr.mxu0 0.0
        %848 = vmatpush1.msra.mxu0 0.0
        %849 = vmatprep.subr.mxu0 0.0
        %850 = vmatpush1.msra.mxu0 0.0
        %851 = vmatprep.subr.mxu0 0.0
        %852 = vmatpush1.msra.mxu0 0.0
        %853 = vmatprep.subr.mxu0 0.0
        %854 = vmatpush1.msra.mxu0 0.0
        %855 = vmatprep.subr.mxu0 0.0
        %856 = vmatpush1.msra.mxu0 0.0
        %857 = vmatprep.subr.mxu0 0.0
        %858 = vmatpush1.msra.mxu0 0.0
        %859 = vmatprep.subr.mxu0 0.0
        %860 = vmatpush1.msra.mxu0 0.0
        %861 = vmatprep.subr.mxu0 0.0
        %862 = vmatpush1.msra.mxu0 0.0
        %863 = vmatprep.subr.mxu0 0.0
        %864 = vmatpush1.msra.mxu0 0.0
        %865 = vmatprep.subr.mxu0 0.0
        %866 = vmatpush1.msra.mxu0 0.0
        %867 = vmatprep.subr.mxu0 0.0
        %868 = vmatpush1.msra.mxu0 0.0
        %869 = vmatprep.subr.mxu0 0.0
        %870 = vmatpush1.msra.mxu0 0.0
        %871 = vmatprep.subr.mxu0 0.0
        %872 = vmatpush1.msra.mxu0 0.0
        %873 = vmatprep.subr.mxu0 0.0
        %874 = vmatpush1.msra.mxu0 0.0
        %875 = vmatprep.subr.mxu0 0.0
        %876 = vmatpush1.msra.mxu0 0.0
        %877 = vmatprep.subr.mxu0 0.0
        %878 = vmatpush1.msra.mxu0 0.0
        %879 = vmatprep.subr.mxu0 0.0
        %880 = vmatpush1.msra.mxu0 0.0
        %881 = vmatprep.subr.mxu0 0.0
        %882 = vmatpush1.msra.mxu0 0.0
        %883 = vmatprep.subr.mxu0 0.0
        %884 = vmatpush1.msra.mxu0 0.0
        %885 = vmatprep.subr.mxu0 0.0
        %886 = vmatpush1.msra.mxu0 0.0
        %887 = vmatprep.subr.mxu0 0.0
        %888 = vmatpush1.msra.mxu0 0.0
        %889 = vmatprep.subr.mxu0 0.0
        %890 = vmatpush1.msra.mxu0 0.0
        %891 = vmatprep.subr.mxu0 0.0
        %892 = vmatpush1.msra.mxu0 0.0
        %893 = vmatprep.subr.mxu0 0.0
        %894 = vmatpush1.msra.mxu0 0.0
        %895 = vmatprep.subr.mxu0 0.0
        %896 = vmatpush1.msra.mxu0 0.0
        %897 = vmatprep.subr.mxu0 0.0
        %898 = vmatpush1.msra.mxu0 0.0
        %899 = vmatprep.subr.mxu0 0.0
        %900 = vmatpush1.msra.mxu0 0.0
        %901 = vmatprep.subr.mxu0 0.0
        %902 = vmatpush1.msra.mxu0 0.0
        %903 = vmatprep.mubr.f32.mxu0 0.0
        %904 = vmatmul.mubr.f32.gmra.mrb[0].mxu0 %v557
        %v905 = vpop.f32.mrb[0].mxu0
        %v906 = vadd.f32 0.0, %v905
        %v907 = vpop.f32.mrb[0].mxu0
        %908 = vdwg.mxu0
        %909 = vmatprep.subr.mxu0 0.0
        %910 = vmatpush1.msra.mxu0 %v543
        %911 = vmatprep.subr.mxu0 0.0
        %912 = vmatpush1.msra.mxu0 %v544
        %913 = vmatprep.subr.mxu0 0.0
        %914 = vmatpush1.msra.mxu0 %v545
        %915 = vmatprep.subr.mxu0 0.0
        %916 = vmatpush1.msra.mxu0 %v546
        %917 = vmatprep.subr.mxu0 0.0
        %918 = vmatpush1.msra.mxu0 0.0
        %919 = vmatprep.subr.mxu0 0.0
        %920 = vmatpush1.msra.mxu0 0.0
        %921 = vmatprep.subr.mxu0 0.0
        %922 = vmatpush1.msra.mxu0 0.0
        %923 = vmatprep.subr.mxu0 0.0
        %924 = vmatpush1.msra.mxu0 0.0
        %925 = vmatprep.subr.mxu0 0.0
        %926 = vmatpush1.msra.mxu0 0.0
        %927 = vmatprep.subr.mxu0 0.0
        %928 = vmatpush1.msra.mxu0 0.0
        %929 = vmatprep.subr.mxu0 0.0
        %930 = vmatpush1.msra.mxu0 0.0
        %931 = vmatprep.subr.mxu0 0.0
        %932 = vmatpush1.msra.mxu0 0.0
        %933 = vmatprep.subr.mxu0 0.0
        %934 = vmatpush1.msra.mxu0 0.0
        %935 = vmatprep.subr.mxu0 0.0
        %936 = vmatpush1.msra.mxu0 0.0
        %937 = vmatprep.subr.mxu0 0.0
        %938 = vmatpush1.msra.mxu0 0.0
        %939 = vmatprep.subr.mxu0 0.0
        %940 = vmatpush1.msra.mxu0 0.0
        %941 = vmatprep.subr.mxu0 0.0
        %942 = vmatpush1.msra.mxu0 0.0
        %943 = vmatprep.subr.mxu0 0.0
        %944 = vmatpush1.msra.mxu0 0.0
        %945 = vmatprep.subr.mxu0 0.0
        %946 = vmatpush1.msra.mxu0 0.0
        %947 = vmatprep.subr.mxu0 0.0
        %948 = vmatpush1.msra.mxu0 0.0
        %949 = vmatprep.subr.mxu0 0.0
        %950 = vmatpush1.msra.mxu0 0.0
        %951 = vmatprep.subr.mxu0 0.0
        %952 = vmatpush1.msra.mxu0 0.0
        %953 = vmatprep.subr.mxu0 0.0
        %954 = vmatpush1.msra.mxu0 0.0
        %955 = vmatprep.subr.mxu0 0.0
        %956 = vmatpush1.msra.mxu0 0.0
        %957 = vmatprep.subr.mxu0 0.0
        %958 = vmatpush1.msra.mxu0 0.0
        %959 = vmatprep.subr.mxu0 0.0
        %960 = vmatpush1.msra.mxu0 0.0
        %961 = vmatprep.subr.mxu0 0.0
        %962 = vmatpush1.msra.mxu0 0.0
        %963 = vmatprep.subr.mxu0 0.0
        %964 = vmatpush1.msra.mxu0 0.0
        %965 = vmatprep.subr.mxu0 0.0
        %966 = vmatpush1.msra.mxu0 0.0
        %967 = vmatprep.subr.mxu0 0.0
        %968 = vmatpush1.msra.mxu0 0.0
        %969 = vmatprep.subr.mxu0 0.0
        %970 = vmatpush1.msra.mxu0 0.0
        %971 = vmatprep.subr.mxu0 0.0
        %972 = vmatpush1.msra.mxu0 0.0
        %973 = vmatprep.mubr.f32.mxu0 0.0
        %974 = vmatmul.mubr.f32.gmra.mrb[0].mxu0 %v557
        %v975 = vpop.f32.mrb[0].mxu0
        %v976 = vadd.f32 0.0, %v975
        %v977 = vpop.f32.mrb[0].mxu0
        %978 = vdwg.mxu0
        %979 = vmatprep.subr.mxu0 0.0
        %980 = vmatpush1.msra.mxu0 %v547
        %981 = vmatprep.subr.mxu0 0.0
        %982 = vmatpush1.msra.mxu0 %v548
        %983 = vmatprep.subr.mxu0 0.0
        %984 = vmatpush1.msra.mxu0 %v549
        %985 = vmatprep.subr.mxu0 0.0
        %986 = vmatpush1.msra.mxu0 %v550
        %987 = vmatprep.subr.mxu0 0.0
        %988 = vmatpush1.msra.mxu0 0.0
        %989 = vmatprep.subr.mxu0 0.0
        %990 = vmatpush1.msra.mxu0 0.0
        %991 = vmatprep.subr.mxu0 0.0
        %992 = vmatpush1.msra.mxu0 0.0
        %993 = vmatprep.subr.mxu0 0.0
        %994 = vmatpush1.msra.mxu0 0.0
        %995 = vmatprep.subr.mxu0 0.0
        %996 = vmatpush1.msra.mxu0 0.0
        %997 = vmatprep.subr.mxu0 0.0
        %998 = vmatpush1.msra.mxu0 0.0
        %999 = vmatprep.subr.mxu0 0.0
        %1000 = vmatpush1.msra.mxu0 0.0
        %1001 = vmatprep.subr.mxu0 0.0
        %1002 = vmatpush1.msra.mxu0 0.0
        %1003 = vmatprep.subr.mxu0 0.0
        %1004 = vmatpush1.msra.mxu0 0.0
        %1005 = vmatprep.subr.mxu0 0.0
        %1006 = vmatpush1.msra.mxu0 0.0
        %1007 = vmatprep.subr.mxu0 0.0
        %1008 = vmatpush1.msra.mxu0 0.0
        %1009 = vmatprep.subr.mxu0 0.0
        %1010 = vmatpush1.msra.mxu0 0.0
        %1011 = vmatprep.subr.mxu0 0.0
        %1012 = vmatpush1.msra.mxu0 0.0
        %1013 = vmatprep.subr.mxu0 0.0
        %1014 = vmatpush1.msra.mxu0 0.0
        %1015 = vmatprep.subr.mxu0 0.0
        %1016 = vmatpush1.msra.mxu0 0.0
        %1017 = vmatprep.subr.mxu0 0.0
        %1018 = vmatpush1.msra.mxu0 0.0
        %1019 = vmatprep.subr.mxu0 0.0
        %1020 = vmatpush1.msra.mxu0 0.0
        %1021 = vmatprep.subr.mxu0 0.0
        %1022 = vmatpush1.msra.mxu0 0.0
        %1023 = vmatprep.subr.mxu0 0.0
        %1024 = vmatpush1.msra.mxu0 0.0
        %1025 = vmatprep.subr.mxu0 0.0
        %1026 = vmatpush1.msra.mxu0 0.0
        %1027 = vmatprep.subr.mxu0 0.0
        %1028 = vmatpush1.msra.mxu0 0.0
        %1029 = vmatprep.subr.mxu0 0.0
        %1030 = vmatpush1.msra.mxu0 0.0
        %1031 = vmatprep.subr.mxu0 0.0
        %1032 = vmatpush1.msra.mxu0 0.0
        %1033 = vmatprep.subr.mxu0 0.0
        %1034 = vmatpush1.msra.mxu0 0.0
        %1035 = vmatprep.subr.mxu0 0.0
        %1036 = vmatpush1.msra.mxu0 0.0
        %1037 = vmatprep.subr.mxu0 0.0
        %1038 = vmatpush1.msra.mxu0 0.0
        %1039 = vmatprep.subr.mxu0 0.0
        %1040 = vmatpush1.msra.mxu0 0.0
        %1041 = vmatprep.subr.mxu0 0.0
        %1042 = vmatpush1.msra.mxu0 0.0
        %1043 = vmatprep.mubr.f32.mxu0 0.0
        %1044 = vmatmul.mubr.f32.gmra.mrb[0].mxu0 %v557
        %v1045 = vpop.f32.mrb[0].mxu0
        %v1046 = vadd.f32 0.0, %v1045
        %v1047 = vpop.f32.mrb[0].mxu0
        %1048 = vdwg.mxu0
        %1049 = vmatprep.subr.mxu0 0.0
        %1050 = vmatpush1.msra.mxu0 %v551
        %1051 = vmatprep.subr.mxu0 0.0
        %1052 = vmatpush1.msra.mxu0 %v552
        %1053 = vmatprep.subr.mxu0 0.0
        %1054 = vmatpush1.msra.mxu0 %v553
        %1055 = vmatprep.subr.mxu0 0.0
        %1056 = vmatpush1.msra.mxu0 %v554
        %1057 = vmatprep.subr.mxu0 0.0
        %1058 = vmatpush1.msra.mxu0 0.0
        %1059 = vmatprep.subr.mxu0 0.0
        %1060 = vmatpush1.msra.mxu0 0.0
        %1061 = vmatprep.subr.mxu0 0.0
        %1062 = vmatpush1.msra.mxu0 0.0
        %1063 = vmatprep.subr.mxu0 0.0
        %1064 = vmatpush1.msra.mxu0 0.0
        %1065 = vmatprep.subr.mxu0 0.0
        %1066 = vmatpush1.msra.mxu0 0.0
        %1067 = vmatprep.subr.mxu0 0.0
        %1068 = vmatpush1.msra.mxu0 0.0
        %1069 = vmatprep.subr.mxu0 0.0
        %1070 = vmatpush1.msra.mxu0 0.0
        %1071 = vmatprep.subr.mxu0 0.0
        %1072 = vmatpush1.msra.mxu0 0.0
        %1073 = vmatprep.subr.mxu0 0.0
        %1074 = vmatpush1.msra.mxu0 0.0
        %1075 = vmatprep.subr.mxu0 0.0
        %1076 = vmatpush1.msra.mxu0 0.0
        %1077 = vmatprep.subr.mxu0 0.0
        %1078 = vmatpush1.msra.mxu0 0.0
        %1079 = vmatprep.subr.mxu0 0.0
        %1080 = vmatpush1.msra.mxu0 0.0
        %1081 = vmatprep.subr.mxu0 0.0
        %1082 = vmatpush1.msra.mxu0 0.0
        %1083 = vmatprep.subr.mxu0 0.0
        %1084 = vmatpush1.msra.mxu0 0.0
        %1085 = vmatprep.subr.mxu0 0.0
        %1086 = vmatpush1.msra.mxu0 0.0
        %1087 = vmatprep.subr.mxu0 0.0
        %1088 = vmatpush1.msra.mxu0 0.0
        %1089 = vmatprep.subr.mxu0 0.0
        %1090 = vmatpush1.msra.mxu0 0.0
        %1091 = vmatprep.subr.mxu0 0.0
        %1092 = vmatpush1.msra.mxu0 0.0
        %1093 = vmatprep.subr.mxu0 0.0
        %1094 = vmatpush1.msra.mxu0 0.0
        %1095 = vmatprep.subr.mxu0 0.0
        %1096 = vmatpush1.msra.mxu0 0.0
        %1097 = vmatprep.subr.mxu0 0.0
        %1098 = vmatpush1.msra.mxu0 0.0
        %1099 = vmatprep.subr.mxu0 0.0
        %1100 = vmatpush1.msra.mxu0 0.0
        %1101 = vmatprep.subr.mxu0 0.0
        %1102 = vmatpush1.msra.mxu0 0.0
        %1103 = vmatprep.subr.mxu0 0.0
        %1104 = vmatpush1.msra.mxu0 0.0
        %1105 = vmatprep.subr.mxu0 0.0
        %1106 = vmatpush1.msra.mxu0 0.0
        %1107 = vmatprep.subr.mxu0 0.0
        %1108 = vmatpush1.msra.mxu0 0.0
        %1109 = vmatprep.subr.mxu0 0.0
        %1110 = vmatpush1.msra.mxu0 0.0
        %1111 = vmatprep.subr.mxu0 0.0
        %1112 = vmatpush1.msra.mxu0 0.0
        %1113 = vmatprep.mubr.f32.mxu0 0.0
        %1114 = vmatmul.mubr.f32.gmra.mrb[0].mxu0 %v557
        %v1115 = vpop.f32.mrb[0].mxu0
        %v1116 = vadd.f32 0.0, %v1115
        %v1117 = vpop.f32.mrb[0].mxu0
        %1118 = vdwg.mxu0
        %v1119 = vld [vmem:[#allocation5] sm:$0xff]
        %v1120 = vld [vmem:[#allocation5 + $0x8] sm:$0xff]
        %v1121 = vld [vmem:[#allocation5 + $0x10] sm:$0xff]
        %v1122 = vld [vmem:[#allocation5 + $0x18] sm:$0xff]
        %v1123 = vld [vmem:[#allocation5 + $0x20] sm:$0xff]
        %v1124 = vld [vmem:[#allocation5 + $0x28] sm:$0xff]
        %v1125 = vld [vmem:[#allocation5 + $0x30] sm:$0xff]
        %v1126 = vld [vmem:[#allocation5 + $0x38] sm:$0xff]
        %v1127 = vld [vmem:[#allocation5 + $0x40] sm:$0xff]
        %v1128 = vld [vmem:[#allocation5 + $0x48] sm:$0xff]
        %v1129 = vld [vmem:[#allocation5 + $0x50] sm:$0xff]
        %v1130 = vld [vmem:[#allocation5 + $0x58] sm:$0xff]
        %v1131 = vld [vmem:[#allocation5 + $0x60] sm:$0xff]
        %v1132 = vld [vmem:[#allocation5 + $0x68] sm:$0xff]
        %v1133 = vld [vmem:[#allocation5 + $0x70] sm:$0xff]
        %v1134 = vld [vmem:[#allocation5 + $0x78] sm:$0xff]
        %v1135 = vld [vmem:[#allocation5 + $0x80] sm:$0xff]
        %v1136 = vld [vmem:[#allocation5 + $0x88] sm:$0xff]
        %v1137 = vld [vmem:[#allocation5 + $0x90] sm:$0xff]
        %v1138 = vld [vmem:[#allocation5 + $0x98] sm:$0xff]
        %v1139 = vld [vmem:[#allocation5 + $0xa0] sm:$0xff]
        %v1140 = vld [vmem:[#allocation5 + $0xa8] sm:$0xff]
        %v1141 = vld [vmem:[#allocation5 + $0xb0] sm:$0xff]
        %v1142 = vld [vmem:[#allocation5 + $0xb8] sm:$0xff]
        %v1143 = vld [vmem:[#allocation5 + $0xc0] sm:$0xff]
        %v1144 = vld [vmem:[#allocation5 + $0xc8] sm:$0xff]
        %v1145 = vld [vmem:[#allocation5 + $0xd0] sm:$0xff]
        %v1146 = vld [vmem:[#allocation5 + $0xd8] sm:$0xff]
        %v1147 = vld [vmem:[#allocation5 + $0xe0] sm:$0xff]
        %v1148 = vld [vmem:[#allocation5 + $0xe8] sm:$0xff]
        %v1149 = vld [vmem:[#allocation5 + $0xf0] sm:$0xff]
        %v1150 = vld [vmem:[#allocation5 + $0xf8] sm:$0xff]
        %1151 = vmatprep.subr.mxu0 0.0
        %1152 = vmatpush1.msra.mxu0 %v1119
        %1153 = vmatprep.subr.mxu0 0.0
        %1154 = vmatpush1.msra.mxu0 %v1120
        %1155 = vmatprep.subr.mxu0 0.0
        %1156 = vmatpush1.msra.mxu0 %v1121
        %1157 = vmatprep.subr.mxu0 0.0
        %1158 = vmatpush1.msra.mxu0 %v1122
        %1159 = vmatprep.subr.mxu0 0.0
        %1160 = vmatpush1.msra.mxu0 0.0
        %1161 = vmatprep.subr.mxu0 0.0
        %1162 = vmatpush1.msra.mxu0 0.0
        %1163 = vmatprep.subr.mxu0 0.0
        %1164 = vmatpush1.msra.mxu0 0.0
        %1165 = vmatprep.subr.mxu0 0.0
        %1166 = vmatpush1.msra.mxu0 0.0
        %1167 = vmatprep.subr.mxu0 0.0
        %1168 = vmatpush1.msra.mxu0 0.0
        %1169 = vmatprep.subr.mxu0 0.0
        %1170 = vmatpush1.msra.mxu0 0.0
        %1171 = vmatprep.subr.mxu0 0.0
        %1172 = vmatpush1.msra.mxu0 0.0
        %1173 = vmatprep.subr.mxu0 0.0
        %1174 = vmatpush1.msra.mxu0 0.0
        %1175 = vmatprep.subr.mxu0 0.0
        %1176 = vmatpush1.msra.mxu0 0.0
        %1177 = vmatprep.subr.mxu0 0.0
        %1178 = vmatpush1.msra.mxu0 0.0
        %1179 = vmatprep.subr.mxu0 0.0
        %1180 = vmatpush1.msra.mxu0 0.0
        %1181 = vmatprep.subr.mxu0 0.0
        %1182 = vmatpush1.msra.mxu0 0.0
        %1183 = vmatprep.subr.mxu0 0.0
        %1184 = vmatpush1.msra.mxu0 0.0
        %1185 = vmatprep.subr.mxu0 0.0
        %1186 = vmatpush1.msra.mxu0 0.0
        %1187 = vmatprep.subr.mxu0 0.0
        %1188 = vmatpush1.msra.mxu0 0.0
        %1189 = vmatprep.subr.mxu0 0.0
        %1190 = vmatpush1.msra.mxu0 0.0
        %1191 = vmatprep.subr.mxu0 0.0
        %1192 = vmatpush1.msra.mxu0 0.0
        %1193 = vmatprep.subr.mxu0 0.0
        %1194 = vmatpush1.msra.mxu0 0.0
        %1195 = vmatprep.subr.mxu0 0.0
        %1196 = vmatpush1.msra.mxu0 0.0
        %1197 = vmatprep.subr.mxu0 0.0
        %1198 = vmatpush1.msra.mxu0 0.0
        %1199 = vmatprep.subr.mxu0 0.0
        %1200 = vmatpush1.msra.mxu0 0.0
        %1201 = vmatprep.subr.mxu0 0.0
        %1202 = vmatpush1.msra.mxu0 0.0
        %1203 = vmatprep.subr.mxu0 0.0
        %1204 = vmatpush1.msra.mxu0 0.0
        %1205 = vmatprep.subr.mxu0 0.0
        %1206 = vmatpush1.msra.mxu0 0.0
        %1207 = vmatprep.subr.mxu0 0.0
        %1208 = vmatpush1.msra.mxu0 0.0
        %1209 = vmatprep.subr.mxu0 0.0
        %1210 = vmatpush1.msra.mxu0 0.0
        %1211 = vmatprep.subr.mxu0 0.0
        %1212 = vmatpush1.msra.mxu0 0.0
        %1213 = vmatprep.subr.mxu0 0.0
        %1214 = vmatpush1.msra.mxu0 0.0
        %1215 = vmatprep.mubr.f32.mxu0 0.0
        %1216 = vmatmul.mubr.f32.gmra.mrb[0].mxu0 %v557
        %v1217 = vpop.f32.mrb[0].mxu0
        %v1218 = vadd.f32 0.0, %v1217
        %v1219 = vpop.f32.mrb[0].mxu0
        %1220 = vdwg.mxu0
        %1221 = vmatprep.subr.mxu0 0.0
        %1222 = vmatpush1.msra.mxu0 %v1123
        %1223 = vmatprep.subr.mxu0 0.0
        %1224 = vmatpush1.msra.mxu0 %v1124
        %1225 = vmatprep.subr.mxu0 0.0
        %1226 = vmatpush1.msra.mxu0 %v1125
        %1227 = vmatprep.subr.mxu0 0.0
        %1228 = vmatpush1.msra.mxu0 %v1126
        %1229 = vmatprep.subr.mxu0 0.0
        %1230 = vmatpush1.msra.mxu0 0.0
        %1231 = vmatprep.subr.mxu0 0.0
        %1232 = vmatpush1.msra.mxu0 0.0
        %1233 = vmatprep.subr.mxu0 0.0
        %1234 = vmatpush1.msra.mxu0 0.0
        %1235 = vmatprep.subr.mxu0 0.0
        %1236 = vmatpush1.msra.mxu0 0.0
        %1237 = vmatprep.subr.mxu0 0.0
        %1238 = vmatpush1.msra.mxu0 0.0
        %1239 = vmatprep.subr.mxu0 0.0
        %1240 = vmatpush1.msra.mxu0 0.0
        %1241 = vmatprep.subr.mxu0 0.0
        %1242 = vmatpush1.msra.mxu0 0.0
        %1243 = vmatprep.subr.mxu0 0.0
        %1244 = vmatpush1.msra.mxu0 0.0
        %1245 = vmatprep.subr.mxu0 0.0
        %1246 = vmatpush1.msra.mxu0 0.0
        %1247 = vmatprep.subr.mxu0 0.0
        %1248 = vmatpush1.msra.mxu0 0.0
        %1249 = vmatprep.subr.mxu0 0.0
        %1250 = vmatpush1.msra.mxu0 0.0
        %1251 = vmatprep.subr.mxu0 0.0
        %1252 = vmatpush1.msra.mxu0 0.0
        %1253 = vmatprep.subr.mxu0 0.0
        %1254 = vmatpush1.msra.mxu0 0.0
        %1255 = vmatprep.subr.mxu0 0.0
        %1256 = vmatpush1.msra.mxu0 0.0
        %1257 = vmatprep.subr.mxu0 0.0
        %1258 = vmatpush1.msra.mxu0 0.0
        %1259 = vmatprep.subr.mxu0 0.0
        %1260 = vmatpush1.msra.mxu0 0.0
        %1261 = vmatprep.subr.mxu0 0.0
        %1262 = vmatpush1.msra.mxu0 0.0
        %1263 = vmatprep.subr.mxu0 0.0
        %1264 = vmatpush1.msra.mxu0 0.0
        %1265 = vmatprep.subr.mxu0 0.0
        %1266 = vmatpush1.msra.mxu0 0.0
        %1267 = vmatprep.subr.mxu0 0.0
        %1268 = vmatpush1.msra.mxu0 0.0
        %1269 = vmatprep.subr.mxu0 0.0
        %1270 = vmatpush1.msra.mxu0 0.0
        %1271 = vmatprep.subr.mxu0 0.0
        %1272 = vmatpush1.msra.mxu0 0.0
        %1273 = vmatprep.subr.mxu0 0.0
        %1274 = vmatpush1.msra.mxu0 0.0
        %1275 = vmatprep.subr.mxu0 0.0
        %1276 = vmatpush1.msra.mxu0 0.0
        %1277 = vmatprep.subr.mxu0 0.0
        %1278 = vmatpush1.msra.mxu0 0.0
        %1279 = vmatprep.subr.mxu0 0.0
        %1280 = vmatpush1.msra.mxu0 0.0
        %1281 = vmatprep.subr.mxu0 0.0
        %1282 = vmatpush1.msra.mxu0 0.0
        %1283 = vmatprep.subr.mxu0 0.0
        %1284 = vmatpush1.msra.mxu0 0.0
        %1285 = vmatprep.mubr.f32.mxu0 0.0
        %1286 = vmatmul.mubr.f32.gmra.mrb[0].mxu0 %v557
        %v1287 = vpop.f32.mrb[0].mxu0
        %v1288 = vadd.f32 0.0, %v1287
        %v1289 = vpop.f32.mrb[0].mxu0
        %1290 = vdwg.mxu0
        %1291 = vmatprep.subr.mxu0 0.0
        %1292 = vmatpush1.msra.mxu0 %v1127
        %1293 = vmatprep.subr.mxu0 0.0
        %1294 = vmatpush1.msra.mxu0 %v1128
        %1295 = vmatprep.subr.mxu0 0.0
        %1296 = vmatpush1.msra.mxu0 %v1129
        %1297 = vmatprep.subr.mxu0 0.0
        %1298 = vmatpush1.msra.mxu0 %v1130
        %1299 = vmatprep.subr.mxu0 0.0
        %1300 = vmatpush1.msra.mxu0 0.0
        %1301 = vmatprep.subr.mxu0 0.0
        %1302 = vmatpush1.msra.mxu0 0.0
        %1303 = vmatprep.subr.mxu0 0.0
        %1304 = vmatpush1.msra.mxu0 0.0
        %1305 = vmatprep.subr.mxu0 0.0
        %1306 = vmatpush1.msra.mxu0 0.0
        %1307 = vmatprep.subr.mxu0 0.0
        %1308 = vmatpush1.msra.mxu0 0.0
        %1309 = vmatprep.subr.mxu0 0.0
        %1310 = vmatpush1.msra.mxu0 0.0
        %1311 = vmatprep.subr.mxu0 0.0
        %1312 = vmatpush1.msra.mxu0 0.0
        %1313 = vmatprep.subr.mxu0 0.0
        %1314 = vmatpush1.msra.mxu0 0.0
        %1315 = vmatprep.subr.mxu0 0.0
        %1316 = vmatpush1.msra.mxu0 0.0
        %1317 = vmatprep.subr.mxu0 0.0
        %1318 = vmatpush1.msra.mxu0 0.0
        %1319 = vmatprep.subr.mxu0 0.0
        %1320 = vmatpush1.msra.mxu0 0.0
        %1321 = vmatprep.subr.mxu0 0.0
        %1322 = vmatpush1.msra.mxu0 0.0
        %1323 = vmatprep.subr.mxu0 0.0
        %1324 = vmatpush1.msra.mxu0 0.0
        %1325 = vmatprep.subr.mxu0 0.0
        %1326 = vmatpush1.msra.mxu0 0.0
        %1327 = vmatprep.subr.mxu0 0.0
        %1328 = vmatpush1.msra.mxu0 0.0
        %1329 = vmatprep.subr.mxu0 0.0
        %1330 = vmatpush1.msra.mxu0 0.0
        %1331 = vmatprep.subr.mxu0 0.0
        %1332 = vmatpush1.msra.mxu0 0.0
        %1333 = vmatprep.subr.mxu0 0.0
        %1334 = vmatpush1.msra.mxu0 0.0
        %1335 = vmatprep.subr.mxu0 0.0
        %1336 = vmatpush1.msra.mxu0 0.0
        %1337 = vmatprep.subr.mxu0 0.0
        %1338 = vmatpush1.msra.mxu0 0.0
        %1339 = vmatprep.subr.mxu0 0.0
        %1340 = vmatpush1.msra.mxu0 0.0
        %1341 = vmatprep.subr.mxu0 0.0
        %1342 = vmatpush1.msra.mxu0 0.0
        %1343 = vmatprep.subr.mxu0 0.0
        %1344 = vmatpush1.msra.mxu0 0.0
        %1345 = vmatprep.subr.mxu0 0.0
        %1346 = vmatpush1.msra.mxu0 0.0
        %1347 = vmatprep.subr.mxu0 0.0
        %1348 = vmatpush1.msra.mxu0 0.0
        %1349 = vmatprep.subr.mxu0 0.0
        %1350 = vmatpush1.msra.mxu0 0.0
        %1351 = vmatprep.subr.mxu0 0.0
        %1352 = vmatpush1.msra.mxu0 0.0
        %1353 = vmatprep.subr.mxu0 0.0
        %1354 = vmatpush1.msra.mxu0 0.0
        %1355 = vmatprep.mubr.f32.mxu0 0.0
        %1356 = vmatmul.mubr.f32.gmra.mrb[0].mxu0 %v557
        %v1357 = vpop.f32.mrb[0].mxu0
        %v1358 = vadd.f32 0.0, %v1357
        %v1359 = vpop.f32.mrb[0].mxu0
        %1360 = vdwg.mxu0
        %1361 = vmatprep.subr.mxu0 0.0
        %1362 = vmatpush1.msra.mxu0 %v1131
        %1363 = vmatprep.subr.mxu0 0.0
        %1364 = vmatpush1.msra.mxu0 %v1132
        %1365 = vmatprep.subr.mxu0 0.0
        %1366 = vmatpush1.msra.mxu0 %v1133
        %1367 = vmatprep.subr.mxu0 0.0
        %1368 = vmatpush1.msra.mxu0 %v1134
        %1369 = vmatprep.subr.mxu0 0.0
        %1370 = vmatpush1.msra.mxu0 0.0
        %1371 = vmatprep.subr.mxu0 0.0
        %1372 = vmatpush1.msra.mxu0 0.0
        %1373 = vmatprep.subr.mxu0 0.0
        %1374 = vmatpush1.msra.mxu0 0.0
        %1375 = vmatprep.subr.mxu0 0.0
        %1376 = vmatpush1.msra.mxu0 0.0
        %1377 = vmatprep.subr.mxu0 0.0
        %1378 = vmatpush1.msra.mxu0 0.0
        %1379 = vmatprep.subr.mxu0 0.0
        %1380 = vmatpush1.msra.mxu0 0.0
        %1381 = vmatprep.subr.mxu0 0.0
        %1382 = vmatpush1.msra.mxu0 0.0
        %1383 = vmatprep.subr.mxu0 0.0
        %1384 = vmatpush1.msra.mxu0 0.0
        %1385 = vmatprep.subr.mxu0 0.0
        %1386 = vmatpush1.msra.mxu0 0.0
        %1387 = vmatprep.subr.mxu0 0.0
        %1388 = vmatpush1.msra.mxu0 0.0
        %1389 = vmatprep.subr.mxu0 0.0
        %1390 = vmatpush1.msra.mxu0 0.0
        %1391 = vmatprep.subr.mxu0 0.0
        %1392 = vmatpush1.msra.mxu0 0.0
        %1393 = vmatprep.subr.mxu0 0.0
        %1394 = vmatpush1.msra.mxu0 0.0
        %1395 = vmatprep.subr.mxu0 0.0
        %1396 = vmatpush1.msra.mxu0 0.0
        %1397 = vmatprep.subr.mxu0 0.0
        %1398 = vmatpush1.msra.mxu0 0.0
        %1399 = vmatprep.subr.mxu0 0.0
        %1400 = vmatpush1.msra.mxu0 0.0
        %1401 = vmatprep.subr.mxu0 0.0
        %1402 = vmatpush1.msra.mxu0 0.0
        %1403 = vmatprep.subr.mxu0 0.0
        %1404 = vmatpush1.msra.mxu0 0.0
        %1405 = vmatprep.subr.mxu0 0.0
        %1406 = vmatpush1.msra.mxu0 0.0
        %1407 = vmatprep.subr.mxu0 0.0
        %1408 = vmatpush1.msra.mxu0 0.0
        %1409 = vmatprep.subr.mxu0 0.0
        %1410 = vmatpush1.msra.mxu0 0.0
        %1411 = vmatprep.subr.mxu0 0.0
        %1412 = vmatpush1.msra.mxu0 0.0
        %1413 = vmatprep.subr.mxu0 0.0
        %1414 = vmatpush1.msra.mxu0 0.0
        %1415 = vmatprep.subr.mxu0 0.0
        %1416 = vmatpush1.msra.mxu0 0.0
        %1417 = vmatprep.subr.mxu0 0.0
        %1418 = vmatpush1.msra.mxu0 0.0
        %1419 = vmatprep.subr.mxu0 0.0
        %1420 = vmatpush1.msra.mxu0 0.0
        %1421 = vmatprep.subr.mxu0 0.0
        %1422 = vmatpush1.msra.mxu0 0.0
        %1423 = vmatprep.subr.mxu0 0.0
        %1424 = vmatpush1.msra.mxu0 0.0
        %1425 = vmatprep.mubr.f32.mxu0 0.0
        %1426 = vmatmul.mubr.f32.gmra.mrb[0].mxu0 %v557
        %v1427 = vpop.f32.mrb[0].mxu0
        %v1428 = vadd.f32 0.0, %v1427
        %v1429 = vpop.f32.mrb[0].mxu0
        %1430 = vdwg.mxu0
        %1431 = vmatprep.subr.mxu0 0.0
        %1432 = vmatpush1.msra.mxu0 %v1135
        %1433 = vmatprep.subr.mxu0 0.0
        %1434 = vmatpush1.msra.mxu0 %v1136
        %1435 = vmatprep.subr.mxu0 0.0
        %1436 = vmatpush1.msra.mxu0 %v1137
        %1437 = vmatprep.subr.mxu0 0.0
        %1438 = vmatpush1.msra.mxu0 %v1138
        %1439 = vmatprep.subr.mxu0 0.0
        %1440 = vmatpush1.msra.mxu0 0.0
        %1441 = vmatprep.subr.mxu0 0.0
        %1442 = vmatpush1.msra.mxu0 0.0
        %1443 = vmatprep.subr.mxu0 0.0
        %1444 = vmatpush1.msra.mxu0 0.0
        %1445 = vmatprep.subr.mxu0 0.0
        %1446 = vmatpush1.msra.mxu0 0.0
        %1447 = vmatprep.subr.mxu0 0.0
        %1448 = vmatpush1.msra.mxu0 0.0
        %1449 = vmatprep.subr.mxu0 0.0
        %1450 = vmatpush1.msra.mxu0 0.0
        %1451 = vmatprep.subr.mxu0 0.0
        %1452 = vmatpush1.msra.mxu0 0.0
        %1453 = vmatprep.subr.mxu0 0.0
        %1454 = vmatpush1.msra.mxu0 0.0
        %1455 = vmatprep.subr.mxu0 0.0
        %1456 = vmatpush1.msra.mxu0 0.0
        %1457 = vmatprep.subr.mxu0 0.0
        %1458 = vmatpush1.msra.mxu0 0.0
        %1459 = vmatprep.subr.mxu0 0.0
        %1460 = vmatpush1.msra.mxu0 0.0
        %1461 = vmatprep.subr.mxu0 0.0
        %1462 = vmatpush1.msra.mxu0 0.0
        %1463 = vmatprep.subr.mxu0 0.0
        %1464 = vmatpush1.msra.mxu0 0.0
        %1465 = vmatprep.subr.mxu0 0.0
        %1466 = vmatpush1.msra.mxu0 0.0
        %1467 = vmatprep.subr.mxu0 0.0
        %1468 = vmatpush1.msra.mxu0 0.0
        %1469 = vmatprep.subr.mxu0 0.0
        %1470 = vmatpush1.msra.mxu0 0.0
        %1471 = vmatprep.subr.mxu0 0.0
        %1472 = vmatpush1.msra.mxu0 0.0
        %1473 = vmatprep.subr.mxu0 0.0
        %1474 = vmatpush1.msra.mxu0 0.0
        %1475 = vmatprep.subr.mxu0 0.0
        %1476 = vmatpush1.msra.mxu0 0.0
        %1477 = vmatprep.subr.mxu0 0.0
        %1478 = vmatpush1.msra.mxu0 0.0
        %1479 = vmatprep.subr.mxu0 0.0
        %1480 = vmatpush1.msra.mxu0 0.0
        %1481 = vmatprep.subr.mxu0 0.0
        %1482 = vmatpush1.msra.mxu0 0.0
        %1483 = vmatprep.subr.mxu0 0.0
        %1484 = vmatpush1.msra.mxu0 0.0
        %1485 = vmatprep.subr.mxu0 0.0
        %1486 = vmatpush1.msra.mxu0 0.0
        %1487 = vmatprep.subr.mxu0 0.0
        %1488 = vmatpush1.msra.mxu0 0.0
        %1489 = vmatprep.subr.mxu0 0.0
        %1490 = vmatpush1.msra.mxu0 0.0
        %1491 = vmatprep.subr.mxu0 0.0
        %1492 = vmatpush1.msra.mxu0 0.0
        %1493 = vmatprep.subr.mxu0 0.0
        %1494 = vmatpush1.msra.mxu0 0.0
        %1495 = vmatprep.mubr.f32.mxu0 0.0
        %1496 = vmatmul.mubr.f32.gmra.mrb[0].mxu0 %v557
        %v1497 = vpop.f32.mrb[0].mxu0
        %v1498 = vadd.f32 0.0, %v1497
        %v1499 = vpop.f32.mrb[0].mxu0
        %1500 = vdwg.mxu0
        %1501 = vmatprep.subr.mxu0 0.0
        %1502 = vmatpush1.msra.mxu0 %v1139
        %1503 = vmatprep.subr.mxu0 0.0
        %1504 = vmatpush1.msra.mxu0 %v1140
        %1505 = vmatprep.subr.mxu0 0.0
        %1506 = vmatpush1.msra.mxu0 %v1141
        %1507 = vmatprep.subr.mxu0 0.0
        %1508 = vmatpush1.msra.mxu0 %v1142
        %1509 = vmatprep.subr.mxu0 0.0
        %1510 = vmatpush1.msra.mxu0 0.0
        %1511 = vmatprep.subr.mxu0 0.0
        %1512 = vmatpush1.msra.mxu0 0.0
        %1513 = vmatprep.subr.mxu0 0.0
        %1514 = vmatpush1.msra.mxu0 0.0
        %1515 = vmatprep.subr.mxu0 0.0
        %1516 = vmatpush1.msra.mxu0 0.0
        %1517 = vmatprep.subr.mxu0 0.0
        %1518 = vmatpush1.msra.mxu0 0.0
        %1519 = vmatprep.subr.mxu0 0.0
        %1520 = vmatpush1.msra.mxu0 0.0
        %1521 = vmatprep.subr.mxu0 0.0
        %1522 = vmatpush1.msra.mxu0 0.0
        %1523 = vmatprep.subr.mxu0 0.0
        %1524 = vmatpush1.msra.mxu0 0.0
        %1525 = vmatprep.subr.mxu0 0.0
        %1526 = vmatpush1.msra.mxu0 0.0
        %1527 = vmatprep.subr.mxu0 0.0
        %1528 = vmatpush1.msra.mxu0 0.0
        %1529 = vmatprep.subr.mxu0 0.0
        %1530 = vmatpush1.msra.mxu0 0.0
        %1531 = vmatprep.subr.mxu0 0.0
        %1532 = vmatpush1.msra.mxu0 0.0
        %1533 = vmatprep.subr.mxu0 0.0
        %1534 = vmatpush1.msra.mxu0 0.0
        %1535 = vmatprep.subr.mxu0 0.0
        %1536 = vmatpush1.msra.mxu0 0.0
        %1537 = vmatprep.subr.mxu0 0.0
        %1538 = vmatpush1.msra.mxu0 0.0
        %1539 = vmatprep.subr.mxu0 0.0
        %1540 = vmatpush1.msra.mxu0 0.0
        %1541 = vmatprep.subr.mxu0 0.0
        %1542 = vmatpush1.msra.mxu0 0.0
        %1543 = vmatprep.subr.mxu0 0.0
        %1544 = vmatpush1.msra.mxu0 0.0
        %1545 = vmatprep.subr.mxu0 0.0
        %1546 = vmatpush1.msra.mxu0 0.0
        %1547 = vmatprep.subr.mxu0 0.0
        %1548 = vmatpush1.msra.mxu0 0.0
        %1549 = vmatprep.subr.mxu0 0.0
        %1550 = vmatpush1.msra.mxu0 0.0
        %1551 = vmatprep.subr.mxu0 0.0
        %1552 = vmatpush1.msra.mxu0 0.0
        %1553 = vmatprep.subr.mxu0 0.0
        %1554 = vmatpush1.msra.mxu0 0.0
        %1555 = vmatprep.subr.mxu0 0.0
        %1556 = vmatpush1.msra.mxu0 0.0
        %1557 = vmatprep.subr.mxu0 0.0
        %1558 = vmatpush1.msra.mxu0 0.0
        %1559 = vmatprep.subr.mxu0 0.0
        %1560 = vmatpush1.msra.mxu0 0.0
        %1561 = vmatprep.subr.mxu0 0.0
        %1562 = vmatpush1.msra.mxu0 0.0
        %1563 = vmatprep.subr.mxu0 0.0
        %1564 = vmatpush1.msra.mxu0 0.0
        %1565 = vmatprep.mubr.f32.mxu0 0.0
        %1566 = vmatmul.mubr.f32.gmra.mrb[0].mxu0 %v557
        %v1567 = vpop.f32.mrb[0].mxu0
        %v1568 = vadd.f32 0.0, %v1567
        %v1569 = vpop.f32.mrb[0].mxu0
        %1570 = vdwg.mxu0
        %1571 = vmatprep.subr.mxu0 0.0
        %1572 = vmatpush1.msra.mxu0 %v1143
        %1573 = vmatprep.subr.mxu0 0.0
        %1574 = vmatpush1.msra.mxu0 %v1144
        %1575 = vmatprep.subr.mxu0 0.0
        %1576 = vmatpush1.msra.mxu0 %v1145
        %1577 = vmatprep.subr.mxu0 0.0
        %1578 = vmatpush1.msra.mxu0 %v1146
        %1579 = vmatprep.subr.mxu0 0.0
        %1580 = vmatpush1.msra.mxu0 0.0
        %1581 = vmatprep.subr.mxu0 0.0
        %1582 = vmatpush1.msra.mxu0 0.0
        %1583 = vmatprep.subr.mxu0 0.0
        %1584 = vmatpush1.msra.mxu0 0.0
        %1585 = vmatprep.subr.mxu0 0.0
        %1586 = vmatpush1.msra.mxu0 0.0
        %1587 = vmatprep.subr.mxu0 0.0
        %1588 = vmatpush1.msra.mxu0 0.0
        %1589 = vmatprep.subr.mxu0 0.0
        %1590 = vmatpush1.msra.mxu0 0.0
        %1591 = vmatprep.subr.mxu0 0.0
        %1592 = vmatpush1.msra.mxu0 0.0
        %1593 = vmatprep.subr.mxu0 0.0
        %1594 = vmatpush1.msra.mxu0 0.0
        %1595 = vmatprep.subr.mxu0 0.0
        %1596 = vmatpush1.msra.mxu0 0.0
        %1597 = vmatprep.subr.mxu0 0.0
        %1598 = vmatpush1.msra.mxu0 0.0
        %1599 = vmatprep.subr.mxu0 0.0
        %1600 = vmatpush1.msra.mxu0 0.0
        %1601 = vmatprep.subr.mxu0 0.0
        %1602 = vmatpush1.msra.mxu0 0.0
        %1603 = vmatprep.subr.mxu0 0.0
        %1604 = vmatpush1.msra.mxu0 0.0
        %1605 = vmatprep.subr.mxu0 0.0
        %1606 = vmatpush1.msra.mxu0 0.0
        %1607 = vmatprep.subr.mxu0 0.0
        %1608 = vmatpush1.msra.mxu0 0.0
        %1609 = vmatprep.subr.mxu0 0.0
        %1610 = vmatpush1.msra.mxu0 0.0
        %1611 = vmatprep.subr.mxu0 0.0
        %1612 = vmatpush1.msra.mxu0 0.0
        %1613 = vmatprep.subr.mxu0 0.0
        %1614 = vmatpush1.msra.mxu0 0.0
        %1615 = vmatprep.subr.mxu0 0.0
        %1616 = vmatpush1.msra.mxu0 0.0
        %1617 = vmatprep.subr.mxu0 0.0
        %1618 = vmatpush1.msra.mxu0 0.0
        %1619 = vmatprep.subr.mxu0 0.0
        %1620 = vmatpush1.msra.mxu0 0.0
        %1621 = vmatprep.subr.mxu0 0.0
        %1622 = vmatpush1.msra.mxu0 0.0
        %1623 = vmatprep.subr.mxu0 0.0
        %1624 = vmatpush1.msra.mxu0 0.0
        %1625 = vmatprep.subr.mxu0 0.0
        %1626 = vmatpush1.msra.mxu0 0.0
        %1627 = vmatprep.subr.mxu0 0.0
        %1628 = vmatpush1.msra.mxu0 0.0
        %1629 = vmatprep.subr.mxu0 0.0
        %1630 = vmatpush1.msra.mxu0 0.0
        %1631 = vmatprep.subr.mxu0 0.0
        %1632 = vmatpush1.msra.mxu0 0.0
        %1633 = vmatprep.subr.mxu0 0.0
        %1634 = vmatpush1.msra.mxu0 0.0
        %1635 = vmatprep.mubr.f32.mxu0 0.0
        %1636 = vmatmul.mubr.f32.gmra.mrb[0].mxu0 %v557
        %v1637 = vpop.f32.mrb[0].mxu0
        %v1638 = vadd.f32 0.0, %v1637
        %v1639 = vpop.f32.mrb[0].mxu0
        %1640 = vdwg.mxu0
        %1641 = vmatprep.subr.mxu0 0.0
        %1642 = vmatpush1.msra.mxu0 %v1147
        %1643 = vmatprep.subr.mxu0 0.0
        %1644 = vmatpush1.msra.mxu0 %v1148
        %1645 = vmatprep.subr.mxu0 0.0
        %1646 = vmatpush1.msra.mxu0 %v1149
        %1647 = vmatprep.subr.mxu0 0.0
        %1648 = vmatpush1.msra.mxu0 %v1150
        %1649 = vmatprep.subr.mxu0 0.0
        %1650 = vmatpush1.msra.mxu0 0.0
        %1651 = vmatprep.subr.mxu0 0.0
        %1652 = vmatpush1.msra.mxu0 0.0
        %1653 = vmatprep.subr.mxu0 0.0
        %1654 = vmatpush1.msra.mxu0 0.0
        %1655 = vmatprep.subr.mxu0 0.0
        %1656 = vmatpush1.msra.mxu0 0.0
        %1657 = vmatprep.subr.mxu0 0.0
        %1658 = vmatpush1.msra.mxu0 0.0
        %1659 = vmatprep.subr.mxu0 0.0
        %1660 = vmatpush1.msra.mxu0 0.0
        %1661 = vmatprep.subr.mxu0 0.0
        %1662 = vmatpush1.msra.mxu0 0.0
        %1663 = vmatprep.subr.mxu0 0.0
        %1664 = vmatpush1.msra.mxu0 0.0
        %1665 = vmatprep.subr.mxu0 0.0
        %1666 = vmatpush1.msra.mxu0 0.0
        %1667 = vmatprep.subr.mxu0 0.0
        %1668 = vmatpush1.msra.mxu0 0.0
        %1669 = vmatprep.subr.mxu0 0.0
        %1670 = vmatpush1.msra.mxu0 0.0
        %1671 = vmatprep.subr.mxu0 0.0
        %1672 = vmatpush1.msra.mxu0 0.0
        %1673 = vmatprep.subr.mxu0 0.0
        %1674 = vmatpush1.msra.mxu0 0.0
        %1675 = vmatprep.subr.mxu0 0.0
        %1676 = vmatpush1.msra.mxu0 0.0
        %1677 = vmatprep.subr.mxu0 0.0
        %1678 = vmatpush1.msra.mxu0 0.0
        %1679 = vmatprep.subr.mxu0 0.0
        %1680 = vmatpush1.msra.mxu0 0.0
        %1681 = vmatprep.subr.mxu0 0.0
        %1682 = vmatpush1.msra.mxu0 0.0
        %1683 = vmatprep.subr.mxu0 0.0
        %1684 = vmatpush1.msra.mxu0 0.0
        %1685 = vmatprep.subr.mxu0 0.0
        %1686 = vmatpush1.msra.mxu0 0.0
        %1687 = vmatprep.subr.mxu0 0.0
        %1688 = vmatpush1.msra.mxu0 0.0
        %1689 = vmatprep.subr.mxu0 0.0
        %1690 = vmatpush1.msra.mxu0 0.0
        %1691 = vmatprep.subr.mxu0 0.0
        %1692 = vmatpush1.msra.mxu0 0.0
        %1693 = vmatprep.subr.mxu0 0.0
        %1694 = vmatpush1.msra.mxu0 0.0
        %1695 = vmatprep.subr.mxu0 0.0
        %1696 = vmatpush1.msra.mxu0 0.0
        %1697 = vmatprep.subr.mxu0 0.0
        %1698 = vmatpush1.msra.mxu0 0.0
        %1699 = vmatprep.subr.mxu0 0.0
        %1700 = vmatpush1.msra.mxu0 0.0
        %1701 = vmatprep.subr.mxu0 0.0
        %1702 = vmatpush1.msra.mxu0 0.0
        %1703 = vmatprep.subr.mxu0 0.0
        %1704 = vmatpush1.msra.mxu0 0.0
        %1705 = vmatprep.mubr.f32.mxu0 0.0
        %1706 = vmatmul.mubr.f32.gmra.mrb[0].mxu0 %v557
        %v1707 = vpop.f32.mrb[0].mxu0
        %v1708 = vadd.f32 0.0, %v1707
        %v1709 = vpop.f32.mrb[0].mxu0
        %1710 = vdwg.mxu0
        %v1711 = vld [vmem:[#allocation7] sm:$0xff]
        %v1712 = vld [vmem:[#allocation7 + $0x8] sm:$0xff]
        %v1713 = vld [vmem:[#allocation7 + $0x10] sm:$0xff]
        %v1714 = vld [vmem:[#allocation7 + $0x18] sm:$0xff]
        %v1715 = vld [vmem:[#allocation7 + $0x20] sm:$0xff]
        %v1716 = vld [vmem:[#allocation7 + $0x28] sm:$0xff]
        %v1717 = vld [vmem:[#allocation7 + $0x30] sm:$0xff]
        %v1718 = vld [vmem:[#allocation7 + $0x38] sm:$0xff]
        %v1719 = vld [vmem:[#allocation7 + $0x40] sm:$0xff]
        %v1720 = vld [vmem:[#allocation7 + $0x48] sm:$0xff]
        %v1721 = vld [vmem:[#allocation7 + $0x50] sm:$0xff]
        %v1722 = vld [vmem:[#allocation7 + $0x58] sm:$0xff]
        %v1723 = vld [vmem:[#allocation7 + $0x60] sm:$0xff]
        %v1724 = vld [vmem:[#allocation7 + $0x68] sm:$0xff]
        %v1725 = vld [vmem:[#allocation7 + $0x70] sm:$0xff]
        %v1726 = vld [vmem:[#allocation7 + $0x78] sm:$0xff]
        %v1727 = vld [vmem:[#allocation7 + $0x80] sm:$0xff]
        %v1728 = vld [vmem:[#allocation7 + $0x88] sm:$0xff]
        %v1729 = vld [vmem:[#allocation7 + $0x90] sm:$0xff]
        %v1730 = vld [vmem:[#allocation7 + $0x98] sm:$0xff]
        %v1731 = vld [vmem:[#allocation7 + $0xa0] sm:$0xff]
        %v1732 = vld [vmem:[#allocation7 + $0xa8] sm:$0xff]
        %v1733 = vld [vmem:[#allocation7 + $0xb0] sm:$0xff]
        %v1734 = vld [vmem:[#allocation7 + $0xb8] sm:$0xff]
        %v1735 = vld [vmem:[#allocation7 + $0xc0] sm:$0xff]
        %v1736 = vld [vmem:[#allocation7 + $0xc8] sm:$0xff]
        %v1737 = vld [vmem:[#allocation7 + $0xd0] sm:$0xff]
        %v1738 = vld [vmem:[#allocation7 + $0xd8] sm:$0xff]
        %v1739 = vld [vmem:[#allocation7 + $0xe0] sm:$0xff]
        %v1740 = vld [vmem:[#allocation7 + $0xe8] sm:$0xff]
        %v1741 = vld [vmem:[#allocation7 + $0xf0] sm:$0xff]
        %v1742 = vld [vmem:[#allocation7 + $0xf8] sm:$0xff]
        %1743 = vmatprep.subr.mxu0 0.0
        %1744 = vmatpush1.msra.mxu0 %v1711
        %1745 = vmatprep.subr.mxu0 0.0
        %1746 = vmatpush1.msra.mxu0 %v1712
        %1747 = vmatprep.subr.mxu0 0.0
        %1748 = vmatpush1.msra.mxu0 %v1713
        %1749 = vmatprep.subr.mxu0 0.0
        %1750 = vmatpush1.msra.mxu0 %v1714
        %1751 = vmatprep.subr.mxu0 0.0
        %1752 = vmatpush1.msra.mxu0 0.0
        %1753 = vmatprep.subr.mxu0 0.0
        %1754 = vmatpush1.msra.mxu0 0.0
        %1755 = vmatprep.subr.mxu0 0.0
        %1756 = vmatpush1.msra.mxu0 0.0
        %1757 = vmatprep.subr.mxu0 0.0
        %1758 = vmatpush1.msra.mxu0 0.0
        %1759 = vmatprep.subr.mxu0 0.0
        %1760 = vmatpush1.msra.mxu0 0.0
        %1761 = vmatprep.subr.mxu0 0.0
        %1762 = vmatpush1.msra.mxu0 0.0
        %1763 = vmatprep.subr.mxu0 0.0
        %1764 = vmatpush1.msra.mxu0 0.0
        %1765 = vmatprep.subr.mxu0 0.0
        %1766 = vmatpush1.msra.mxu0 0.0
        %1767 = vmatprep.subr.mxu0 0.0
        %1768 = vmatpush1.msra.mxu0 0.0
        %1769 = vmatprep.subr.mxu0 0.0
        %1770 = vmatpush1.msra.mxu0 0.0
        %1771 = vmatprep.subr.mxu0 0.0
        %1772 = vmatpush1.msra.mxu0 0.0
        %1773 = vmatprep.subr.mxu0 0.0
        %1774 = vmatpush1.msra.mxu0 0.0
        %1775 = vmatprep.subr.mxu0 0.0
        %1776 = vmatpush1.msra.mxu0 0.0
        %1777 = vmatprep.subr.mxu0 0.0
        %1778 = vmatpush1.msra.mxu0 0.0
        %1779 = vmatprep.subr.mxu0 0.0
        %1780 = vmatpush1.msra.mxu0 0.0
        %1781 = vmatprep.subr.mxu0 0.0
        %1782 = vmatpush1.msra.mxu0 0.0
        %1783 = vmatprep.subr.mxu0 0.0
        %1784 = vmatpush1.msra.mxu0 0.0
        %1785 = vmatprep.subr.mxu0 0.0
        %1786 = vmatpush1.msra.mxu0 0.0
        %1787 = vmatprep.subr.mxu0 0.0
        %1788 = vmatpush1.msra.mxu0 0.0
        %1789 = vmatprep.subr.mxu0 0.0
        %1790 = vmatpush1.msra.mxu0 0.0
        %1791 = vmatprep.subr.mxu0 0.0
        %1792 = vmatpush1.msra.mxu0 0.0
        %1793 = vmatprep.subr.mxu0 0.0
        %1794 = vmatpush1.msra.mxu0 0.0
        %1795 = vmatprep.subr.mxu0 0.0
        %1796 = vmatpush1.msra.mxu0 0.0
        %1797 = vmatprep.subr.mxu0 0.0
        %1798 = vmatpush1.msra.mxu0 0.0
        %1799 = vmatprep.subr.mxu0 0.0
        %1800 = vmatpush1.msra.mxu0 0.0
        %1801 = vmatprep.subr.mxu0 0.0
        %1802 = vmatpush1.msra.mxu0 0.0
        %1803 = vmatprep.subr.mxu0 0.0
        %1804 = vmatpush1.msra.mxu0 0.0
        %1805 = vmatprep.subr.mxu0 0.0
        %1806 = vmatpush1.msra.mxu0 0.0
        %1807 = vmatprep.mubr.f32.mxu0 0.0
        %1808 = vmatmul.mubr.f32.gmra.mrb[0].mxu0 %v557
        %v1809 = vpop.f32.mrb[0].mxu0
        %v1810 = vadd.f32 0.0, %v1809
        %v1811 = vpop.f32.mrb[0].mxu0
        %1812 = vdwg.mxu0
        %1813 = vmatprep.subr.mxu0 0.0
        %1814 = vmatpush1.msra.mxu0 %v1715
        %1815 = vmatprep.subr.mxu0 0.0
        %1816 = vmatpush1.msra.mxu0 %v1716
        %1817 = vmatprep.subr.mxu0 0.0
        %1818 = vmatpush1.msra.mxu0 %v1717
        %1819 = vmatprep.subr.mxu0 0.0
        %1820 = vmatpush1.msra.mxu0 %v1718
        %1821 = vmatprep.subr.mxu0 0.0
        %1822 = vmatpush1.msra.mxu0 0.0
        %1823 = vmatprep.subr.mxu0 0.0
        %1824 = vmatpush1.msra.mxu0 0.0
        %1825 = vmatprep.subr.mxu0 0.0
        %1826 = vmatpush1.msra.mxu0 0.0
        %1827 = vmatprep.subr.mxu0 0.0
        %1828 = vmatpush1.msra.mxu0 0.0
        %1829 = vmatprep.subr.mxu0 0.0
        %1830 = vmatpush1.msra.mxu0 0.0
        %1831 = vmatprep.subr.mxu0 0.0
        %1832 = vmatpush1.msra.mxu0 0.0
        %1833 = vmatprep.subr.mxu0 0.0
        %1834 = vmatpush1.msra.mxu0 0.0
        %1835 = vmatprep.subr.mxu0 0.0
        %1836 = vmatpush1.msra.mxu0 0.0
        %1837 = vmatprep.subr.mxu0 0.0
        %1838 = vmatpush1.msra.mxu0 0.0
        %1839 = vmatprep.subr.mxu0 0.0
        %1840 = vmatpush1.msra.mxu0 0.0
        %1841 = vmatprep.subr.mxu0 0.0
        %1842 = vmatpush1.msra.mxu0 0.0
        %1843 = vmatprep.subr.mxu0 0.0
        %1844 = vmatpush1.msra.mxu0 0.0
        %1845 = vmatprep.subr.mxu0 0.0
        %1846 = vmatpush1.msra.mxu0 0.0
        %1847 = vmatprep.subr.mxu0 0.0
        %1848 = vmatpush1.msra.mxu0 0.0
        %1849 = vmatprep.subr.mxu0 0.0
        %1850 = vmatpush1.msra.mxu0 0.0
        %1851 = vmatprep.subr.mxu0 0.0
        %1852 = vmatpush1.msra.mxu0 0.0
        %1853 = vmatprep.subr.mxu0 0.0
        %1854 = vmatpush1.msra.mxu0 0.0
        %1855 = vmatprep.subr.mxu0 0.0
        %1856 = vmatpush1.msra.mxu0 0.0
        %1857 = vmatprep.subr.mxu0 0.0
        %1858 = vmatpush1.msra.mxu0 0.0
        %1859 = vmatprep.subr.mxu0 0.0
        %1860 = vmatpush1.msra.mxu0 0.0
        %1861 = vmatprep.subr.mxu0 0.0
        %1862 = vmatpush1.msra.mxu0 0.0
        %1863 = vmatprep.subr.mxu0 0.0
        %1864 = vmatpush1.msra.mxu0 0.0
        %1865 = vmatprep.subr.mxu0 0.0
        %1866 = vmatpush1.msra.mxu0 0.0
        %1867 = vmatprep.subr.mxu0 0.0
        %1868 = vmatpush1.msra.mxu0 0.0
        %1869 = vmatprep.subr.mxu0 0.0
        %1870 = vmatpush1.msra.mxu0 0.0
        %1871 = vmatprep.subr.mxu0 0.0
        %1872 = vmatpush1.msra.mxu0 0.0
        %1873 = vmatprep.subr.mxu0 0.0
        %1874 = vmatpush1.msra.mxu0 0.0
        %1875 = vmatprep.subr.mxu0 0.0
        %1876 = vmatpush1.msra.mxu0 0.0
        %1877 = vmatprep.mubr.f32.mxu0 0.0
        %1878 = vmatmul.mubr.f32.gmra.mrb[0].mxu0 %v557
        %v1879 = vpop.f32.mrb[0].mxu0
        %v1880 = vadd.f32 0.0, %v1879
        %v1881 = vpop.f32.mrb[0].mxu0
        %1882 = vdwg.mxu0
        %1883 = vmatprep.subr.mxu0 0.0
        %1884 = vmatpush1.msra.mxu0 %v1719
        %1885 = vmatprep.subr.mxu0 0.0
        %1886 = vmatpush1.msra.mxu0 %v1720
        %1887 = vmatprep.subr.mxu0 0.0
        %1888 = vmatpush1.msra.mxu0 %v1721
        %1889 = vmatprep.subr.mxu0 0.0
        %1890 = vmatpush1.msra.mxu0 %v1722
        %1891 = vmatprep.subr.mxu0 0.0
        %1892 = vmatpush1.msra.mxu0 0.0
        %1893 = vmatprep.subr.mxu0 0.0
        %1894 = vmatpush1.msra.mxu0 0.0
        %1895 = vmatprep.subr.mxu0 0.0
        %1896 = vmatpush1.msra.mxu0 0.0
        %1897 = vmatprep.subr.mxu0 0.0
        %1898 = vmatpush1.msra.mxu0 0.0
        %1899 = vmatprep.subr.mxu0 0.0
        %1900 = vmatpush1.msra.mxu0 0.0
        %1901 = vmatprep.subr.mxu0 0.0
        %1902 = vmatpush1.msra.mxu0 0.0
        %1903 = vmatprep.subr.mxu0 0.0
        %1904 = vmatpush1.msra.mxu0 0.0
        %1905 = vmatprep.subr.mxu0 0.0
        %1906 = vmatpush1.msra.mxu0 0.0
        %1907 = vmatprep.subr.mxu0 0.0
        %1908 = vmatpush1.msra.mxu0 0.0
        %1909 = vmatprep.subr.mxu0 0.0
        %1910 = vmatpush1.msra.mxu0 0.0
        %1911 = vmatprep.subr.mxu0 0.0
        %1912 = vmatpush1.msra.mxu0 0.0
        %1913 = vmatprep.subr.mxu0 0.0
        %1914 = vmatpush1.msra.mxu0 0.0
        %1915 = vmatprep.subr.mxu0 0.0
        %1916 = vmatpush1.msra.mxu0 0.0
        %1917 = vmatprep.subr.mxu0 0.0
        %1918 = vmatpush1.msra.mxu0 0.0
        %1919 = vmatprep.subr.mxu0 0.0
        %1920 = vmatpush1.msra.mxu0 0.0
        %1921 = vmatprep.subr.mxu0 0.0
        %1922 = vmatpush1.msra.mxu0 0.0
        %1923 = vmatprep.subr.mxu0 0.0
        %1924 = vmatpush1.msra.mxu0 0.0
        %1925 = vmatprep.subr.mxu0 0.0
        %1926 = vmatpush1.msra.mxu0 0.0
        %1927 = vmatprep.subr.mxu0 0.0
        %1928 = vmatpush1.msra.mxu0 0.0
        %1929 = vmatprep.subr.mxu0 0.0
        %1930 = vmatpush1.msra.mxu0 0.0
        %1931 = vmatprep.subr.mxu0 0.0
        %1932 = vmatpush1.msra.mxu0 0.0
        %1933 = vmatprep.subr.mxu0 0.0
        %1934 = vmatpush1.msra.mxu0 0.0
        %1935 = vmatprep.subr.mxu0 0.0
        %1936 = vmatpush1.msra.mxu0 0.0
        %1937 = vmatprep.subr.mxu0 0.0
        %1938 = vmatpush1.msra.mxu0 0.0
        %1939 = vmatprep.subr.mxu0 0.0
        %1940 = vmatpush1.msra.mxu0 0.0
        %1941 = vmatprep.subr.mxu0 0.0
        %1942 = vmatpush1.msra.mxu0 0.0
        %1943 = vmatprep.subr.mxu0 0.0
        %1944 = vmatpush1.msra.mxu0 0.0
        %1945 = vmatprep.subr.mxu0 0.0
        %1946 = vmatpush1.msra.mxu0 0.0
        %1947 = vmatprep.mubr.f32.mxu0 0.0
        %1948 = vmatmul.mubr.f32.gmra.mrb[0].mxu0 %v557
        %v1949 = vpop.f32.mrb[0].mxu0
        %v1950 = vadd.f32 0.0, %v1949
        %v1951 = vpop.f32.mrb[0].mxu0
        %1952 = vdwg.mxu0
        %1953 = vmatprep.subr.mxu0 0.0
        %1954 = vmatpush1.msra.mxu0 %v1723
        %1955 = vmatprep.subr.mxu0 0.0
        %1956 = vmatpush1.msra.mxu0 %v1724
        %1957 = vmatprep.subr.mxu0 0.0
        %1958 = vmatpush1.msra.mxu0 %v1725
        %1959 = vmatprep.subr.mxu0 0.0
        %1960 = vmatpush1.msra.mxu0 %v1726
        %1961 = vmatprep.subr.mxu0 0.0
        %1962 = vmatpush1.msra.mxu0 0.0
        %1963 = vmatprep.subr.mxu0 0.0
        %1964 = vmatpush1.msra.mxu0 0.0
        %1965 = vmatprep.subr.mxu0 0.0
        %1966 = vmatpush1.msra.mxu0 0.0
        %1967 = vmatprep.subr.mxu0 0.0
        %1968 = vmatpush1.msra.mxu0 0.0
        %1969 = vmatprep.subr.mxu0 0.0
        %1970 = vmatpush1.msra.mxu0 0.0
        %1971 = vmatprep.subr.mxu0 0.0
        %1972 = vmatpush1.msra.mxu0 0.0
        %1973 = vmatprep.subr.mxu0 0.0
        %1974 = vmatpush1.msra.mxu0 0.0
        %1975 = vmatprep.subr.mxu0 0.0
        %1976 = vmatpush1.msra.mxu0 0.0
        %1977 = vmatprep.subr.mxu0 0.0
        %1978 = vmatpush1.msra.mxu0 0.0
        %1979 = vmatprep.subr.mxu0 0.0
        %1980 = vmatpush1.msra.mxu0 0.0
        %1981 = vmatprep.subr.mxu0 0.0
        %1982 = vmatpush1.msra.mxu0 0.0
        %1983 = vmatprep.subr.mxu0 0.0
        %1984 = vmatpush1.msra.mxu0 0.0
        %1985 = vmatprep.subr.mxu0 0.0
        %1986 = vmatpush1.msra.mxu0 0.0
        %1987 = vmatprep.subr.mxu0 0.0
        %1988 = vmatpush1.msra.mxu0 0.0
        %1989 = vmatprep.subr.mxu0 0.0
        %1990 = vmatpush1.msra.mxu0 0.0
        %1991 = vmatprep.subr.mxu0 0.0
        %1992 = vmatpush1.msra.mxu0 0.0
        %1993 = vmatprep.subr.mxu0 0.0
        %1994 = vmatpush1.msra.mxu0 0.0
        %1995 = vmatprep.subr.mxu0 0.0
        %1996 = vmatpush1.msra.mxu0 0.0
        %1997 = vmatprep.subr.mxu0 0.0
        %1998 = vmatpush1.msra.mxu0 0.0
        %1999 = vmatprep.subr.mxu0 0.0
        %2000 = vmatpush1.msra.mxu0 0.0
        %2001 = vmatprep.subr.mxu0 0.0
        %2002 = vmatpush1.msra.mxu0 0.0
        %2003 = vmatprep.subr.mxu0 0.0
        %2004 = vmatpush1.msra.mxu0 0.0
        %2005 = vmatprep.subr.mxu0 0.0
        %2006 = vmatpush1.msra.mxu0 0.0
        %2007 = vmatprep.subr.mxu0 0.0
        %2008 = vmatpush1.msra.mxu0 0.0
        %2009 = vmatprep.subr.mxu0 0.0
        %2010 = vmatpush1.msra.mxu0 0.0
        %2011 = vmatprep.subr.mxu0 0.0
        %2012 = vmatpush1.msra.mxu0 0.0
        %2013 = vmatprep.subr.mxu0 0.0
        %2014 = vmatpush1.msra.mxu0 0.0
        %2015 = vmatprep.subr.mxu0 0.0
        %2016 = vmatpush1.msra.mxu0 0.0
        %2017 = vmatprep.mubr.f32.mxu0 0.0
        %2018 = vmatmul.mubr.f32.gmra.mrb[0].mxu0 %v557
        %v2019 = vpop.f32.mrb[0].mxu0
        %v2020 = vadd.f32 0.0, %v2019
        %v2021 = vpop.f32.mrb[0].mxu0
        %2022 = vdwg.mxu0
        %2023 = vmatprep.subr.mxu0 0.0
        %2024 = vmatpush1.msra.mxu0 %v1727
        %2025 = vmatprep.subr.mxu0 0.0
        %2026 = vmatpush1.msra.mxu0 %v1728
        %2027 = vmatprep.subr.mxu0 0.0
        %2028 = vmatpush1.msra.mxu0 %v1729
        %2029 = vmatprep.subr.mxu0 0.0
        %2030 = vmatpush1.msra.mxu0 %v1730
        %2031 = vmatprep.subr.mxu0 0.0
        %2032 = vmatpush1.msra.mxu0 0.0
        %2033 = vmatprep.subr.mxu0 0.0
        %2034 = vmatpush1.msra.mxu0 0.0
        %2035 = vmatprep.subr.mxu0 0.0
        %2036 = vmatpush1.msra.mxu0 0.0
        %2037 = vmatprep.subr.mxu0 0.0
        %2038 = vmatpush1.msra.mxu0 0.0
        %2039 = vmatprep.subr.mxu0 0.0
        %2040 = vmatpush1.msra.mxu0 0.0
        %2041 = vmatprep.subr.mxu0 0.0
        %2042 = vmatpush1.msra.mxu0 0.0
        %2043 = vmatprep.subr.mxu0 0.0
        %2044 = vmatpush1.msra.mxu0 0.0
        %2045 = vmatprep.subr.mxu0 0.0
        %2046 = vmatpush1.msra.mxu0 0.0
        %2047 = vmatprep.subr.mxu0 0.0
        %2048 = vmatpush1.msra.mxu0 0.0
        %2049 = vmatprep.subr.mxu0 0.0
        %2050 = vmatpush1.msra.mxu0 0.0
        %2051 = vmatprep.subr.mxu0 0.0
        %2052 = vmatpush1.msra.mxu0 0.0
        %2053 = vmatprep.subr.mxu0 0.0
        %2054 = vmatpush1.msra.mxu0 0.0
        %2055 = vmatprep.subr.mxu0 0.0
        %2056 = vmatpush1.msra.mxu0 0.0
        %2057 = vmatprep.subr.mxu0 0.0
        %2058 = vmatpush1.msra.mxu0 0.0
        %2059 = vmatprep.subr.mxu0 0.0
        %2060 = vmatpush1.msra.mxu0 0.0
        %2061 = vmatprep.subr.mxu0 0.0
        %2062 = vmatpush1.msra.mxu0 0.0
        %2063 = vmatprep.subr.mxu0 0.0
        %2064 = vmatpush1.msra.mxu0 0.0
        %2065 = vmatprep.subr.mxu0 0.0
        %2066 = vmatpush1.msra.mxu0 0.0
        %2067 = vmatprep.subr.mxu0 0.0
        %2068 = vmatpush1.msra.mxu0 0.0
        %2069 = vmatprep.subr.mxu0 0.0
        %2070 = vmatpush1.msra.mxu0 0.0
        %2071 = vmatprep.subr.mxu0 0.0
        %2072 = vmatpush1.msra.mxu0 0.0
        %2073 = vmatprep.subr.mxu0 0.0
        %2074 = vmatpush1.msra.mxu0 0.0
        %2075 = vmatprep.subr.mxu0 0.0
        %2076 = vmatpush1.msra.mxu0 0.0
        %2077 = vmatprep.subr.mxu0 0.0
        %2078 = vmatpush1.msra.mxu0 0.0
        %2079 = vmatprep.subr.mxu0 0.0
        %2080 = vmatpush1.msra.mxu0 0.0
        %2081 = vmatprep.subr.mxu0 0.0
        %2082 = vmatpush1.msra.mxu0 0.0
        %2083 = vmatprep.subr.mxu0 0.0
        %2084 = vmatpush1.msra.mxu0 0.0
        %2085 = vmatprep.subr.mxu0 0.0
        %2086 = vmatpush1.msra.mxu0 0.0
        %2087 = vmatprep.mubr.f32.mxu0 0.0
        %2088 = vmatmul.mubr.f32.gmra.mrb[0].mxu0 %v557
        %v2089 = vpop.f32.mrb[0].mxu0
        %v2090 = vadd.f32 0.0, %v2089
        %v2091 = vpop.f32.mrb[0].mxu0
        %2092 = vdwg.mxu0
        %2093 = vmatprep.subr.mxu0 0.0
        %2094 = vmatpush1.msra.mxu0 %v1731
        %2095 = vmatprep.subr.mxu0 0.0
        %2096 = vmatpush1.msra.mxu0 %v1732
        %2097 = vmatprep.subr.mxu0 0.0
        %2098 = vmatpush1.msra.mxu0 %v1733
        %2099 = vmatprep.subr.mxu0 0.0
        %2100 = vmatpush1.msra.mxu0 %v1734
        %2101 = vmatprep.subr.mxu0 0.0
        %2102 = vmatpush1.msra.mxu0 0.0
        %2103 = vmatprep.subr.mxu0 0.0
        %2104 = vmatpush1.msra.mxu0 0.0
        %2105 = vmatprep.subr.mxu0 0.0
        %2106 = vmatpush1.msra.mxu0 0.0
        %2107 = vmatprep.subr.mxu0 0.0
        %2108 = vmatpush1.msra.mxu0 0.0
        %2109 = vmatprep.subr.mxu0 0.0
        %2110 = vmatpush1.msra.mxu0 0.0
        %2111 = vmatprep.subr.mxu0 0.0
        %2112 = vmatpush1.msra.mxu0 0.0
        %2113 = vmatprep.subr.mxu0 0.0
        %2114 = vmatpush1.msra.mxu0 0.0
        %2115 = vmatprep.subr.mxu0 0.0
        %2116 = vmatpush1.msra.mxu0 0.0
        %2117 = vmatprep.subr.mxu0 0.0
        %2118 = vmatpush1.msra.mxu0 0.0
        %2119 = vmatprep.subr.mxu0 0.0
        %2120 = vmatpush1.msra.mxu0 0.0
        %2121 = vmatprep.subr.mxu0 0.0
        %2122 = vmatpush1.msra.mxu0 0.0
        %2123 = vmatprep.subr.mxu0 0.0
        %2124 = vmatpush1.msra.mxu0 0.0
        %2125 = vmatprep.subr.mxu0 0.0
        %2126 = vmatpush1.msra.mxu0 0.0
        %2127 = vmatprep.subr.mxu0 0.0
        %2128 = vmatpush1.msra.mxu0 0.0
        %2129 = vmatprep.subr.mxu0 0.0
        %2130 = vmatpush1.msra.mxu0 0.0
        %2131 = vmatprep.subr.mxu0 0.0
        %2132 = vmatpush1.msra.mxu0 0.0
        %2133 = vmatprep.subr.mxu0 0.0
        %2134 = vmatpush1.msra.mxu0 0.0
        %2135 = vmatprep.subr.mxu0 0.0
        %2136 = vmatpush1.msra.mxu0 0.0
        %2137 = vmatprep.subr.mxu0 0.0
        %2138 = vmatpush1.msra.mxu0 0.0
        %2139 = vmatprep.subr.mxu0 0.0
        %2140 = vmatpush1.msra.mxu0 0.0
        %2141 = vmatprep.subr.mxu0 0.0
        %2142 = vmatpush1.msra.mxu0 0.0
        %2143 = vmatprep.subr.mxu0 0.0
        %2144 = vmatpush1.msra.mxu0 0.0
        %2145 = vmatprep.subr.mxu0 0.0
        %2146 = vmatpush1.msra.mxu0 0.0
        %2147 = vmatprep.subr.mxu0 0.0
        %2148 = vmatpush1.msra.mxu0 0.0
        %2149 = vmatprep.subr.mxu0 0.0
        %2150 = vmatpush1.msra.mxu0 0.0
        %2151 = vmatprep.subr.mxu0 0.0
        %2152 = vmatpush1.msra.mxu0 0.0
        %2153 = vmatprep.subr.mxu0 0.0
        %2154 = vmatpush1.msra.mxu0 0.0
        %2155 = vmatprep.subr.mxu0 0.0
        %2156 = vmatpush1.msra.mxu0 0.0
        %2157 = vmatprep.mubr.f32.mxu0 0.0
        %2158 = vmatmul.mubr.f32.gmra.mrb[0].mxu0 %v557
        %v2159 = vpop.f32.mrb[0].mxu0
        %v2160 = vadd.f32 0.0, %v2159
        %v2161 = vpop.f32.mrb[0].mxu0
        %2162 = vdwg.mxu0
        %2163 = vmatprep.subr.mxu0 0.0
        %2164 = vmatpush1.msra.mxu0 %v1735
        %2165 = vmatprep.subr.mxu0 0.0
        %2166 = vmatpush1.msra.mxu0 %v1736
        %2167 = vmatprep.subr.mxu0 0.0
        %2168 = vmatpush1.msra.mxu0 %v1737
        %2169 = vmatprep.subr.mxu0 0.0
        %2170 = vmatpush1.msra.mxu0 %v1738
        %2171 = vmatprep.subr.mxu0 0.0
        %2172 = vmatpush1.msra.mxu0 0.0
        %2173 = vmatprep.subr.mxu0 0.0
        %2174 = vmatpush1.msra.mxu0 0.0
        %2175 = vmatprep.subr.mxu0 0.0
        %2176 = vmatpush1.msra.mxu0 0.0
        %2177 = vmatprep.subr.mxu0 0.0
        %2178 = vmatpush1.msra.mxu0 0.0
        %2179 = vmatprep.subr.mxu0 0.0
        %2180 = vmatpush1.msra.mxu0 0.0
        %2181 = vmatprep.subr.mxu0 0.0
        %2182 = vmatpush1.msra.mxu0 0.0
        %2183 = vmatprep.subr.mxu0 0.0
        %2184 = vmatpush1.msra.mxu0 0.0
        %2185 = vmatprep.subr.mxu0 0.0
        %2186 = vmatpush1.msra.mxu0 0.0
        %2187 = vmatprep.subr.mxu0 0.0
        %2188 = vmatpush1.msra.mxu0 0.0
        %2189 = vmatprep.subr.mxu0 0.0
        %2190 = vmatpush1.msra.mxu0 0.0
        %2191 = vmatprep.subr.mxu0 0.0
        %2192 = vmatpush1.msra.mxu0 0.0
        %2193 = vmatprep.subr.mxu0 0.0
        %2194 = vmatpush1.msra.mxu0 0.0
        %2195 = vmatprep.subr.mxu0 0.0
        %2196 = vmatpush1.msra.mxu0 0.0
        %2197 = vmatprep.subr.mxu0 0.0
        %2198 = vmatpush1.msra.mxu0 0.0
        %2199 = vmatprep.subr.mxu0 0.0
        %2200 = vmatpush1.msra.mxu0 0.0
        %2201 = vmatprep.subr.mxu0 0.0
        %2202 = vmatpush1.msra.mxu0 0.0
        %2203 = vmatprep.subr.mxu0 0.0
        %2204 = vmatpush1.msra.mxu0 0.0
        %2205 = vmatprep.subr.mxu0 0.0
        %2206 = vmatpush1.msra.mxu0 0.0
        %2207 = vmatprep.subr.mxu0 0.0
        %2208 = vmatpush1.msra.mxu0 0.0
        %2209 = vmatprep.subr.mxu0 0.0
        %2210 = vmatpush1.msra.mxu0 0.0
        %2211 = vmatprep.subr.mxu0 0.0
        %2212 = vmatpush1.msra.mxu0 0.0
        %2213 = vmatprep.subr.mxu0 0.0
        %2214 = vmatpush1.msra.mxu0 0.0
        %2215 = vmatprep.subr.mxu0 0.0
        %2216 = vmatpush1.msra.mxu0 0.0
        %2217 = vmatprep.subr.mxu0 0.0
        %2218 = vmatpush1.msra.mxu0 0.0
        %2219 = vmatprep.subr.mxu0 0.0
        %2220 = vmatpush1.msra.mxu0 0.0
        %2221 = vmatprep.subr.mxu0 0.0
        %2222 = vmatpush1.msra.mxu0 0.0
        %2223 = vmatprep.subr.mxu0 0.0
        %2224 = vmatpush1.msra.mxu0 0.0
        %2225 = vmatprep.subr.mxu0 0.0
        %2226 = vmatpush1.msra.mxu0 0.0
        %2227 = vmatprep.mubr.f32.mxu0 0.0
        %2228 = vmatmul.mubr.f32.gmra.mrb[0].mxu0 %v557
        %v2229 = vpop.f32.mrb[0].mxu0
        %v2230 = vadd.f32 0.0, %v2229
        %v2231 = vpop.f32.mrb[0].mxu0
        %2232 = vdwg.mxu0
        %2233 = vmatprep.subr.mxu0 0.0
        %2234 = vmatpush1.msra.mxu0 %v1739
        %2235 = vmatprep.subr.mxu0 0.0
        %2236 = vmatpush1.msra.mxu0 %v1740
        %2237 = vmatprep.subr.mxu0 0.0
        %2238 = vmatpush1.msra.mxu0 %v1741
        %2239 = vmatprep.subr.mxu0 0.0
        %2240 = vmatpush1.msra.mxu0 %v1742
        %2241 = vmatprep.subr.mxu0 0.0
        %2242 = vmatpush1.msra.mxu0 0.0
        %2243 = vmatprep.subr.mxu0 0.0
        %2244 = vmatpush1.msra.mxu0 0.0
        %2245 = vmatprep.subr.mxu0 0.0
        %2246 = vmatpush1.msra.mxu0 0.0
        %2247 = vmatprep.subr.mxu0 0.0
        %2248 = vmatpush1.msra.mxu0 0.0
        %2249 = vmatprep.subr.mxu0 0.0
        %2250 = vmatpush1.msra.mxu0 0.0
        %2251 = vmatprep.subr.mxu0 0.0
        %2252 = vmatpush1.msra.mxu0 0.0
        %2253 = vmatprep.subr.mxu0 0.0
        %2254 = vmatpush1.msra.mxu0 0.0
        %2255 = vmatprep.subr.mxu0 0.0
        %2256 = vmatpush1.msra.mxu0 0.0
        %2257 = vmatprep.subr.mxu0 0.0
        %2258 = vmatpush1.msra.mxu0 0.0
        %2259 = vmatprep.subr.mxu0 0.0
        %2260 = vmatpush1.msra.mxu0 0.0
        %2261 = vmatprep.subr.mxu0 0.0
        %2262 = vmatpush1.msra.mxu0 0.0
        %2263 = vmatprep.subr.mxu0 0.0
        %2264 = vmatpush1.msra.mxu0 0.0
        %2265 = vmatprep.subr.mxu0 0.0
        %2266 = vmatpush1.msra.mxu0 0.0
        %2267 = vmatprep.subr.mxu0 0.0
        %2268 = vmatpush1.msra.mxu0 0.0
        %2269 = vmatprep.subr.mxu0 0.0
        %2270 = vmatpush1.msra.mxu0 0.0
        %2271 = vmatprep.subr.mxu0 0.0
        %2272 = vmatpush1.msra.mxu0 0.0
        %2273 = vmatprep.subr.mxu0 0.0
        %2274 = vmatpush1.msra.mxu0 0.0
        %2275 = vmatprep.subr.mxu0 0.0
        %2276 = vmatpush1.msra.mxu0 0.0
        %2277 = vmatprep.subr.mxu0 0.0
        %2278 = vmatpush1.msra.mxu0 0.0
        %2279 = vmatprep.subr.mxu0 0.0
        %2280 = vmatpush1.msra.mxu0 0.0
        %2281 = vmatprep.subr.mxu0 0.0
        %2282 = vmatpush1.msra.mxu0 0.0
        %2283 = vmatprep.subr.mxu0 0.0
        %2284 = vmatpush1.msra.mxu0 0.0
        %2285 = vmatprep.subr.mxu0 0.0
        %2286 = vmatpush1.msra.mxu0 0.0
        %2287 = vmatprep.subr.mxu0 0.0
        %2288 = vmatpush1.msra.mxu0 0.0
        %2289 = vmatprep.subr.mxu0 0.0
        %2290 = vmatpush1.msra.mxu0 0.0
        %2291 = vmatprep.subr.mxu0 0.0
        %2292 = vmatpush1.msra.mxu0 0.0
        %2293 = vmatprep.subr.mxu0 0.0
        %2294 = vmatpush1.msra.mxu0 0.0
        %2295 = vmatprep.subr.mxu0 0.0
        %2296 = vmatpush1.msra.mxu0 0.0
        %2297 = vmatprep.mubr.f32.mxu0 0.0
        %2298 = vmatmul.mubr.f32.gmra.mrb[0].mxu0 %v557
        %v2299 = vpop.f32.mrb[0].mxu0
        %v2300 = vadd.f32 0.0, %v2299
        %v2301 = vpop.f32.mrb[0].mxu0
        %2302 = vdwg.mxu0
        %v2304 = vsel %vm555, %v626, 0
        %v2307 = vsel %vm555, %v1218, 0
        %2309 = vmatprep.subr.mxu0 0.0
        %2310 = vmatpush1.xpose.msra.mxu0 %v2307
        %2311 = vmatprep.subr.mxu0 0.0
        %2312 = vmatpush1.xpose.msra.mxu0 0.0
        %2313 = vmatprep.subr.mxu0 0.0
        %2314 = vmatpush1.xpose.msra.mxu0 0.0
        %2315 = vmatprep.subr.mxu0 0.0
        %2316 = vmatpush1.xpose.msra.mxu0 0.0
        %2317 = vmatprep.subr.mxu0 0.0
        %2318 = vmatpush1.xpose.msra.mxu0 0.0
        %2319 = vmatprep.subr.mxu0 0.0
        %2320 = vmatpush1.xpose.msra.mxu0 0.0
        %2321 = vmatprep.subr.mxu0 0.0
        %2322 = vmatpush1.xpose.msra.mxu0 0.0
        %2323 = vmatprep.subr.mxu0 0.0
        %2324 = vmatpush1.xpose.msra.mxu0 0.0
        %2325 = vmatprep.subr.mxu0 0.0
        %2326 = vmatpush1.xpose.msra.mxu0 0.0
        %2327 = vmatprep.subr.mxu0 0.0
        %2328 = vmatpush1.xpose.msra.mxu0 0.0
        %2329 = vmatprep.subr.mxu0 0.0
        %2330 = vmatpush1.xpose.msra.mxu0 0.0
        %2331 = vmatprep.subr.mxu0 0.0
        %2332 = vmatpush1.xpose.msra.mxu0 0.0
        %2333 = vmatprep.subr.mxu0 0.0
        %2334 = vmatpush1.xpose.msra.mxu0 0.0
        %2335 = vmatprep.subr.mxu0 0.0
        %2336 = vmatpush1.xpose.msra.mxu0 0.0
        %2337 = vmatprep.subr.mxu0 0.0
        %2338 = vmatpush1.xpose.msra.mxu0 0.0
        %2339 = vmatprep.subr.mxu0 0.0
        %2340 = vmatpush1.xpose.msra.mxu0 0.0
        %2341 = vmatprep.subr.mxu0 0.0
        %2342 = vmatpush1.xpose.msra.mxu0 0.0
        %2343 = vmatprep.subr.mxu0 0.0
        %2344 = vmatpush1.xpose.msra.mxu0 0.0
        %2345 = vmatprep.subr.mxu0 0.0
        %2346 = vmatpush1.xpose.msra.mxu0 0.0
        %2347 = vmatprep.subr.mxu0 0.0
        %2348 = vmatpush1.xpose.msra.mxu0 0.0
        %2349 = vmatprep.subr.mxu0 0.0
        %2350 = vmatpush1.xpose.msra.mxu0 0.0
        %2351 = vmatprep.subr.mxu0 0.0
        %2352 = vmatpush1.xpose.msra.mxu0 0.0
        %2353 = vmatprep.subr.mxu0 0.0
        %2354 = vmatpush1.xpose.msra.mxu0 0.0
        %2355 = vmatprep.subr.mxu0 0.0
        %2356 = vmatpush1.xpose.msra.mxu0 0.0
        %2357 = vmatprep.subr.mxu0 0.0
        %2358 = vmatpush1.xpose.msra.mxu0 0.0
        %2359 = vmatprep.subr.mxu0 0.0
        %2360 = vmatpush1.xpose.msra.mxu0 0.0
        %2361 = vmatprep.subr.mxu0 0.0
        %2362 = vmatpush1.xpose.msra.mxu0 0.0
        %2363 = vmatprep.subr.mxu0 0.0
        %2364 = vmatpush1.xpose.msra.mxu0 0.0
        %2365 = vmatprep.subr.mxu0 0.0
        %2366 = vmatpush1.xpose.msra.mxu0 0.0
        %2367 = vmatprep.subr.mxu0 0.0
        %2368 = vmatpush1.xpose.msra.mxu0 0.0
        %2369 = vmatprep.subr.mxu0 0.0
        %2370 = vmatpush1.xpose.msra.mxu0 0.0
        %2371 = vmatprep.subr.mxu0 0.0
        %2372 = vmatpush1.xpose.msra.mxu0 0.0
        %2373 = vmatprep.mubr.f32.mxu0 0.0
        %2374 = vmatmul.mubr.f32.gmra.mrb[0].mxu0 %v2304
        %v2375 = vpop.f32.mrb[0].mxu0
        %v2376 = vadd.f32 0.0, %v2375
        %v2377 = vpop.f32.mrb[0].mxu0
        %2378 = vdwg.mxu0
        %v2380 = vsel %vm555, %v696, 0
        %v2383 = vsel %vm555, %v1288, 0
        %2385 = vmatprep.subr.mxu0 0.0
        %2386 = vmatpush1.xpose.msra.mxu0 %v2383
        %2387 = vmatprep.subr.mxu0 0.0
        %2388 = vmatpush1.xpose.msra.mxu0 0.0
        %2389 = vmatprep.subr.mxu0 0.0
        %2390 = vmatpush1.xpose.msra.mxu0 0.0
        %2391 = vmatprep.subr.mxu0 0.0
        %2392 = vmatpush1.xpose.msra.mxu0 0.0
        %2393 = vmatprep.subr.mxu0 0.0
        %2394 = vmatpush1.xpose.msra.mxu0 0.0
        %2395 = vmatprep.subr.mxu0 0.0
        %2396 = vmatpush1.xpose.msra.mxu0 0.0
        %2397 = vmatprep.subr.mxu0 0.0
        %2398 = vmatpush1.xpose.msra.mxu0 0.0
        %2399 = vmatprep.subr.mxu0 0.0
        %2400 = vmatpush1.xpose.msra.mxu0 0.0
        %2401 = vmatprep.subr.mxu0 0.0
        %2402 = vmatpush1.xpose.msra.mxu0 0.0
        %2403 = vmatprep.subr.mxu0 0.0
        %2404 = vmatpush1.xpose.msra.mxu0 0.0
        %2405 = vmatprep.subr.mxu0 0.0
        %2406 = vmatpush1.xpose.msra.mxu0 0.0
        %2407 = vmatprep.subr.mxu0 0.0
        %2408 = vmatpush1.xpose.msra.mxu0 0.0
        %2409 = vmatprep.subr.mxu0 0.0
        %2410 = vmatpush1.xpose.msra.mxu0 0.0
        %2411 = vmatprep.subr.mxu0 0.0
        %2412 = vmatpush1.xpose.msra.mxu0 0.0
        %2413 = vmatprep.subr.mxu0 0.0
        %2414 = vmatpush1.xpose.msra.mxu0 0.0
        %2415 = vmatprep.subr.mxu0 0.0
        %2416 = vmatpush1.xpose.msra.mxu0 0.0
        %2417 = vmatprep.subr.mxu0 0.0
        %2418 = vmatpush1.xpose.msra.mxu0 0.0
        %2419 = vmatprep.subr.mxu0 0.0
        %2420 = vmatpush1.xpose.msra.mxu0 0.0
        %2421 = vmatprep.subr.mxu0 0.0
        %2422 = vmatpush1.xpose.msra.mxu0 0.0
        %2423 = vmatprep.subr.mxu0 0.0
        %2424 = vmatpush1.xpose.msra.mxu0 0.0
        %2425 = vmatprep.subr.mxu0 0.0
        %2426 = vmatpush1.xpose.msra.mxu0 0.0
        %2427 = vmatprep.subr.mxu0 0.0
        %2428 = vmatpush1.xpose.msra.mxu0 0.0
        %2429 = vmatprep.subr.mxu0 0.0
        %2430 = vmatpush1.xpose.msra.mxu0 0.0
        %2431 = vmatprep.subr.mxu0 0.0
        %2432 = vmatpush1.xpose.msra.mxu0 0.0
        %2433 = vmatprep.subr.mxu0 0.0
        %2434 = vmatpush1.xpose.msra.mxu0 0.0
        %2435 = vmatprep.subr.mxu0 0.0
        %2436 = vmatpush1.xpose.msra.mxu0 0.0
        %2437 = vmatprep.subr.mxu0 0.0
        %2438 = vmatpush1.xpose.msra.mxu0 0.0
        %2439 = vmatprep.subr.mxu0 0.0
        %2440 = vmatpush1.xpose.msra.mxu0 0.0
        %2441 = vmatprep.subr.mxu0 0.0
        %2442 = vmatpush1.xpose.msra.mxu0 0.0
        %2443 = vmatprep.subr.mxu0 0.0
        %2444 = vmatpush1.xpose.msra.mxu0 0.0
        %2445 = vmatprep.subr.mxu0 0.0
        %2446 = vmatpush1.xpose.msra.mxu0 0.0
        %2447 = vmatprep.subr.mxu0 0.0
        %2448 = vmatpush1.xpose.msra.mxu0 0.0
        %2449 = vmatprep.mubr.f32.mxu0 0.0
        %2450 = vmatmul.mubr.f32.gmra.mrb[0].mxu0 %v2380
        %v2451 = vpop.f32.mrb[0].mxu0
        %v2452 = vadd.f32 0.0, %v2451
        %v2453 = vpop.f32.mrb[0].mxu0
        %2454 = vdwg.mxu0
        %v2456 = vsel %vm555, %v766, 0
        %v2459 = vsel %vm555, %v1358, 0
        %2461 = vmatprep.subr.mxu0 0.0
        %2462 = vmatpush1.xpose.msra.mxu0 %v2459
        %2463 = vmatprep.subr.mxu0 0.0
        %2464 = vmatpush1.xpose.msra.mxu0 0.0
        %2465 = vmatprep.subr.mxu0 0.0
        %2466 = vmatpush1.xpose.msra.mxu0 0.0
        %2467 = vmatprep.subr.mxu0 0.0
        %2468 = vmatpush1.xpose.msra.mxu0 0.0
        %2469 = vmatprep.subr.mxu0 0.0
        %2470 = vmatpush1.xpose.msra.mxu0 0.0
        %2471 = vmatprep.subr.mxu0 0.0
        %2472 = vmatpush1.xpose.msra.mxu0 0.0
        %2473 = vmatprep.subr.mxu0 0.0
        %2474 = vmatpush1.xpose.msra.mxu0 0.0
        %2475 = vmatprep.subr.mxu0 0.0
        %2476 = vmatpush1.xpose.msra.mxu0 0.0
        %2477 = vmatprep.subr.mxu0 0.0
        %2478 = vmatpush1.xpose.msra.mxu0 0.0
        %2479 = vmatprep.subr.mxu0 0.0
        %2480 = vmatpush1.xpose.msra.mxu0 0.0
        %2481 = vmatprep.subr.mxu0 0.0
        %2482 = vmatpush1.xpose.msra.mxu0 0.0
        %2483 = vmatprep.subr.mxu0 0.0
        %2484 = vmatpush1.xpose.msra.mxu0 0.0
        %2485 = vmatprep.subr.mxu0 0.0
        %2486 = vmatpush1.xpose.msra.mxu0 0.0
        %2487 = vmatprep.subr.mxu0 0.0
        %2488 = vmatpush1.xpose.msra.mxu0 0.0
        %2489 = vmatprep.subr.mxu0 0.0
        %2490 = vmatpush1.xpose.msra.mxu0 0.0
        %2491 = vmatprep.subr.mxu0 0.0
        %2492 = vmatpush1.xpose.msra.mxu0 0.0
        %2493 = vmatprep.subr.mxu0 0.0
        %2494 = vmatpush1.xpose.msra.mxu0 0.0
        %2495 = vmatprep.subr.mxu0 0.0
        %2496 = vmatpush1.xpose.msra.mxu0 0.0
        %2497 = vmatprep.subr.mxu0 0.0
        %2498 = vmatpush1.xpose.msra.mxu0 0.0
        %2499 = vmatprep.subr.mxu0 0.0
        %2500 = vmatpush1.xpose.msra.mxu0 0.0
        %2501 = vmatprep.subr.mxu0 0.0
        %2502 = vmatpush1.xpose.msra.mxu0 0.0
        %2503 = vmatprep.subr.mxu0 0.0
        %2504 = vmatpush1.xpose.msra.mxu0 0.0
        %2505 = vmatprep.subr.mxu0 0.0
        %2506 = vmatpush1.xpose.msra.mxu0 0.0
        %2507 = vmatprep.subr.mxu0 0.0
        %2508 = vmatpush1.xpose.msra.mxu0 0.0
        %2509 = vmatprep.subr.mxu0 0.0
        %2510 = vmatpush1.xpose.msra.mxu0 0.0
        %2511 = vmatprep.subr.mxu0 0.0
        %2512 = vmatpush1.xpose.msra.mxu0 0.0
        %2513 = vmatprep.subr.mxu0 0.0
        %2514 = vmatpush1.xpose.msra.mxu0 0.0
        %2515 = vmatprep.subr.mxu0 0.0
        %2516 = vmatpush1.xpose.msra.mxu0 0.0
        %2517 = vmatprep.subr.mxu0 0.0
        %2518 = vmatpush1.xpose.msra.mxu0 0.0
        %2519 = vmatprep.subr.mxu0 0.0
        %2520 = vmatpush1.xpose.msra.mxu0 0.0
        %2521 = vmatprep.subr.mxu0 0.0
        %2522 = vmatpush1.xpose.msra.mxu0 0.0
        %2523 = vmatprep.subr.mxu0 0.0
        %2524 = vmatpush1.xpose.msra.mxu0 0.0
        %2525 = vmatprep.mubr.f32.mxu0 0.0
        %2526 = vmatmul.mubr.f32.gmra.mrb[0].mxu0 %v2456
        %v2527 = vpop.f32.mrb[0].mxu0
        %v2528 = vadd.f32 0.0, %v2527
        %v2529 = vpop.f32.mrb[0].mxu0
        %2530 = vdwg.mxu0
        %v2532 = vsel %vm555, %v836, 0
        %v2535 = vsel %vm555, %v1428, 0
        %2537 = vmatprep.subr.mxu0 0.0
        %2538 = vmatpush1.xpose.msra.mxu0 %v2535
        %2539 = vmatprep.subr.mxu0 0.0
        %2540 = vmatpush1.xpose.msra.mxu0 0.0
        %2541 = vmatprep.subr.mxu0 0.0
        %2542 = vmatpush1.xpose.msra.mxu0 0.0
        %2543 = vmatprep.subr.mxu0 0.0
        %2544 = vmatpush1.xpose.msra.mxu0 0.0
        %2545 = vmatprep.subr.mxu0 0.0
        %2546 = vmatpush1.xpose.msra.mxu0 0.0
        %2547 = vmatprep.subr.mxu0 0.0
        %2548 = vmatpush1.xpose.msra.mxu0 0.0
        %2549 = vmatprep.subr.mxu0 0.0
        %2550 = vmatpush1.xpose.msra.mxu0 0.0
        %2551 = vmatprep.subr.mxu0 0.0
        %2552 = vmatpush1.xpose.msra.mxu0 0.0
        %2553 = vmatprep.subr.mxu0 0.0
        %2554 = vmatpush1.xpose.msra.mxu0 0.0
        %2555 = vmatprep.subr.mxu0 0.0
        %2556 = vmatpush1.xpose.msra.mxu0 0.0
        %2557 = vmatprep.subr.mxu0 0.0
        %2558 = vmatpush1.xpose.msra.mxu0 0.0
        %2559 = vmatprep.subr.mxu0 0.0
        %2560 = vmatpush1.xpose.msra.mxu0 0.0
        %2561 = vmatprep.subr.mxu0 0.0
        %2562 = vmatpush1.xpose.msra.mxu0 0.0
        %2563 = vmatprep.subr.mxu0 0.0
        %2564 = vmatpush1.xpose.msra.mxu0 0.0
        %2565 = vmatprep.subr.mxu0 0.0
        %2566 = vmatpush1.xpose.msra.mxu0 0.0
        %2567 = vmatprep.subr.mxu0 0.0
        %2568 = vmatpush1.xpose.msra.mxu0 0.0
        %2569 = vmatprep.subr.mxu0 0.0
        %2570 = vmatpush1.xpose.msra.mxu0 0.0
        %2571 = vmatprep.subr.mxu0 0.0
        %2572 = vmatpush1.xpose.msra.mxu0 0.0
        %2573 = vmatprep.subr.mxu0 0.0
        %2574 = vmatpush1.xpose.msra.mxu0 0.0
        %2575 = vmatprep.subr.mxu0 0.0
        %2576 = vmatpush1.xpose.msra.mxu0 0.0
        %2577 = vmatprep.subr.mxu0 0.0
        %2578 = vmatpush1.xpose.msra.mxu0 0.0
        %2579 = vmatprep.subr.mxu0 0.0
        %2580 = vmatpush1.xpose.msra.mxu0 0.0
        %2581 = vmatprep.subr.mxu0 0.0
        %2582 = vmatpush1.xpose.msra.mxu0 0.0
        %2583 = vmatprep.subr.mxu0 0.0
        %2584 = vmatpush1.xpose.msra.mxu0 0.0
        %2585 = vmatprep.subr.mxu0 0.0
        %2586 = vmatpush1.xpose.msra.mxu0 0.0
        %2587 = vmatprep.subr.mxu0 0.0
        %2588 = vmatpush1.xpose.msra.mxu0 0.0
        %2589 = vmatprep.subr.mxu0 0.0
        %2590 = vmatpush1.xpose.msra.mxu0 0.0
        %2591 = vmatprep.subr.mxu0 0.0
        %2592 = vmatpush1.xpose.msra.mxu0 0.0
        %2593 = vmatprep.subr.mxu0 0.0
        %2594 = vmatpush1.xpose.msra.mxu0 0.0
        %2595 = vmatprep.subr.mxu0 0.0
        %2596 = vmatpush1.xpose.msra.mxu0 0.0
        %2597 = vmatprep.subr.mxu0 0.0
        %2598 = vmatpush1.xpose.msra.mxu0 0.0
        %2599 = vmatprep.subr.mxu0 0.0
        %2600 = vmatpush1.xpose.msra.mxu0 0.0
        %2601 = vmatprep.mubr.f32.mxu0 0.0
        %2602 = vmatmul.mubr.f32.gmra.mrb[0].mxu0 %v2532
        %v2603 = vpop.f32.mrb[0].mxu0
        %v2604 = vadd.f32 0.0, %v2603
        %v2605 = vpop.f32.mrb[0].mxu0
        %2606 = vdwg.mxu0
        %v2608 = vsel %vm555, %v906, 0
        %v2611 = vsel %vm555, %v1498, 0
        %2613 = vmatprep.subr.mxu0 0.0
        %2614 = vmatpush1.xpose.msra.mxu0 %v2611
        %2615 = vmatprep.subr.mxu0 0.0
        %2616 = vmatpush1.xpose.msra.mxu0 0.0
        %2617 = vmatprep.subr.mxu0 0.0
        %2618 = vmatpush1.xpose.msra.mxu0 0.0
        %2619 = vmatprep.subr.mxu0 0.0
        %2620 = vmatpush1.xpose.msra.mxu0 0.0
        %2621 = vmatprep.subr.mxu0 0.0
        %2622 = vmatpush1.xpose.msra.mxu0 0.0
        %2623 = vmatprep.subr.mxu0 0.0
        %2624 = vmatpush1.xpose.msra.mxu0 0.0
        %2625 = vmatprep.subr.mxu0 0.0
        %2626 = vmatpush1.xpose.msra.mxu0 0.0
        %2627 = vmatprep.subr.mxu0 0.0
        %2628 = vmatpush1.xpose.msra.mxu0 0.0
        %2629 = vmatprep.subr.mxu0 0.0
        %2630 = vmatpush1.xpose.msra.mxu0 0.0
        %2631 = vmatprep.subr.mxu0 0.0
        %2632 = vmatpush1.xpose.msra.mxu0 0.0
        %2633 = vmatprep.subr.mxu0 0.0
        %2634 = vmatpush1.xpose.msra.mxu0 0.0
        %2635 = vmatprep.subr.mxu0 0.0
        %2636 = vmatpush1.xpose.msra.mxu0 0.0
        %2637 = vmatprep.subr.mxu0 0.0
        %2638 = vmatpush1.xpose.msra.mxu0 0.0
        %2639 = vmatprep.subr.mxu0 0.0
        %2640 = vmatpush1.xpose.msra.mxu0 0.0
        %2641 = vmatprep.subr.mxu0 0.0
        %2642 = vmatpush1.xpose.msra.mxu0 0.0
        %2643 = vmatprep.subr.mxu0 0.0
        %2644 = vmatpush1.xpose.msra.mxu0 0.0
        %2645 = vmatprep.subr.mxu0 0.0
        %2646 = vmatpush1.xpose.msra.mxu0 0.0
        %2647 = vmatprep.subr.mxu0 0.0
        %2648 = vmatpush1.xpose.msra.mxu0 0.0
        %2649 = vmatprep.subr.mxu0 0.0
        %2650 = vmatpush1.xpose.msra.mxu0 0.0
        %2651 = vmatprep.subr.mxu0 0.0
        %2652 = vmatpush1.xpose.msra.mxu0 0.0
        %2653 = vmatprep.subr.mxu0 0.0
        %2654 = vmatpush1.xpose.msra.mxu0 0.0
        %2655 = vmatprep.subr.mxu0 0.0
        %2656 = vmatpush1.xpose.msra.mxu0 0.0
        %2657 = vmatprep.subr.mxu0 0.0
        %2658 = vmatpush1.xpose.msra.mxu0 0.0
        %2659 = vmatprep.subr.mxu0 0.0
        %2660 = vmatpush1.xpose.msra.mxu0 0.0
        %2661 = vmatprep.subr.mxu0 0.0
        %2662 = vmatpush1.xpose.msra.mxu0 0.0
        %2663 = vmatprep.subr.mxu0 0.0
        %2664 = vmatpush1.xpose.msra.mxu0 0.0
        %2665 = vmatprep.subr.mxu0 0.0
        %2666 = vmatpush1.xpose.msra.mxu0 0.0
        %2667 = vmatprep.subr.mxu0 0.0
        %2668 = vmatpush1.xpose.msra.mxu0 0.0
        %2669 = vmatprep.subr.mxu0 0.0
        %2670 = vmatpush1.xpose.msra.mxu0 0.0
        %2671 = vmatprep.subr.mxu0 0.0
        %2672 = vmatpush1.xpose.msra.mxu0 0.0
        %2673 = vmatprep.subr.mxu0 0.0
        %2674 = vmatpush1.xpose.msra.mxu0 0.0
        %2675 = vmatprep.subr.mxu0 0.0
        %2676 = vmatpush1.xpose.msra.mxu0 0.0
        %2677 = vmatprep.mubr.f32.mxu0 0.0
        %2678 = vmatmul.mubr.f32.gmra.mrb[0].mxu0 %v2608
        %v2679 = vpop.f32.mrb[0].mxu0
        %v2680 = vadd.f32 0.0, %v2679
        %v2681 = vpop.f32.mrb[0].mxu0
        %2682 = vdwg.mxu0
        %v2684 = vsel %vm555, %v976, 0
        %v2687 = vsel %vm555, %v1568, 0
        %2689 = vmatprep.subr.mxu0 0.0
        %2690 = vmatpush1.xpose.msra.mxu0 %v2687
        %2691 = vmatprep.subr.mxu0 0.0
        %2692 = vmatpush1.xpose.msra.mxu0 0.0
        %2693 = vmatprep.subr.mxu0 0.0
        %2694 = vmatpush1.xpose.msra.mxu0 0.0
        %2695 = vmatprep.subr.mxu0 0.0
        %2696 = vmatpush1.xpose.msra.mxu0 0.0
        %2697 = vmatprep.subr.mxu0 0.0
        %2698 = vmatpush1.xpose.msra.mxu0 0.0
        %2699 = vmatprep.subr.mxu0 0.0
        %2700 = vmatpush1.xpose.msra.mxu0 0.0
        %2701 = vmatprep.subr.mxu0 0.0
        %2702 = vmatpush1.xpose.msra.mxu0 0.0
        %2703 = vmatprep.subr.mxu0 0.0
        %2704 = vmatpush1.xpose.msra.mxu0 0.0
        %2705 = vmatprep.subr.mxu0 0.0
        %2706 = vmatpush1.xpose.msra.mxu0 0.0
        %2707 = vmatprep.subr.mxu0 0.0
        %2708 = vmatpush1.xpose.msra.mxu0 0.0
        %2709 = vmatprep.subr.mxu0 0.0
        %2710 = vmatpush1.xpose.msra.mxu0 0.0
        %2711 = vmatprep.subr.mxu0 0.0
        %2712 = vmatpush1.xpose.msra.mxu0 0.0
        %2713 = vmatprep.subr.mxu0 0.0
        %2714 = vmatpush1.xpose.msra.mxu0 0.0
        %2715 = vmatprep.subr.mxu0 0.0
        %2716 = vmatpush1.xpose.msra.mxu0 0.0
        %2717 = vmatprep.subr.mxu0 0.0
        %2718 = vmatpush1.xpose.msra.mxu0 0.0
        %2719 = vmatprep.subr.mxu0 0.0
        %2720 = vmatpush1.xpose.msra.mxu0 0.0
        %2721 = vmatprep.subr.mxu0 0.0
        %2722 = vmatpush1.xpose.msra.mxu0 0.0
        %2723 = vmatprep.subr.mxu0 0.0
        %2724 = vmatpush1.xpose.msra.mxu0 0.0
        %2725 = vmatprep.subr.mxu0 0.0
        %2726 = vmatpush1.xpose.msra.mxu0 0.0
        %2727 = vmatprep.subr.mxu0 0.0
        %2728 = vmatpush1.xpose.msra.mxu0 0.0
        %2729 = vmatprep.subr.mxu0 0.0
        %2730 = vmatpush1.xpose.msra.mxu0 0.0
        %2731 = vmatprep.subr.mxu0 0.0
        %2732 = vmatpush1.xpose.msra.mxu0 0.0
        %2733 = vmatprep.subr.mxu0 0.0
        %2734 = vmatpush1.xpose.msra.mxu0 0.0
        %2735 = vmatprep.subr.mxu0 0.0
        %2736 = vmatpush1.xpose.msra.mxu0 0.0
        %2737 = vmatprep.subr.mxu0 0.0
        %2738 = vmatpush1.xpose.msra.mxu0 0.0
        %2739 = vmatprep.subr.mxu0 0.0
        %2740 = vmatpush1.xpose.msra.mxu0 0.0
        %2741 = vmatprep.subr.mxu0 0.0
        %2742 = vmatpush1.xpose.msra.mxu0 0.0
        %2743 = vmatprep.subr.mxu0 0.0
        %2744 = vmatpush1.xpose.msra.mxu0 0.0
        %2745 = vmatprep.subr.mxu0 0.0
        %2746 = vmatpush1.xpose.msra.mxu0 0.0
        %2747 = vmatprep.subr.mxu0 0.0
        %2748 = vmatpush1.xpose.msra.mxu0 0.0
        %2749 = vmatprep.subr.mxu0 0.0
        %2750 = vmatpush1.xpose.msra.mxu0 0.0
        %2751 = vmatprep.subr.mxu0 0.0
        %2752 = vmatpush1.xpose.msra.mxu0 0.0
        %2753 = vmatprep.mubr.f32.mxu0 0.0
        %2754 = vmatmul.mubr.f32.gmra.mrb[0].mxu0 %v2684
        %v2755 = vpop.f32.mrb[0].mxu0
        %v2756 = vadd.f32 0.0, %v2755
        %v2757 = vpop.f32.mrb[0].mxu0
        %2758 = vdwg.mxu0
        %v2760 = vsel %vm555, %v1046, 0
        %v2763 = vsel %vm555, %v1638, 0
        %2765 = vmatprep.subr.mxu0 0.0
        %2766 = vmatpush1.xpose.msra.mxu0 %v2763
        %2767 = vmatprep.subr.mxu0 0.0
        %2768 = vmatpush1.xpose.msra.mxu0 0.0
        %2769 = vmatprep.subr.mxu0 0.0
        %2770 = vmatpush1.xpose.msra.mxu0 0.0
        %2771 = vmatprep.subr.mxu0 0.0
        %2772 = vmatpush1.xpose.msra.mxu0 0.0
        %2773 = vmatprep.subr.mxu0 0.0
        %2774 = vmatpush1.xpose.msra.mxu0 0.0
        %2775 = vmatprep.subr.mxu0 0.0
        %2776 = vmatpush1.xpose.msra.mxu0 0.0
        %2777 = vmatprep.subr.mxu0 0.0
        %2778 = vmatpush1.xpose.msra.mxu0 0.0
        %2779 = vmatprep.subr.mxu0 0.0
        %2780 = vmatpush1.xpose.msra.mxu0 0.0
        %2781 = vmatprep.subr.mxu0 0.0
        %2782 = vmatpush1.xpose.msra.mxu0 0.0
        %2783 = vmatprep.subr.mxu0 0.0
        %2784 = vmatpush1.xpose.msra.mxu0 0.0
        %2785 = vmatprep.subr.mxu0 0.0
        %2786 = vmatpush1.xpose.msra.mxu0 0.0
        %2787 = vmatprep.subr.mxu0 0.0
        %2788 = vmatpush1.xpose.msra.mxu0 0.0
        %2789 = vmatprep.subr.mxu0 0.0
        %2790 = vmatpush1.xpose.msra.mxu0 0.0
        %2791 = vmatprep.subr.mxu0 0.0
        %2792 = vmatpush1.xpose.msra.mxu0 0.0
        %2793 = vmatprep.subr.mxu0 0.0
        %2794 = vmatpush1.xpose.msra.mxu0 0.0
        %2795 = vmatprep.subr.mxu0 0.0
        %2796 = vmatpush1.xpose.msra.mxu0 0.0
        %2797 = vmatprep.subr.mxu0 0.0
        %2798 = vmatpush1.xpose.msra.mxu0 0.0
        %2799 = vmatprep.subr.mxu0 0.0
        %2800 = vmatpush1.xpose.msra.mxu0 0.0
        %2801 = vmatprep.subr.mxu0 0.0
        %2802 = vmatpush1.xpose.msra.mxu0 0.0
        %2803 = vmatprep.subr.mxu0 0.0
        %2804 = vmatpush1.xpose.msra.mxu0 0.0
        %2805 = vmatprep.subr.mxu0 0.0
        %2806 = vmatpush1.xpose.msra.mxu0 0.0
        %2807 = vmatprep.subr.mxu0 0.0
        %2808 = vmatpush1.xpose.msra.mxu0 0.0
        %2809 = vmatprep.subr.mxu0 0.0
        %2810 = vmatpush1.xpose.msra.mxu0 0.0
        %2811 = vmatprep.subr.mxu0 0.0
        %2812 = vmatpush1.xpose.msra.mxu0 0.0
        %2813 = vmatprep.subr.mxu0 0.0
        %2814 = vmatpush1.xpose.msra.mxu0 0.0
        %2815 = vmatprep.subr.mxu0 0.0
        %2816 = vmatpush1.xpose.msra.mxu0 0.0
        %2817 = vmatprep.subr.mxu0 0.0
        %2818 = vmatpush1.xpose.msra.mxu0 0.0
        %2819 = vmatprep.subr.mxu0 0.0
        %2820 = vmatpush1.xpose.msra.mxu0 0.0
        %2821 = vmatprep.subr.mxu0 0.0
        %2822 = vmatpush1.xpose.msra.mxu0 0.0
        %2823 = vmatprep.subr.mxu0 0.0
        %2824 = vmatpush1.xpose.msra.mxu0 0.0
        %2825 = vmatprep.subr.mxu0 0.0
        %2826 = vmatpush1.xpose.msra.mxu0 0.0
        %2827 = vmatprep.subr.mxu0 0.0
        %2828 = vmatpush1.xpose.msra.mxu0 0.0
        %2829 = vmatprep.mubr.f32.mxu0 0.0
        %2830 = vmatmul.mubr.f32.gmra.mrb[0].mxu0 %v2760
        %v2831 = vpop.f32.mrb[0].mxu0
        %v2832 = vadd.f32 0.0, %v2831
        %v2833 = vpop.f32.mrb[0].mxu0
        %2834 = vdwg.mxu0
        %v2836 = vsel %vm555, %v1116, 0
        %v2839 = vsel %vm555, %v1708, 0
        %2841 = vmatprep.subr.mxu0 0.0
        %2842 = vmatpush1.xpose.msra.mxu0 %v2839
        %2843 = vmatprep.subr.mxu0 0.0
        %2844 = vmatpush1.xpose.msra.mxu0 0.0
        %2845 = vmatprep.subr.mxu0 0.0
        %2846 = vmatpush1.xpose.msra.mxu0 0.0
        %2847 = vmatprep.subr.mxu0 0.0
        %2848 = vmatpush1.xpose.msra.mxu0 0.0
        %2849 = vmatprep.subr.mxu0 0.0
        %2850 = vmatpush1.xpose.msra.mxu0 0.0
        %2851 = vmatprep.subr.mxu0 0.0
        %2852 = vmatpush1.xpose.msra.mxu0 0.0
        %2853 = vmatprep.subr.mxu0 0.0
        %2854 = vmatpush1.xpose.msra.mxu0 0.0
        %2855 = vmatprep.subr.mxu0 0.0
        %2856 = vmatpush1.xpose.msra.mxu0 0.0
        %2857 = vmatprep.subr.mxu0 0.0
        %2858 = vmatpush1.xpose.msra.mxu0 0.0
        %2859 = vmatprep.subr.mxu0 0.0
        %2860 = vmatpush1.xpose.msra.mxu0 0.0
        %2861 = vmatprep.subr.mxu0 0.0
        %2862 = vmatpush1.xpose.msra.mxu0 0.0
        %2863 = vmatprep.subr.mxu0 0.0
        %2864 = vmatpush1.xpose.msra.mxu0 0.0
        %2865 = vmatprep.subr.mxu0 0.0
        %2866 = vmatpush1.xpose.msra.mxu0 0.0
        %2867 = vmatprep.subr.mxu0 0.0
        %2868 = vmatpush1.xpose.msra.mxu0 0.0
        %2869 = vmatprep.subr.mxu0 0.0
        %2870 = vmatpush1.xpose.msra.mxu0 0.0
        %2871 = vmatprep.subr.mxu0 0.0
        %2872 = vmatpush1.xpose.msra.mxu0 0.0
        %2873 = vmatprep.subr.mxu0 0.0
        %2874 = vmatpush1.xpose.msra.mxu0 0.0
        %2875 = vmatprep.subr.mxu0 0.0
        %2876 = vmatpush1.xpose.msra.mxu0 0.0
        %2877 = vmatprep.subr.mxu0 0.0
        %2878 = vmatpush1.xpose.msra.mxu0 0.0
        %2879 = vmatprep.subr.mxu0 0.0
        %2880 = vmatpush1.xpose.msra.mxu0 0.0
        %2881 = vmatprep.subr.mxu0 0.0
        %2882 = vmatpush1.xpose.msra.mxu0 0.0
        %2883 = vmatprep.subr.mxu0 0.0
        %2884 = vmatpush1.xpose.msra.mxu0 0.0
        %2885 = vmatprep.subr.mxu0 0.0
        %2886 = vmatpush1.xpose.msra.mxu0 0.0
        %2887 = vmatprep.subr.mxu0 0.0
        %2888 = vmatpush1.xpose.msra.mxu0 0.0
        %2889 = vmatprep.subr.mxu0 0.0
        %2890 = vmatpush1.xpose.msra.mxu0 0.0
        %2891 = vmatprep.subr.mxu0 0.0
        %2892 = vmatpush1.xpose.msra.mxu0 0.0
        %2893 = vmatprep.subr.mxu0 0.0
        %2894 = vmatpush1.xpose.msra.mxu0 0.0
        %2895 = vmatprep.subr.mxu0 0.0
        %2896 = vmatpush1.xpose.msra.mxu0 0.0
        %2897 = vmatprep.subr.mxu0 0.0
        %2898 = vmatpush1.xpose.msra.mxu0 0.0
        %2899 = vmatprep.subr.mxu0 0.0
        %2900 = vmatpush1.xpose.msra.mxu0 0.0
        %2901 = vmatprep.subr.mxu0 0.0
        %2902 = vmatpush1.xpose.msra.mxu0 0.0
        %2903 = vmatprep.subr.mxu0 0.0
        %2904 = vmatpush1.xpose.msra.mxu0 0.0
        %2905 = vmatprep.mubr.f32.mxu0 0.0
        %2906 = vmatmul.mubr.f32.gmra.mrb[0].mxu0 %v2836
        %v2907 = vpop.f32.mrb[0].mxu0
        %v2908 = vadd.f32 0.0, %v2907
        %v2909 = vpop.f32.mrb[0].mxu0
        %2910 = vdwg.mxu0
        %vm2911 = vcmask 64512
        %v2912 = vsel %vm2911, %v2376, -inf
        %2913 = vmax.xlane.f32.xlu0 %v2912
        %v2914 = vpop.xlane.xlu0 %2913
        %v2915 = vsel %vm2911, %v2452, -inf
        %2916 = vmax.xlane.f32.xlu0 %v2915
        %v2917 = vpop.xlane.xlu0 %2916
        %v2918 = vsel %vm2911, %v2528, -inf
        %2919 = vmax.xlane.f32.xlu0 %v2918
        %v2920 = vpop.xlane.xlu0 %2919
        %v2921 = vsel %vm2911, %v2604, -inf
        %2922 = vmax.xlane.f32.xlu0 %v2921
        %v2923 = vpop.xlane.xlu0 %2922
        %v2924 = vsel %vm2911, %v2680, -inf
        %2925 = vmax.xlane.f32.xlu0 %v2924
        %v2926 = vpop.xlane.xlu0 %2925
        %v2927 = vsel %vm2911, %v2756, -inf
        %2928 = vmax.xlane.f32.xlu0 %v2927
        %v2929 = vpop.xlane.xlu0 %2928
        %v2930 = vsel %vm2911, %v2832, -inf
        %2931 = vmax.xlane.f32.xlu0 %v2930
        %v2932 = vpop.xlane.xlu0 %2931
        %v2933 = vsel %vm2911, %v2908, -inf
        %2934 = vmax.xlane.f32.xlu0 %v2933
        %v2935 = vpop.xlane.xlu0 %2934
        %v2936 = vsub.f32 %v2376, %v2914
        %v2937 = vsub.f32 %v2452, %v2917
        %v2938 = vsub.f32 %v2528, %v2920
        %v2939 = vsub.f32 %v2604, %v2923
        %v2940 = vsub.f32 %v2680, %v2926
        %v2941 = vsub.f32 %v2756, %v2929
        %v2942 = vsub.f32 %v2832, %v2932
        %v2943 = vsub.f32 %v2908, %v2935
        %v2944 = vmul.f32 %v2936, 1.442695
        %v2945 = vpow.pop %v2944
        %v2946 = vmul.f32 %v2937, 1.442695
        %v2947 = vpow.pop %v2946
        %v2948 = vmul.f32 %v2938, 1.442695
        %v2949 = vpow.pop %v2948
        %v2950 = vmul.f32 %v2939, 1.442695
        %v2951 = vpow.pop %v2950
        %v2952 = vmul.f32 %v2940, 1.442695
        %v2953 = vpow.pop %v2952
        %v2954 = vmul.f32 %v2941, 1.442695
        %v2955 = vpow.pop %v2954
        %v2956 = vmul.f32 %v2942, 1.442695
        %v2957 = vpow.pop %v2956
        %v2958 = vmul.f32 %v2943, 1.442695
        %v2959 = vpow.pop %v2958
        %v2960 = vsel %vm2911, %v2945, 0.0
        %2961 = vadd.xlane.f32.xlu0 %v2960
        %v2962 = vpop.xlane.xlu0 %2961
        %v2963 = vsel %vm2911, %v2947, 0.0
        %2964 = vadd.xlane.f32.xlu0 %v2963
        %v2965 = vpop.xlane.xlu0 %2964
        %v2966 = vsel %vm2911, %v2949, 0.0
        %2967 = vadd.xlane.f32.xlu0 %v2966
        %v2968 = vpop.xlane.xlu0 %2967
        %v2969 = vsel %vm2911, %v2951, 0.0
        %2970 = vadd.xlane.f32.xlu0 %v2969
        %v2971 = vpop.xlane.xlu0 %2970
        %v2972 = vsel %vm2911, %v2953, 0.0
        %2973 = vadd.xlane.f32.xlu0 %v2972
        %v2974 = vpop.xlane.xlu0 %2973
        %v2975 = vsel %vm2911, %v2955, 0.0
        %2976 = vadd.xlane.f32.xlu0 %v2975
        %v2977 = vpop.xlane.xlu0 %2976
        %v2978 = vsel %vm2911, %v2957, 0.0
        %2979 = vadd.xlane.f32.xlu0 %v2978
        %v2980 = vpop.xlane.xlu0 %2979
        %v2981 = vsel %vm2911, %v2959, 0.0
        %2982 = vadd.xlane.f32.xlu0 %v2981
        %v2983 = vpop.xlane.xlu0 %2982
        %v2984 = vrcp.pop %v2962
        %v2985 = vrcp.pop %v2965
        %v2986 = vrcp.pop %v2968
        %v2987 = vrcp.pop %v2971
        %v2988 = vrcp.pop %v2974
        %v2989 = vrcp.pop %v2977
        %v2990 = vrcp.pop %v2980
        %v2991 = vrcp.pop %v2983
        %v2992 = vmul.f32 %v2945, %v2984
        %v2993 = vmul.f32 %v2947, %v2985
        %v2994 = vmul.f32 %v2949, %v2986
        %v2995 = vmul.f32 %v2951, %v2987
        %v2996 = vmul.f32 %v2953, %v2988
        %v2997 = vmul.f32 %v2955, %v2989
        %v2998 = vmul.f32 %v2957, %v2990
        %v2999 = vmul.f32 %v2959, %v2991
        %v3001 = vsel %vm2911, %v2992, 0
        %3003 = vmatprep.subr.mxu0 0.0
        %3004 = vmatpush1.msra.mxu0 %v1810
        %3005 = vmatprep.subr.mxu0 0.0
        %3006 = vmatpush1.msra.mxu0 0.0
        %3007 = vmatprep.subr.mxu0 0.0
        %3008 = vmatpush1.msra.mxu0 0.0
        %3009 = vmatprep.subr.mxu0 0.0
        %3010 = vmatpush1.msra.mxu0 0.0
        %3011 = vmatprep.subr.mxu0 0.0
        %3012 = vmatpush1.msra.mxu0 0.0
        %3013 = vmatprep.subr.mxu0 0.0
        %3014 = vmatpush1.msra.mxu0 0.0
        %3015 = vmatprep.subr.mxu0 0.0
        %3016 = vmatpush1.msra.mxu0 0.0
        %3017 = vmatprep.subr.mxu0 0.0
        %3018 = vmatpush1.msra.mxu0 0.0
        %3019 = vmatprep.subr.mxu0 0.0
        %3020 = vmatpush1.msra.mxu0 0.0
        %3021 = vmatprep.subr.mxu0 0.0
        %3022 = vmatpush1.msra.mxu0 0.0
        %3023 = vmatprep.subr.mxu0 0.0
        %3024 = vmatpush1.msra.mxu0 0.0
        %3025 = vmatprep.subr.mxu0 0.0
        %3026 = vmatpush1.msra.mxu0 0.0
        %3027 = vmatprep.subr.mxu0 0.0
        %3028 = vmatpush1.msra.mxu0 0.0
        %3029 = vmatprep.subr.mxu0 0.0
        %3030 = vmatpush1.msra.mxu0 0.0
        %3031 = vmatprep.subr.mxu0 0.0
        %3032 = vmatpush1.msra.mxu0 0.0
        %3033 = vmatprep.subr.mxu0 0.0
        %3034 = vmatpush1.msra.mxu0 0.0
        %3035 = vmatprep.subr.mxu0 0.0
        %3036 = vmatpush1.msra.mxu0 0.0
        %3037 = vmatprep.subr.mxu0 0.0
        %3038 = vmatpush1.msra.mxu0 0.0
        %3039 = vmatprep.subr.mxu0 0.0
        %3040 = vmatpush1.msra.mxu0 0.0
        %3041 = vmatprep.subr.mxu0 0.0
        %3042 = vmatpush1.msra.mxu0 0.0
        %3043 = vmatprep.subr.mxu0 0.0
        %3044 = vmatpush1.msra.mxu0 0.0
        %3045 = vmatprep.subr.mxu0 0.0
        %3046 = vmatpush1.msra.mxu0 0.0
        %3047 = vmatprep.subr.mxu0 0.0
        %3048 = vmatpush1.msra.mxu0 0.0
        %3049 = vmatprep.subr.mxu0 0.0
        %3050 = vmatpush1.msra.mxu0 0.0
        %3051 = vmatprep.subr.mxu0 0.0
        %3052 = vmatpush1.msra.mxu0 0.0
        %3053 = vmatprep.subr.mxu0 0.0
        %3054 = vmatpush1.msra.mxu0 0.0
        %3055 = vmatprep.subr.mxu0 0.0
        %3056 = vmatpush1.msra.mxu0 0.0
        %3057 = vmatprep.subr.mxu0 0.0
        %3058 = vmatpush1.msra.mxu0 0.0
        %3059 = vmatprep.subr.mxu0 0.0
        %3060 = vmatpush1.msra.mxu0 0.0
        %3061 = vmatprep.subr.mxu0 0.0
        %3062 = vmatpush1.msra.mxu0 0.0
        %3063 = vmatprep.subr.mxu0 0.0
        %3064 = vmatpush1.msra.mxu0 0.0
        %3065 = vmatprep.subr.mxu0 0.0
        %3066 = vmatpush1.msra.mxu0 0.0
        %3067 = vmatprep.mubr.f32.mxu0 0.0
        %3068 = vmatmul.mubr.f32.gmra.mrb[0].mxu0 %v3001
        %v3069 = vpop.f32.mrb[0].mxu0
        %v3070 = vadd.f32 0.0, %v3069
        %v3071 = vpop.f32.mrb[0].mxu0
        %3072 = vdwg.mxu0
        %v3074 = vsel %vm2911, %v2993, 0
        %3076 = vmatprep.subr.mxu0 0.0
        %3077 = vmatpush1.msra.mxu0 %v1880
        %3078 = vmatprep.subr.mxu0 0.0
        %3079 = vmatpush1.msra.mxu0 0.0
        %3080 = vmatprep.subr.mxu0 0.0
        %3081 = vmatpush1.msra.mxu0 0.0
        %3082 = vmatprep.subr.mxu0 0.0
        %3083 = vmatpush1.msra.mxu0 0.0
        %3084 = vmatprep.subr.mxu0 0.0
        %3085 = vmatpush1.msra.mxu0 0.0
        %3086 = vmatprep.subr.mxu0 0.0
        %3087 = vmatpush1.msra.mxu0 0.0
        %3088 = vmatprep.subr.mxu0 0.0
        %3089 = vmatpush1.msra.mxu0 0.0
        %3090 = vmatprep.subr.mxu0 0.0
        %3091 = vmatpush1.msra.mxu0 0.0
        %3092 = vmatprep.subr.mxu0 0.0
        %3093 = vmatpush1.msra.mxu0 0.0
        %3094 = vmatprep.subr.mxu0 0.0
        %3095 = vmatpush1.msra.mxu0 0.0
        %3096 = vmatprep.subr.mxu0 0.0
        %3097 = vmatpush1.msra.mxu0 0.0
        %3098 = vmatprep.subr.mxu0 0.0
        %3099 = vmatpush1.msra.mxu0 0.0
        %3100 = vmatprep.subr.mxu0 0.0
        %3101 = vmatpush1.msra.mxu0 0.0
        %3102 = vmatprep.subr.mxu0 0.0
        %3103 = vmatpush1.msra.mxu0 0.0
        %3104 = vmatprep.subr.mxu0 0.0
        %3105 = vmatpush1.msra.mxu0 0.0
        %3106 = vmatprep.subr.mxu0 0.0
        %3107 = vmatpush1.msra.mxu0 0.0
        %3108 = vmatprep.subr.mxu0 0.0
        %3109 = vmatpush1.msra.mxu0 0.0
        %3110 = vmatprep.subr.mxu0 0.0
        %3111 = vmatpush1.msra.mxu0 0.0
        %3112 = vmatprep.subr.mxu0 0.0
        %3113 = vmatpush1.msra.mxu0 0.0
        %3114 = vmatprep.subr.mxu0 0.0
        %3115 = vmatpush1.msra.mxu0 0.0
        %3116 = vmatprep.subr.mxu0 0.0
        %3117 = vmatpush1.msra.mxu0 0.0
        %3118 = vmatprep.subr.mxu0 0.0
        %3119 = vmatpush1.msra.mxu0 0.0
        %3120 = vmatprep.subr.mxu0 0.0
        %3121 = vmatpush1.msra.mxu0 0.0
        %3122 = vmatprep.subr.mxu0 0.0
        %3123 = vmatpush1.msra.mxu0 0.0
        %3124 = vmatprep.subr.mxu0 0.0
        %3125 = vmatpush1.msra.mxu0 0.0
        %3126 = vmatprep.subr.mxu0 0.0
        %3127 = vmatpush1.msra.mxu0 0.0
        %3128 = vmatprep.subr.mxu0 0.0
        %3129 = vmatpush1.msra.mxu0 0.0
        %3130 = vmatprep.subr.mxu0 0.0
        %3131 = vmatpush1.msra.mxu0 0.0
        %3132 = vmatprep.subr.mxu0 0.0
        %3133 = vmatpush1.msra.mxu0 0.0
        %3134 = vmatprep.subr.mxu0 0.0
        %3135 = vmatpush1.msra.mxu0 0.0
        %3136 = vmatprep.subr.mxu0 0.0
        %3137 = vmatpush1.msra.mxu0 0.0
        %3138 = vmatprep.subr.mxu0 0.0
        %3139 = vmatpush1.msra.mxu0 0.0
        %3140 = vmatprep.mubr.f32.mxu0 0.0
        %3141 = vmatmul.mubr.f32.gmra.mrb[0].mxu0 %v3074
        %v3142 = vpop.f32.mrb[0].mxu0
        %v3143 = vadd.f32 0.0, %v3142
        %v3144 = vpop.f32.mrb[0].mxu0
        %3145 = vdwg.mxu0
        %v3147 = vsel %vm2911, %v2994, 0
        %3149 = vmatprep.subr.mxu0 0.0
        %3150 = vmatpush1.msra.mxu0 %v1950
        %3151 = vmatprep.subr.mxu0 0.0
        %3152 = vmatpush1.msra.mxu0 0.0
        %3153 = vmatprep.subr.mxu0 0.0
        %3154 = vmatpush1.msra.mxu0 0.0
        %3155 = vmatprep.subr.mxu0 0.0
        %3156 = vmatpush1.msra.mxu0 0.0
        %3157 = vmatprep.subr.mxu0 0.0
        %3158 = vmatpush1.msra.mxu0 0.0
        %3159 = vmatprep.subr.mxu0 0.0
        %3160 = vmatpush1.msra.mxu0 0.0
        %3161 = vmatprep.subr.mxu0 0.0
        %3162 = vmatpush1.msra.mxu0 0.0
        %3163 = vmatprep.subr.mxu0 0.0
        %3164 = vmatpush1.msra.mxu0 0.0
        %3165 = vmatprep.subr.mxu0 0.0
        %3166 = vmatpush1.msra.mxu0 0.0
        %3167 = vmatprep.subr.mxu0 0.0
        %3168 = vmatpush1.msra.mxu0 0.0
        %3169 = vmatprep.subr.mxu0 0.0
        %3170 = vmatpush1.msra.mxu0 0.0
        %3171 = vmatprep.subr.mxu0 0.0
        %3172 = vmatpush1.msra.mxu0 0.0
        %3173 = vmatprep.subr.mxu0 0.0
        %3174 = vmatpush1.msra.mxu0 0.0
        %3175 = vmatprep.subr.mxu0 0.0
        %3176 = vmatpush1.msra.mxu0 0.0
        %3177 = vmatprep.subr.mxu0 0.0
        %3178 = vmatpush1.msra.mxu0 0.0
        %3179 = vmatprep.subr.mxu0 0.0
        %3180 = vmatpush1.msra.mxu0 0.0
        %3181 = vmatprep.subr.mxu0 0.0
        %3182 = vmatpush1.msra.mxu0 0.0
        %3183 = vmatprep.subr.mxu0 0.0
        %3184 = vmatpush1.msra.mxu0 0.0
        %3185 = vmatprep.subr.mxu0 0.0
        %3186 = vmatpush1.msra.mxu0 0.0
        %3187 = vmatprep.subr.mxu0 0.0
        %3188 = vmatpush1.msra.mxu0 0.0
        %3189 = vmatprep.subr.mxu0 0.0
        %3190 = vmatpush1.msra.mxu0 0.0
        %3191 = vmatprep.subr.mxu0 0.0
        %3192 = vmatpush1.msra.mxu0 0.0
        %3193 = vmatprep.subr.mxu0 0.0
        %3194 = vmatpush1.msra.mxu0 0.0
        %3195 = vmatprep.subr.mxu0 0.0
        %3196 = vmatpush1.msra.mxu0 0.0
        %3197 = vmatprep.subr.mxu0 0.0
        %3198 = vmatpush1.msra.mxu0 0.0
        %3199 = vmatprep.subr.mxu0 0.0
        %3200 = vmatpush1.msra.mxu0 0.0
        %3201 = vmatprep.subr.mxu0 0.0
        %3202 = vmatpush1.msra.mxu0 0.0
        %3203 = vmatprep.subr.mxu0 0.0
        %3204 = vmatpush1.msra.mxu0 0.0
        %3205 = vmatprep.subr.mxu0 0.0
        %3206 = vmatpush1.msra.mxu0 0.0
        %3207 = vmatprep.subr.mxu0 0.0
        %3208 = vmatpush1.msra.mxu0 0.0
        %3209 = vmatprep.subr.mxu0 0.0
        %3210 = vmatpush1.msra.mxu0 0.0
        %3211 = vmatprep.subr.mxu0 0.0
        %3212 = vmatpush1.msra.mxu0 0.0
        %3213 = vmatprep.mubr.f32.mxu0 0.0
        %3214 = vmatmul.mubr.f32.gmra.mrb[0].mxu0 %v3147
        %v3215 = vpop.f32.mrb[0].mxu0
        %v3216 = vadd.f32 0.0, %v3215
        %v3217 = vpop.f32.mrb[0].mxu0
        %3218 = vdwg.mxu0
        %v3220 = vsel %vm2911, %v2995, 0
        %3222 = vmatprep.subr.mxu0 0.0
        %3223 = vmatpush1.msra.mxu0 %v2020
        %3224 = vmatprep.subr.mxu0 0.0
        %3225 = vmatpush1.msra.mxu0 0.0
        %3226 = vmatprep.subr.mxu0 0.0
        %3227 = vmatpush1.msra.mxu0 0.0
        %3228 = vmatprep.subr.mxu0 0.0
        %3229 = vmatpush1.msra.mxu0 0.0
        %3230 = vmatprep.subr.mxu0 0.0
        %3231 = vmatpush1.msra.mxu0 0.0
        %3232 = vmatprep.subr.mxu0 0.0
        %3233 = vmatpush1.msra.mxu0 0.0
        %3234 = vmatprep.subr.mxu0 0.0
        %3235 = vmatpush1.msra.mxu0 0.0
        %3236 = vmatprep.subr.mxu0 0.0
        %3237 = vmatpush1.msra.mxu0 0.0
        %3238 = vmatprep.subr.mxu0 0.0
        %3239 = vmatpush1.msra.mxu0 0.0
        %3240 = vmatprep.subr.mxu0 0.0
        %3241 = vmatpush1.msra.mxu0 0.0
        %3242 = vmatprep.subr.mxu0 0.0
        %3243 = vmatpush1.msra.mxu0 0.0
        %3244 = vmatprep.subr.mxu0 0.0
        %3245 = vmatpush1.msra.mxu0 0.0
        %3246 = vmatprep.subr.mxu0 0.0
        %3247 = vmatpush1.msra.mxu0 0.0
        %3248 = vmatprep.subr.mxu0 0.0
        %3249 = vmatpush1.msra.mxu0 0.0
        %3250 = vmatprep.subr.mxu0 0.0
        %3251 = vmatpush1.msra.mxu0 0.0
        %3252 = vmatprep.subr.mxu0 0.0
        %3253 = vmatpush1.msra.mxu0 0.0
        %3254 = vmatprep.subr.mxu0 0.0
        %3255 = vmatpush1.msra.mxu0 0.0
        %3256 = vmatprep.subr.mxu0 0.0
        %3257 = vmatpush1.msra.mxu0 0.0
        %3258 = vmatprep.subr.mxu0 0.0
        %3259 = vmatpush1.msra.mxu0 0.0
        %3260 = vmatprep.subr.mxu0 0.0
        %3261 = vmatpush1.msra.mxu0 0.0
        %3262 = vmatprep.subr.mxu0 0.0
        %3263 = vmatpush1.msra.mxu0 0.0
        %3264 = vmatprep.subr.mxu0 0.0
        %3265 = vmatpush1.msra.mxu0 0.0
        %3266 = vmatprep.subr.mxu0 0.0
        %3267 = vmatpush1.msra.mxu0 0.0
        %3268 = vmatprep.subr.mxu0 0.0
        %3269 = vmatpush1.msra.mxu0 0.0
        %3270 = vmatprep.subr.mxu0 0.0
        %3271 = vmatpush1.msra.mxu0 0.0
        %3272 = vmatprep.subr.mxu0 0.0
        %3273 = vmatpush1.msra.mxu0 0.0
        %3274 = vmatprep.subr.mxu0 0.0
        %3275 = vmatpush1.msra.mxu0 0.0
        %3276 = vmatprep.subr.mxu0 0.0
        %3277 = vmatpush1.msra.mxu0 0.0
        %3278 = vmatprep.subr.mxu0 0.0
        %3279 = vmatpush1.msra.mxu0 0.0
        %3280 = vmatprep.subr.mxu0 0.0
        %3281 = vmatpush1.msra.mxu0 0.0
        %3282 = vmatprep.subr.mxu0 0.0
        %3283 = vmatpush1.msra.mxu0 0.0
        %3284 = vmatprep.subr.mxu0 0.0
        %3285 = vmatpush1.msra.mxu0 0.0
        %3286 = vmatprep.mubr.f32.mxu0 0.0
        %3287 = vmatmul.mubr.f32.gmra.mrb[0].mxu0 %v3220
        %v3288 = vpop.f32.mrb[0].mxu0
        %v3289 = vadd.f32 0.0, %v3288
        %v3290 = vpop.f32.mrb[0].mxu0
        %3291 = vdwg.mxu0
        %v3293 = vsel %vm2911, %v2996, 0
        %3295 = vmatprep.subr.mxu0 0.0
        %3296 = vmatpush1.msra.mxu0 %v2090
        %3297 = vmatprep.subr.mxu0 0.0
        %3298 = vmatpush1.msra.mxu0 0.0
        %3299 = vmatprep.subr.mxu0 0.0
        %3300 = vmatpush1.msra.mxu0 0.0
        %3301 = vmatprep.subr.mxu0 0.0
        %3302 = vmatpush1.msra.mxu0 0.0
        %3303 = vmatprep.subr.mxu0 0.0
        %3304 = vmatpush1.msra.mxu0 0.0
        %3305 = vmatprep.subr.mxu0 0.0
        %3306 = vmatpush1.msra.mxu0 0.0
        %3307 = vmatprep.subr.mxu0 0.0
        %3308 = vmatpush1.msra.mxu0 0.0
        %3309 = vmatprep.subr.mxu0 0.0
        %3310 = vmatpush1.msra.mxu0 0.0
        %3311 = vmatprep.subr.mxu0 0.0
        %3312 = vmatpush1.msra.mxu0 0.0
        %3313 = vmatprep.subr.mxu0 0.0
        %3314 = vmatpush1.msra.mxu0 0.0
        %3315 = vmatprep.subr.mxu0 0.0
        %3316 = vmatpush1.msra.mxu0 0.0
        %3317 = vmatprep.subr.mxu0 0.0
        %3318 = vmatpush1.msra.mxu0 0.0
        %3319 = vmatprep.subr.mxu0 0.0
        %3320 = vmatpush1.msra.mxu0 0.0
        %3321 = vmatprep.subr.mxu0 0.0
        %3322 = vmatpush1.msra.mxu0 0.0
        %3323 = vmatprep.subr.mxu0 0.0
        %3324 = vmatpush1.msra.mxu0 0.0
        %3325 = vmatprep.subr.mxu0 0.0
        %3326 = vmatpush1.msra.mxu0 0.0
        %3327 = vmatprep.subr.mxu0 0.0
        %3328 = vmatpush1.msra.mxu0 0.0
        %3329 = vmatprep.subr.mxu0 0.0
        %3330 = vmatpush1.msra.mxu0 0.0
        %3331 = vmatprep.subr.mxu0 0.0
        %3332 = vmatpush1.msra.mxu0 0.0
        %3333 = vmatprep.subr.mxu0 0.0
        %3334 = vmatpush1.msra.mxu0 0.0
        %3335 = vmatprep.subr.mxu0 0.0
        %3336 = vmatpush1.msra.mxu0 0.0
        %3337 = vmatprep.subr.mxu0 0.0
        %3338 = vmatpush1.msra.mxu0 0.0
        %3339 = vmatprep.subr.mxu0 0.0
        %3340 = vmatpush1.msra.mxu0 0.0
        %3341 = vmatprep.subr.mxu0 0.0
        %3342 = vmatpush1.msra.mxu0 0.0
        %3343 = vmatprep.subr.mxu0 0.0
        %3344 = vmatpush1.msra.mxu0 0.0
        %3345 = vmatprep.subr.mxu0 0.0
        %3346 = vmatpush1.msra.mxu0 0.0
        %3347 = vmatprep.subr.mxu0 0.0
        %3348 = vmatpush1.msra.mxu0 0.0
        %3349 = vmatprep.subr.mxu0 0.0
        %3350 = vmatpush1.msra.mxu0 0.0
        %3351 = vmatprep.subr.mxu0 0.0
        %3352 = vmatpush1.msra.mxu0 0.0
        %3353 = vmatprep.subr.mxu0 0.0
        %3354 = vmatpush1.msra.mxu0 0.0
        %3355 = vmatprep.subr.mxu0 0.0
        %3356 = vmatpush1.msra.mxu0 0.0
        %3357 = vmatprep.subr.mxu0 0.0
        %3358 = vmatpush1.msra.mxu0 0.0
        %3359 = vmatprep.mubr.f32.mxu0 0.0
        %3360 = vmatmul.mubr.f32.gmra.mrb[0].mxu0 %v3293
        %v3361 = vpop.f32.mrb[0].mxu0
        %v3362 = vadd.f32 0.0, %v3361
        %v3363 = vpop.f32.mrb[0].mxu0
        %3364 = vdwg.mxu0
        %v3366 = vsel %vm2911, %v2997, 0
        %3368 = vmatprep.subr.mxu0 0.0
        %3369 = vmatpush1.msra.mxu0 %v2160
        %3370 = vmatprep.subr.mxu0 0.0
        %3371 = vmatpush1.msra.mxu0 0.0
        %3372 = vmatprep.subr.mxu0 0.0
        %3373 = vmatpush1.msra.mxu0 0.0
        %3374 = vmatprep.subr.mxu0 0.0
        %3375 = vmatpush1.msra.mxu0 0.0
        %3376 = vmatprep.subr.mxu0 0.0
        %3377 = vmatpush1.msra.mxu0 0.0
        %3378 = vmatprep.subr.mxu0 0.0
        %3379 = vmatpush1.msra.mxu0 0.0
        %3380 = vmatprep.subr.mxu0 0.0
        %3381 = vmatpush1.msra.mxu0 0.0
        %3382 = vmatprep.subr.mxu0 0.0
        %3383 = vmatpush1.msra.mxu0 0.0
        %3384 = vmatprep.subr.mxu0 0.0
        %3385 = vmatpush1.msra.mxu0 0.0
        %3386 = vmatprep.subr.mxu0 0.0
        %3387 = vmatpush1.msra.mxu0 0.0
        %3388 = vmatprep.subr.mxu0 0.0
        %3389 = vmatpush1.msra.mxu0 0.0
        %3390 = vmatprep.subr.mxu0 0.0
        %3391 = vmatpush1.msra.mxu0 0.0
        %3392 = vmatprep.subr.mxu0 0.0
        %3393 = vmatpush1.msra.mxu0 0.0
        %3394 = vmatprep.subr.mxu0 0.0
        %3395 = vmatpush1.msra.mxu0 0.0
        %3396 = vmatprep.subr.mxu0 0.0
        %3397 = vmatpush1.msra.mxu0 0.0
        %3398 = vmatprep.subr.mxu0 0.0
        %3399 = vmatpush1.msra.mxu0 0.0
        %3400 = vmatprep.subr.mxu0 0.0
        %3401 = vmatpush1.msra.mxu0 0.0
        %3402 = vmatprep.subr.mxu0 0.0
        %3403 = vmatpush1.msra.mxu0 0.0
        %3404 = vmatprep.subr.mxu0 0.0
        %3405 = vmatpush1.msra.mxu0 0.0
        %3406 = vmatprep.subr.mxu0 0.0
        %3407 = vmatpush1.msra.mxu0 0.0
        %3408 = vmatprep.subr.mxu0 0.0
        %3409 = vmatpush1.msra.mxu0 0.0
        %3410 = vmatprep.subr.mxu0 0.0
        %3411 = vmatpush1.msra.mxu0 0.0
        %3412 = vmatprep.subr.mxu0 0.0
        %3413 = vmatpush1.msra.mxu0 0.0
        %3414 = vmatprep.subr.mxu0 0.0
        %3415 = vmatpush1.msra.mxu0 0.0
        %3416 = vmatprep.subr.mxu0 0.0
        %3417 = vmatpush1.msra.mxu0 0.0
        %3418 = vmatprep.subr.mxu0 0.0
        %3419 = vmatpush1.msra.mxu0 0.0
        %3420 = vmatprep.subr.mxu0 0.0
        %3421 = vmatpush1.msra.mxu0 0.0
        %3422 = vmatprep.subr.mxu0 0.0
        %3423 = vmatpush1.msra.mxu0 0.0
        %3424 = vmatprep.subr.mxu0 0.0
        %3425 = vmatpush1.msra.mxu0 0.0
        %3426 = vmatprep.subr.mxu0 0.0
        %3427 = vmatpush1.msra.mxu0 0.0
        %3428 = vmatprep.subr.mxu0 0.0
        %3429 = vmatpush1.msra.mxu0 0.0
        %3430 = vmatprep.subr.mxu0 0.0
        %3431 = vmatpush1.msra.mxu0 0.0
        %3432 = vmatprep.mubr.f32.mxu0 0.0
        %3433 = vmatmul.mubr.f32.gmra.mrb[0].mxu0 %v3366
        %v3434 = vpop.f32.mrb[0].mxu0
        %v3435 = vadd.f32 0.0, %v3434
        %v3436 = vpop.f32.mrb[0].mxu0
        %3437 = vdwg.mxu0
        %v3439 = vsel %vm2911, %v2998, 0
        %3441 = vmatprep.subr.mxu0 0.0
        %3442 = vmatpush1.msra.mxu0 %v2230
        %3443 = vmatprep.subr.mxu0 0.0
        %3444 = vmatpush1.msra.mxu0 0.0
        %3445 = vmatprep.subr.mxu0 0.0
        %3446 = vmatpush1.msra.mxu0 0.0
        %3447 = vmatprep.subr.mxu0 0.0
        %3448 = vmatpush1.msra.mxu0 0.0
        %3449 = vmatprep.subr.mxu0 0.0
        %3450 = vmatpush1.msra.mxu0 0.0
        %3451 = vmatprep.subr.mxu0 0.0
        %3452 = vmatpush1.msra.mxu0 0.0
        %3453 = vmatprep.subr.mxu0 0.0
        %3454 = vmatpush1.msra.mxu0 0.0
        %3455 = vmatprep.subr.mxu0 0.0
        %3456 = vmatpush1.msra.mxu0 0.0
        %3457 = vmatprep.subr.mxu0 0.0
        %3458 = vmatpush1.msra.mxu0 0.0
        %3459 = vmatprep.subr.mxu0 0.0
        %3460 = vmatpush1.msra.mxu0 0.0
        %3461 = vmatprep.subr.mxu0 0.0
        %3462 = vmatpush1.msra.mxu0 0.0
        %3463 = vmatprep.subr.mxu0 0.0
        %3464 = vmatpush1.msra.mxu0 0.0
        %3465 = vmatprep.subr.mxu0 0.0
        %3466 = vmatpush1.msra.mxu0 0.0
        %3467 = vmatprep.subr.mxu0 0.0
        %3468 = vmatpush1.msra.mxu0 0.0
        %3469 = vmatprep.subr.mxu0 0.0
        %3470 = vmatpush1.msra.mxu0 0.0
        %3471 = vmatprep.subr.mxu0 0.0
        %3472 = vmatpush1.msra.mxu0 0.0
        %3473 = vmatprep.subr.mxu0 0.0
        %3474 = vmatpush1.msra.mxu0 0.0
        %3475 = vmatprep.subr.mxu0 0.0
        %3476 = vmatpush1.msra.mxu0 0.0
        %3477 = vmatprep.subr.mxu0 0.0
        %3478 = vmatpush1.msra.mxu0 0.0
        %3479 = vmatprep.subr.mxu0 0.0
        %3480 = vmatpush1.msra.mxu0 0.0
        %3481 = vmatprep.subr.mxu0 0.0
        %3482 = vmatpush1.msra.mxu0 0.0
        %3483 = vmatprep.subr.mxu0 0.0
        %3484 = vmatpush1.msra.mxu0 0.0
        %3485 = vmatprep.subr.mxu0 0.0
        %3486 = vmatpush1.msra.mxu0 0.0
        %3487 = vmatprep.subr.mxu0 0.0
        %3488 = vmatpush1.msra.mxu0 0.0
        %3489 = vmatprep.subr.mxu0 0.0
        %3490 = vmatpush1.msra.mxu0 0.0
        %3491 = vmatprep.subr.mxu0 0.0
        %3492 = vmatpush1.msra.mxu0 0.0
        %3493 = vmatprep.subr.mxu0 0.0
        %3494 = vmatpush1.msra.mxu0 0.0
        %3495 = vmatprep.subr.mxu0 0.0
        %3496 = vmatpush1.msra.mxu0 0.0
        %3497 = vmatprep.subr.mxu0 0.0
        %3498 = vmatpush1.msra.mxu0 0.0
        %3499 = vmatprep.subr.mxu0 0.0
        %3500 = vmatpush1.msra.mxu0 0.0
        %3501 = vmatprep.subr.mxu0 0.0
        %3502 = vmatpush1.msra.mxu0 0.0
        %3503 = vmatprep.subr.mxu0 0.0
        %3504 = vmatpush1.msra.mxu0 0.0
        %3505 = vmatprep.mubr.f32.mxu0 0.0
        %3506 = vmatmul.mubr.f32.gmra.mrb[0].mxu0 %v3439
        %v3507 = vpop.f32.mrb[0].mxu0
        %v3508 = vadd.f32 0.0, %v3507
        %v3509 = vpop.f32.mrb[0].mxu0
        %3510 = vdwg.mxu0
        %v3512 = vsel %vm2911, %v2999, 0
        %3514 = vmatprep.subr.mxu0 0.0
        %3515 = vmatpush1.msra.mxu0 %v2300
        %3516 = vmatprep.subr.mxu0 0.0
        %3517 = vmatpush1.msra.mxu0 0.0
        %3518 = vmatprep.subr.mxu0 0.0
        %3519 = vmatpush1.msra.mxu0 0.0
        %3520 = vmatprep.subr.mxu0 0.0
        %3521 = vmatpush1.msra.mxu0 0.0
        %3522 = vmatprep.subr.mxu0 0.0
        %3523 = vmatpush1.msra.mxu0 0.0
        %3524 = vmatprep.subr.mxu0 0.0
        %3525 = vmatpush1.msra.mxu0 0.0
        %3526 = vmatprep.subr.mxu0 0.0
        %3527 = vmatpush1.msra.mxu0 0.0
        %3528 = vmatprep.subr.mxu0 0.0
        %3529 = vmatpush1.msra.mxu0 0.0
        %3530 = vmatprep.subr.mxu0 0.0
        %3531 = vmatpush1.msra.mxu0 0.0
        %3532 = vmatprep.subr.mxu0 0.0
        %3533 = vmatpush1.msra.mxu0 0.0
        %3534 = vmatprep.subr.mxu0 0.0
        %3535 = vmatpush1.msra.mxu0 0.0
        %3536 = vmatprep.subr.mxu0 0.0
        %3537 = vmatpush1.msra.mxu0 0.0
        %3538 = vmatprep.subr.mxu0 0.0
        %3539 = vmatpush1.msra.mxu0 0.0
        %3540 = vmatprep.subr.mxu0 0.0
        %3541 = vmatpush1.msra.mxu0 0.0
        %3542 = vmatprep.subr.mxu0 0.0
        %3543 = vmatpush1.msra.mxu0 0.0
        %3544 = vmatprep.subr.mxu0 0.0
        %3545 = vmatpush1.msra.mxu0 0.0
        %3546 = vmatprep.subr.mxu0 0.0
        %3547 = vmatpush1.msra.mxu0 0.0
        %3548 = vmatprep.subr.mxu0 0.0
        %3549 = vmatpush1.msra.mxu0 0.0
        %3550 = vmatprep.subr.mxu0 0.0
        %3551 = vmatpush1.msra.mxu0 0.0
        %3552 = vmatprep.subr.mxu0 0.0
        %3553 = vmatpush1.msra.mxu0 0.0
        %3554 = vmatprep.subr.mxu0 0.0
        %3555 = vmatpush1.msra.mxu0 0.0
        %3556 = vmatprep.subr.mxu0 0.0
        %3557 = vmatpush1.msra.mxu0 0.0
        %3558 = vmatprep.subr.mxu0 0.0
        %3559 = vmatpush1.msra.mxu0 0.0
        %3560 = vmatprep.subr.mxu0 0.0
        %3561 = vmatpush1.msra.mxu0 0.0
        %3562 = vmatprep.subr.mxu0 0.0
        %3563 = vmatpush1.msra.mxu0 0.0
        %3564 = vmatprep.subr.mxu0 0.0
        %3565 = vmatpush1.msra.mxu0 0.0
        %3566 = vmatprep.subr.mxu0 0.0
        %3567 = vmatpush1.msra.mxu0 0.0
        %3568 = vmatprep.subr.mxu0 0.0
        %3569 = vmatpush1.msra.mxu0 0.0
        %3570 = vmatprep.subr.mxu0 0.0
        %3571 = vmatpush1.msra.mxu0 0.0
        %3572 = vmatprep.subr.mxu0 0.0
        %3573 = vmatpush1.msra.mxu0 0.0
        %3574 = vmatprep.subr.mxu0 0.0
        %3575 = vmatpush1.msra.mxu0 0.0
        %3576 = vmatprep.subr.mxu0 0.0
        %3577 = vmatpush1.msra.mxu0 0.0
        %3578 = vmatprep.mubr.f32.mxu0 0.0
        %3579 = vmatmul.mubr.f32.gmra.mrb[0].mxu0 %v3512
        %v3580 = vpop.f32.mrb[0].mxu0
        %v3581 = vadd.f32 0.0, %v3580
        %v3582 = vpop.f32.mrb[0].mxu0
        %3583 = vdwg.mxu0
        %v3584 = vld [vmem:[#allocation8] sm:$0xff]
        %v3585 = vld [vmem:[#allocation8 + $0x8] sm:$0xff]
        %v3586 = vld [vmem:[#allocation8 + $0x10] sm:$0xff]
        %v3587 = vld [vmem:[#allocation8 + $0x18] sm:$0xff]
        %v3588 = vld [vmem:[#allocation8 + $0x20] sm:$0xff]
        %v3589 = vld [vmem:[#allocation8 + $0x28] sm:$0xff]
        %v3590 = vld [vmem:[#allocation8 + $0x30] sm:$0xff]
        %v3591 = vld [vmem:[#allocation8 + $0x38] sm:$0xff]
        %v3592 = vld [vmem:[#allocation8 + $0x40] sm:$0xff]
        %v3593 = vld [vmem:[#allocation8 + $0x48] sm:$0xff]
        %v3594 = vld [vmem:[#allocation8 + $0x50] sm:$0xff]
        %v3595 = vld [vmem:[#allocation8 + $0x58] sm:$0xff]
        %v3596 = vld [vmem:[#allocation8 + $0x60] sm:$0xff]
        %v3597 = vld [vmem:[#allocation8 + $0x68] sm:$0xff]
        %v3598 = vld [vmem:[#allocation8 + $0x70] sm:$0xff]
        %v3599 = vld [vmem:[#allocation8 + $0x78] sm:$0xff]
        %v3600 = vld [vmem:[#allocation8 + $0x80] sm:$0xff]
        %v3601 = vld [vmem:[#allocation8 + $0x88] sm:$0xff]
        %v3602 = vld [vmem:[#allocation8 + $0x90] sm:$0xff]
        %v3603 = vld [vmem:[#allocation8 + $0x98] sm:$0xff]
        %v3604 = vld [vmem:[#allocation8 + $0xa0] sm:$0xff]
        %v3605 = vld [vmem:[#allocation8 + $0xa8] sm:$0xff]
        %v3606 = vld [vmem:[#allocation8 + $0xb0] sm:$0xff]
        %v3607 = vld [vmem:[#allocation8 + $0xb8] sm:$0xff]
        %v3608 = vld [vmem:[#allocation8 + $0xc0] sm:$0xff]
        %v3609 = vld [vmem:[#allocation8 + $0xc8] sm:$0xff]
        %v3610 = vld [vmem:[#allocation8 + $0xd0] sm:$0xff]
        %v3611 = vld [vmem:[#allocation8 + $0xd8] sm:$0xff]
        %v3612 = vld [vmem:[#allocation8 + $0xe0] sm:$0xff]
        %v3613 = vld [vmem:[#allocation8 + $0xe8] sm:$0xff]
        %v3614 = vld [vmem:[#allocation8 + $0xf0] sm:$0xff]
        %v3615 = vld [vmem:[#allocation8 + $0xf8] sm:$0xff]
        %v3617 = vsel %vm555, %v3070, 0
        %3619 = vmatprep.subr.mxu0 0.0
        %3620 = vmatpush1.msra.mxu0 %v3584
        %3621 = vmatprep.subr.mxu0 0.0
        %3622 = vmatpush1.msra.mxu0 %v3585
        %3623 = vmatprep.subr.mxu0 0.0
        %3624 = vmatpush1.msra.mxu0 %v3586
        %3625 = vmatprep.subr.mxu0 0.0
        %3626 = vmatpush1.msra.mxu0 %v3587
        %3627 = vmatprep.subr.mxu0 0.0
        %3628 = vmatpush1.msra.mxu0 0.0
        %3629 = vmatprep.subr.mxu0 0.0
        %3630 = vmatpush1.msra.mxu0 0.0
        %3631 = vmatprep.subr.mxu0 0.0
        %3632 = vmatpush1.msra.mxu0 0.0
        %3633 = vmatprep.subr.mxu0 0.0
        %3634 = vmatpush1.msra.mxu0 0.0
        %3635 = vmatprep.subr.mxu0 0.0
        %3636 = vmatpush1.msra.mxu0 0.0
        %3637 = vmatprep.subr.mxu0 0.0
        %3638 = vmatpush1.msra.mxu0 0.0
        %3639 = vmatprep.subr.mxu0 0.0
        %3640 = vmatpush1.msra.mxu0 0.0
        %3641 = vmatprep.subr.mxu0 0.0
        %3642 = vmatpush1.msra.mxu0 0.0
        %3643 = vmatprep.subr.mxu0 0.0
        %3644 = vmatpush1.msra.mxu0 0.0
        %3645 = vmatprep.subr.mxu0 0.0
        %3646 = vmatpush1.msra.mxu0 0.0
        %3647 = vmatprep.subr.mxu0 0.0
        %3648 = vmatpush1.msra.mxu0 0.0
        %3649 = vmatprep.subr.mxu0 0.0
        %3650 = vmatpush1.msra.mxu0 0.0
        %3651 = vmatprep.subr.mxu0 0.0
        %3652 = vmatpush1.msra.mxu0 0.0
        %3653 = vmatprep.subr.mxu0 0.0
        %3654 = vmatpush1.msra.mxu0 0.0
        %3655 = vmatprep.subr.mxu0 0.0
        %3656 = vmatpush1.msra.mxu0 0.0
        %3657 = vmatprep.subr.mxu0 0.0
        %3658 = vmatpush1.msra.mxu0 0.0
        %3659 = vmatprep.subr.mxu0 0.0
        %3660 = vmatpush1.msra.mxu0 0.0
        %3661 = vmatprep.subr.mxu0 0.0
        %3662 = vmatpush1.msra.mxu0 0.0
        %3663 = vmatprep.subr.mxu0 0.0
        %3664 = vmatpush1.msra.mxu0 0.0
        %3665 = vmatprep.subr.mxu0 0.0
        %3666 = vmatpush1.msra.mxu0 0.0
        %3667 = vmatprep.subr.mxu0 0.0
        %3668 = vmatpush1.msra.mxu0 0.0
        %3669 = vmatprep.subr.mxu0 0.0
        %3670 = vmatpush1.msra.mxu0 0.0
        %3671 = vmatprep.subr.mxu0 0.0
        %3672 = vmatpush1.msra.mxu0 0.0
        %3673 = vmatprep.subr.mxu0 0.0
        %3674 = vmatpush1.msra.mxu0 0.0
        %3675 = vmatprep.subr.mxu0 0.0
        %3676 = vmatpush1.msra.mxu0 0.0
        %3677 = vmatprep.subr.mxu0 0.0
        %3678 = vmatpush1.msra.mxu0 0.0
        %3679 = vmatprep.subr.mxu0 0.0
        %3680 = vmatpush1.msra.mxu0 0.0
        %3681 = vmatprep.subr.mxu0 0.0
        %3682 = vmatpush1.msra.mxu0 0.0
        %3683 = vmatprep.mubr.f32.mxu0 0.0
        %3684 = vmatmul.mubr.f32.gmra.mrb[0].mxu0 %v3617
        %v3685 = vpop.f32.mrb[0].mxu0
        %v3686 = vadd.f32 0.0, %v3685
        %v3687 = vpop.f32.mrb[0].mxu0
        %3688 = vdwg.mxu0
        %v3690 = vsel %vm555, %v3143, 0
        %3692 = vmatprep.subr.mxu0 0.0
        %3693 = vmatpush1.msra.mxu0 %v3588
        %3694 = vmatprep.subr.mxu0 0.0
        %3695 = vmatpush1.msra.mxu0 %v3589
        %3696 = vmatprep.subr.mxu0 0.0
        %3697 = vmatpush1.msra.mxu0 %v3590
        %3698 = vmatprep.subr.mxu0 0.0
        %3699 = vmatpush1.msra.mxu0 %v3591
        %3700 = vmatprep.subr.mxu0 0.0
        %3701 = vmatpush1.msra.mxu0 0.0
        %3702 = vmatprep.subr.mxu0 0.0
        %3703 = vmatpush1.msra.mxu0 0.0
        %3704 = vmatprep.subr.mxu0 0.0
        %3705 = vmatpush1.msra.mxu0 0.0
        %3706 = vmatprep.subr.mxu0 0.0
        %3707 = vmatpush1.msra.mxu0 0.0
        %3708 = vmatprep.subr.mxu0 0.0
        %3709 = vmatpush1.msra.mxu0 0.0
        %3710 = vmatprep.subr.mxu0 0.0
        %3711 = vmatpush1.msra.mxu0 0.0
        %3712 = vmatprep.subr.mxu0 0.0
        %3713 = vmatpush1.msra.mxu0 0.0
        %3714 = vmatprep.subr.mxu0 0.0
        %3715 = vmatpush1.msra.mxu0 0.0
        %3716 = vmatprep.subr.mxu0 0.0
        %3717 = vmatpush1.msra.mxu0 0.0
        %3718 = vmatprep.subr.mxu0 0.0
        %3719 = vmatpush1.msra.mxu0 0.0
        %3720 = vmatprep.subr.mxu0 0.0
        %3721 = vmatpush1.msra.mxu0 0.0
        %3722 = vmatprep.subr.mxu0 0.0
        %3723 = vmatpush1.msra.mxu0 0.0
        %3724 = vmatprep.subr.mxu0 0.0
        %3725 = vmatpush1.msra.mxu0 0.0
        %3726 = vmatprep.subr.mxu0 0.0
        %3727 = vmatpush1.msra.mxu0 0.0
        %3728 = vmatprep.subr.mxu0 0.0
        %3729 = vmatpush1.msra.mxu0 0.0
        %3730 = vmatprep.subr.mxu0 0.0
        %3731 = vmatpush1.msra.mxu0 0.0
        %3732 = vmatprep.subr.mxu0 0.0
        %3733 = vmatpush1.msra.mxu0 0.0
        %3734 = vmatprep.subr.mxu0 0.0
        %3735 = vmatpush1.msra.mxu0 0.0
        %3736 = vmatprep.subr.mxu0 0.0
        %3737 = vmatpush1.msra.mxu0 0.0
        %3738 = vmatprep.subr.mxu0 0.0
        %3739 = vmatpush1.msra.mxu0 0.0
        %3740 = vmatprep.subr.mxu0 0.0
        %3741 = vmatpush1.msra.mxu0 0.0
        %3742 = vmatprep.subr.mxu0 0.0
        %3743 = vmatpush1.msra.mxu0 0.0
        %3744 = vmatprep.subr.mxu0 0.0
        %3745 = vmatpush1.msra.mxu0 0.0
        %3746 = vmatprep.subr.mxu0 0.0
        %3747 = vmatpush1.msra.mxu0 0.0
        %3748 = vmatprep.subr.mxu0 0.0
        %3749 = vmatpush1.msra.mxu0 0.0
        %3750 = vmatprep.subr.mxu0 0.0
        %3751 = vmatpush1.msra.mxu0 0.0
        %3752 = vmatprep.subr.mxu0 0.0
        %3753 = vmatpush1.msra.mxu0 0.0
        %3754 = vmatprep.subr.mxu0 0.0
        %3755 = vmatpush1.msra.mxu0 0.0
        %3756 = vmatprep.mubr.f32.mxu0 0.0
        %3757 = vmatmul.mubr.f32.gmra.mrb[0].mxu0 %v3690
        %v3758 = vpop.f32.mrb[0].mxu0
        %v3759 = vadd.f32 0.0, %v3758
        %v3760 = vpop.f32.mrb[0].mxu0
        %3761 = vdwg.mxu0
        %v3763 = vsel %vm555, %v3216, 0
        %3765 = vmatprep.subr.mxu0 0.0
        %3766 = vmatpush1.msra.mxu0 %v3592
        %3767 = vmatprep.subr.mxu0 0.0
        %3768 = vmatpush1.msra.mxu0 %v3593
        %3769 = vmatprep.subr.mxu0 0.0
        %3770 = vmatpush1.msra.mxu0 %v3594
        %3771 = vmatprep.subr.mxu0 0.0
        %3772 = vmatpush1.msra.mxu0 %v3595
        %3773 = vmatprep.subr.mxu0 0.0
        %3774 = vmatpush1.msra.mxu0 0.0
        %3775 = vmatprep.subr.mxu0 0.0
        %3776 = vmatpush1.msra.mxu0 0.0
        %3777 = vmatprep.subr.mxu0 0.0
        %3778 = vmatpush1.msra.mxu0 0.0
        %3779 = vmatprep.subr.mxu0 0.0
        %3780 = vmatpush1.msra.mxu0 0.0
        %3781 = vmatprep.subr.mxu0 0.0
        %3782 = vmatpush1.msra.mxu0 0.0
        %3783 = vmatprep.subr.mxu0 0.0
        %3784 = vmatpush1.msra.mxu0 0.0
        %3785 = vmatprep.subr.mxu0 0.0
        %3786 = vmatpush1.msra.mxu0 0.0
        %3787 = vmatprep.subr.mxu0 0.0
        %3788 = vmatpush1.msra.mxu0 0.0
        %3789 = vmatprep.subr.mxu0 0.0
        %3790 = vmatpush1.msra.mxu0 0.0
        %3791 = vmatprep.subr.mxu0 0.0
        %3792 = vmatpush1.msra.mxu0 0.0
        %3793 = vmatprep.subr.mxu0 0.0
        %3794 = vmatpush1.msra.mxu0 0.0
        %3795 = vmatprep.subr.mxu0 0.0
        %3796 = vmatpush1.msra.mxu0 0.0
        %3797 = vmatprep.subr.mxu0 0.0
        %3798 = vmatpush1.msra.mxu0 0.0
        %3799 = vmatprep.subr.mxu0 0.0
        %3800 = vmatpush1.msra.mxu0 0.0
        %3801 = vmatprep.subr.mxu0 0.0
        %3802 = vmatpush1.msra.mxu0 0.0
        %3803 = vmatprep.subr.mxu0 0.0
        %3804 = vmatpush1.msra.mxu0 0.0
        %3805 = vmatprep.subr.mxu0 0.0
        %3806 = vmatpush1.msra.mxu0 0.0
        %3807 = vmatprep.subr.mxu0 0.0
        %3808 = vmatpush1.msra.mxu0 0.0
        %3809 = vmatprep.subr.mxu0 0.0
        %3810 = vmatpush1.msra.mxu0 0.0
        %3811 = vmatprep.subr.mxu0 0.0
        %3812 = vmatpush1.msra.mxu0 0.0
        %3813 = vmatprep.subr.mxu0 0.0
        %3814 = vmatpush1.msra.mxu0 0.0
        %3815 = vmatprep.subr.mxu0 0.0
        %3816 = vmatpush1.msra.mxu0 0.0
        %3817 = vmatprep.subr.mxu0 0.0
        %3818 = vmatpush1.msra.mxu0 0.0
        %3819 = vmatprep.subr.mxu0 0.0
        %3820 = vmatpush1.msra.mxu0 0.0
        %3821 = vmatprep.subr.mxu0 0.0
        %3822 = vmatpush1.msra.mxu0 0.0
        %3823 = vmatprep.subr.mxu0 0.0
        %3824 = vmatpush1.msra.mxu0 0.0
        %3825 = vmatprep.subr.mxu0 0.0
        %3826 = vmatpush1.msra.mxu0 0.0
        %3827 = vmatprep.subr.mxu0 0.0
        %3828 = vmatpush1.msra.mxu0 0.0
        %3829 = vmatprep.mubr.f32.mxu0 0.0
        %3830 = vmatmul.mubr.f32.gmra.mrb[0].mxu0 %v3763
        %v3831 = vpop.f32.mrb[0].mxu0
        %v3832 = vadd.f32 0.0, %v3831
        %v3833 = vpop.f32.mrb[0].mxu0
        %3834 = vdwg.mxu0
        %v3836 = vsel %vm555, %v3289, 0
        %3838 = vmatprep.subr.mxu0 0.0
        %3839 = vmatpush1.msra.mxu0 %v3596
        %3840 = vmatprep.subr.mxu0 0.0
        %3841 = vmatpush1.msra.mxu0 %v3597
        %3842 = vmatprep.subr.mxu0 0.0
        %3843 = vmatpush1.msra.mxu0 %v3598
        %3844 = vmatprep.subr.mxu0 0.0
        %3845 = vmatpush1.msra.mxu0 %v3599
        %3846 = vmatprep.subr.mxu0 0.0
        %3847 = vmatpush1.msra.mxu0 0.0
        %3848 = vmatprep.subr.mxu0 0.0
        %3849 = vmatpush1.msra.mxu0 0.0
        %3850 = vmatprep.subr.mxu0 0.0
        %3851 = vmatpush1.msra.mxu0 0.0
        %3852 = vmatprep.subr.mxu0 0.0
        %3853 = vmatpush1.msra.mxu0 0.0
        %3854 = vmatprep.subr.mxu0 0.0
        %3855 = vmatpush1.msra.mxu0 0.0
        %3856 = vmatprep.subr.mxu0 0.0
        %3857 = vmatpush1.msra.mxu0 0.0
        %3858 = vmatprep.subr.mxu0 0.0
        %3859 = vmatpush1.msra.mxu0 0.0
        %3860 = vmatprep.subr.mxu0 0.0
        %3861 = vmatpush1.msra.mxu0 0.0
        %3862 = vmatprep.subr.mxu0 0.0
        %3863 = vmatpush1.msra.mxu0 0.0
        %3864 = vmatprep.subr.mxu0 0.0
        %3865 = vmatpush1.msra.mxu0 0.0
        %3866 = vmatprep.subr.mxu0 0.0
        %3867 = vmatpush1.msra.mxu0 0.0
        %3868 = vmatprep.subr.mxu0 0.0
        %3869 = vmatpush1.msra.mxu0 0.0
        %3870 = vmatprep.subr.mxu0 0.0
        %3871 = vmatpush1.msra.mxu0 0.0
        %3872 = vmatprep.subr.mxu0 0.0
        %3873 = vmatpush1.msra.mxu0 0.0
        %3874 = vmatprep.subr.mxu0 0.0
        %3875 = vmatpush1.msra.mxu0 0.0
        %3876 = vmatprep.subr.mxu0 0.0
        %3877 = vmatpush1.msra.mxu0 0.0
        %3878 = vmatprep.subr.mxu0 0.0
        %3879 = vmatpush1.msra.mxu0 0.0
        %3880 = vmatprep.subr.mxu0 0.0
        %3881 = vmatpush1.msra.mxu0 0.0
        %3882 = vmatprep.subr.mxu0 0.0
        %3883 = vmatpush1.msra.mxu0 0.0
        %3884 = vmatprep.subr.mxu0 0.0
        %3885 = vmatpush1.msra.mxu0 0.0
        %3886 = vmatprep.subr.mxu0 0.0
        %3887 = vmatpush1.msra.mxu0 0.0
        %3888 = vmatprep.subr.mxu0 0.0
        %3889 = vmatpush1.msra.mxu0 0.0
        %3890 = vmatprep.subr.mxu0 0.0
        %3891 = vmatpush1.msra.mxu0 0.0
        %3892 = vmatprep.subr.mxu0 0.0
        %3893 = vmatpush1.msra.mxu0 0.0
        %3894 = vmatprep.subr.mxu0 0.0
        %3895 = vmatpush1.msra.mxu0 0.0
        %3896 = vmatprep.subr.mxu0 0.0
        %3897 = vmatpush1.msra.mxu0 0.0
        %3898 = vmatprep.subr.mxu0 0.0
        %3899 = vmatpush1.msra.mxu0 0.0
        %3900 = vmatprep.subr.mxu0 0.0
        %3901 = vmatpush1.msra.mxu0 0.0
        %3902 = vmatprep.mubr.f32.mxu0 0.0
        %3903 = vmatmul.mubr.f32.gmra.mrb[0].mxu0 %v3836
        %v3904 = vpop.f32.mrb[0].mxu0
        %v3905 = vadd.f32 0.0, %v3904
        %v3906 = vpop.f32.mrb[0].mxu0
        %3907 = vdwg.mxu0
        %v3909 = vsel %vm555, %v3362, 0
        %3911 = vmatprep.subr.mxu0 0.0
        %3912 = vmatpush1.msra.mxu0 %v3600
        %3913 = vmatprep.subr.mxu0 0.0
        %3914 = vmatpush1.msra.mxu0 %v3601
        %3915 = vmatprep.subr.mxu0 0.0
        %3916 = vmatpush1.msra.mxu0 %v3602
        %3917 = vmatprep.subr.mxu0 0.0
        %3918 = vmatpush1.msra.mxu0 %v3603
        %3919 = vmatprep.subr.mxu0 0.0
        %3920 = vmatpush1.msra.mxu0 0.0
        %3921 = vmatprep.subr.mxu0 0.0
        %3922 = vmatpush1.msra.mxu0 0.0
        %3923 = vmatprep.subr.mxu0 0.0
        %3924 = vmatpush1.msra.mxu0 0.0
        %3925 = vmatprep.subr.mxu0 0.0
        %3926 = vmatpush1.msra.mxu0 0.0
        %3927 = vmatprep.subr.mxu0 0.0
        %3928 = vmatpush1.msra.mxu0 0.0
        %3929 = vmatprep.subr.mxu0 0.0
        %3930 = vmatpush1.msra.mxu0 0.0
        %3931 = vmatprep.subr.mxu0 0.0
        %3932 = vmatpush1.msra.mxu0 0.0
        %3933 = vmatprep.subr.mxu0 0.0
        %3934 = vmatpush1.msra.mxu0 0.0
        %3935 = vmatprep.subr.mxu0 0.0
        %3936 = vmatpush1.msra.mxu0 0.0
        %3937 = vmatprep.subr.mxu0 0.0
        %3938 = vmatpush1.msra.mxu0 0.0
        %3939 = vmatprep.subr.mxu0 0.0
        %3940 = vmatpush1.msra.mxu0 0.0
        %3941 = vmatprep.subr.mxu0 0.0
        %3942 = vmatpush1.msra.mxu0 0.0
        %3943 = vmatprep.subr.mxu0 0.0
        %3944 = vmatpush1.msra.mxu0 0.0
        %3945 = vmatprep.subr.mxu0 0.0
        %3946 = vmatpush1.msra.mxu0 0.0
        %3947 = vmatprep.subr.mxu0 0.0
        %3948 = vmatpush1.msra.mxu0 0.0
        %3949 = vmatprep.subr.mxu0 0.0
        %3950 = vmatpush1.msra.mxu0 0.0
        %3951 = vmatprep.subr.mxu0 0.0
        %3952 = vmatpush1.msra.mxu0 0.0
        %3953 = vmatprep.subr.mxu0 0.0
        %3954 = vmatpush1.msra.mxu0 0.0
        %3955 = vmatprep.subr.mxu0 0.0
        %3956 = vmatpush1.msra.mxu0 0.0
        %3957 = vmatprep.subr.mxu0 0.0
        %3958 = vmatpush1.msra.mxu0 0.0
        %3959 = vmatprep.subr.mxu0 0.0
        %3960 = vmatpush1.msra.mxu0 0.0
        %3961 = vmatprep.subr.mxu0 0.0
        %3962 = vmatpush1.msra.mxu0 0.0
        %3963 = vmatprep.subr.mxu0 0.0
        %3964 = vmatpush1.msra.mxu0 0.0
        %3965 = vmatprep.subr.mxu0 0.0
        %3966 = vmatpush1.msra.mxu0 0.0
        %3967 = vmatprep.subr.mxu0 0.0
        %3968 = vmatpush1.msra.mxu0 0.0
        %3969 = vmatprep.subr.mxu0 0.0
        %3970 = vmatpush1.msra.mxu0 0.0
        %3971 = vmatprep.subr.mxu0 0.0
        %3972 = vmatpush1.msra.mxu0 0.0
        %3973 = vmatprep.subr.mxu0 0.0
        %3974 = vmatpush1.msra.mxu0 0.0
        %3975 = vmatprep.mubr.f32.mxu0 0.0
        %3976 = vmatmul.mubr.f32.gmra.mrb[0].mxu0 %v3909
        %v3977 = vpop.f32.mrb[0].mxu0
        %v3978 = vadd.f32 0.0, %v3977
        %v3979 = vpop.f32.mrb[0].mxu0
        %3980 = vdwg.mxu0
        %v3982 = vsel %vm555, %v3435, 0
        %3984 = vmatprep.subr.mxu0 0.0
        %3985 = vmatpush1.msra.mxu0 %v3604
        %3986 = vmatprep.subr.mxu0 0.0
        %3987 = vmatpush1.msra.mxu0 %v3605
        %3988 = vmatprep.subr.mxu0 0.0
        %3989 = vmatpush1.msra.mxu0 %v3606
        %3990 = vmatprep.subr.mxu0 0.0
        %3991 = vmatpush1.msra.mxu0 %v3607
        %3992 = vmatprep.subr.mxu0 0.0
        %3993 = vmatpush1.msra.mxu0 0.0
        %3994 = vmatprep.subr.mxu0 0.0
        %3995 = vmatpush1.msra.mxu0 0.0
        %3996 = vmatprep.subr.mxu0 0.0
        %3997 = vmatpush1.msra.mxu0 0.0
        %3998 = vmatprep.subr.mxu0 0.0
        %3999 = vmatpush1.msra.mxu0 0.0
        %4000 = vmatprep.subr.mxu0 0.0
        %4001 = vmatpush1.msra.mxu0 0.0
        %4002 = vmatprep.subr.mxu0 0.0
        %4003 = vmatpush1.msra.mxu0 0.0
        %4004 = vmatprep.subr.mxu0 0.0
        %4005 = vmatpush1.msra.mxu0 0.0
        %4006 = vmatprep.subr.mxu0 0.0
        %4007 = vmatpush1.msra.mxu0 0.0
        %4008 = vmatprep.subr.mxu0 0.0
        %4009 = vmatpush1.msra.mxu0 0.0
        %4010 = vmatprep.subr.mxu0 0.0
        %4011 = vmatpush1.msra.mxu0 0.0
        %4012 = vmatprep.subr.mxu0 0.0
        %4013 = vmatpush1.msra.mxu0 0.0
        %4014 = vmatprep.subr.mxu0 0.0
        %4015 = vmatpush1.msra.mxu0 0.0
        %4016 = vmatprep.subr.mxu0 0.0
        %4017 = vmatpush1.msra.mxu0 0.0
        %4018 = vmatprep.subr.mxu0 0.0
        %4019 = vmatpush1.msra.mxu0 0.0
        %4020 = vmatprep.subr.mxu0 0.0
        %4021 = vmatpush1.msra.mxu0 0.0
        %4022 = vmatprep.subr.mxu0 0.0
        %4023 = vmatpush1.msra.mxu0 0.0
        %4024 = vmatprep.subr.mxu0 0.0
        %4025 = vmatpush1.msra.mxu0 0.0
        %4026 = vmatprep.subr.mxu0 0.0
        %4027 = vmatpush1.msra.mxu0 0.0
        %4028 = vmatprep.subr.mxu0 0.0
        %4029 = vmatpush1.msra.mxu0 0.0
        %4030 = vmatprep.subr.mxu0 0.0
        %4031 = vmatpush1.msra.mxu0 0.0
        %4032 = vmatprep.subr.mxu0 0.0
        %4033 = vmatpush1.msra.mxu0 0.0
        %4034 = vmatprep.subr.mxu0 0.0
        %4035 = vmatpush1.msra.mxu0 0.0
        %4036 = vmatprep.subr.mxu0 0.0
        %4037 = vmatpush1.msra.mxu0 0.0
        %4038 = vmatprep.subr.mxu0 0.0
        %4039 = vmatpush1.msra.mxu0 0.0
        %4040 = vmatprep.subr.mxu0 0.0
        %4041 = vmatpush1.msra.mxu0 0.0
        %4042 = vmatprep.subr.mxu0 0.0
        %4043 = vmatpush1.msra.mxu0 0.0
        %4044 = vmatprep.subr.mxu0 0.0
        %4045 = vmatpush1.msra.mxu0 0.0
        %4046 = vmatprep.subr.mxu0 0.0
        %4047 = vmatpush1.msra.mxu0 0.0
        %4048 = vmatprep.mubr.f32.mxu0 0.0
        %4049 = vmatmul.mubr.f32.gmra.mrb[0].mxu0 %v3982
        %v4050 = vpop.f32.mrb[0].mxu0
        %v4051 = vadd.f32 0.0, %v4050
        %v4052 = vpop.f32.mrb[0].mxu0
        %4053 = vdwg.mxu0
        %v4055 = vsel %vm555, %v3508, 0
        %4057 = vmatprep.subr.mxu0 0.0
        %4058 = vmatpush1.msra.mxu0 %v3608
        %4059 = vmatprep.subr.mxu0 0.0
        %4060 = vmatpush1.msra.mxu0 %v3609
        %4061 = vmatprep.subr.mxu0 0.0
        %4062 = vmatpush1.msra.mxu0 %v3610
        %4063 = vmatprep.subr.mxu0 0.0
        %4064 = vmatpush1.msra.mxu0 %v3611
        %4065 = vmatprep.subr.mxu0 0.0
        %4066 = vmatpush1.msra.mxu0 0.0
        %4067 = vmatprep.subr.mxu0 0.0
        %4068 = vmatpush1.msra.mxu0 0.0
        %4069 = vmatprep.subr.mxu0 0.0
        %4070 = vmatpush1.msra.mxu0 0.0
        %4071 = vmatprep.subr.mxu0 0.0
        %4072 = vmatpush1.msra.mxu0 0.0
        %4073 = vmatprep.subr.mxu0 0.0
        %4074 = vmatpush1.msra.mxu0 0.0
        %4075 = vmatprep.subr.mxu0 0.0
        %4076 = vmatpush1.msra.mxu0 0.0
        %4077 = vmatprep.subr.mxu0 0.0
        %4078 = vmatpush1.msra.mxu0 0.0
        %4079 = vmatprep.subr.mxu0 0.0
        %4080 = vmatpush1.msra.mxu0 0.0
        %4081 = vmatprep.subr.mxu0 0.0
        %4082 = vmatpush1.msra.mxu0 0.0
        %4083 = vmatprep.subr.mxu0 0.0
        %4084 = vmatpush1.msra.mxu0 0.0
        %4085 = vmatprep.subr.mxu0 0.0
        %4086 = vmatpush1.msra.mxu0 0.0
        %4087 = vmatprep.subr.mxu0 0.0
        %4088 = vmatpush1.msra.mxu0 0.0
        %4089 = vmatprep.subr.mxu0 0.0
        %4090 = vmatpush1.msra.mxu0 0.0
        %4091 = vmatprep.subr.mxu0 0.0
        %4092 = vmatpush1.msra.mxu0 0.0
        %4093 = vmatprep.subr.mxu0 0.0
        %4094 = vmatpush1.msra.mxu0 0.0
        %4095 = vmatprep.subr.mxu0 0.0
        %4096 = vmatpush1.msra.mxu0 0.0
        %4097 = vmatprep.subr.mxu0 0.0
        %4098 = vmatpush1.msra.mxu0 0.0
        %4099 = vmatprep.subr.mxu0 0.0
        %4100 = vmatpush1.msra.mxu0 0.0
        %4101 = vmatprep.subr.mxu0 0.0
        %4102 = vmatpush1.msra.mxu0 0.0
        %4103 = vmatprep.subr.mxu0 0.0
        %4104 = vmatpush1.msra.mxu0 0.0
        %4105 = vmatprep.subr.mxu0 0.0
        %4106 = vmatpush1.msra.mxu0 0.0
        %4107 = vmatprep.subr.mxu0 0.0
        %4108 = vmatpush1.msra.mxu0 0.0
        %4109 = vmatprep.subr.mxu0 0.0
        %4110 = vmatpush1.msra.mxu0 0.0
        %4111 = vmatprep.subr.mxu0 0.0
        %4112 = vmatpush1.msra.mxu0 0.0
        %4113 = vmatprep.subr.mxu0 0.0
        %4114 = vmatpush1.msra.mxu0 0.0
        %4115 = vmatprep.subr.mxu0 0.0
        %4116 = vmatpush1.msra.mxu0 0.0
        %4117 = vmatprep.subr.mxu0 0.0
        %4118 = vmatpush1.msra.mxu0 0.0
        %4119 = vmatprep.subr.mxu0 0.0
        %4120 = vmatpush1.msra.mxu0 0.0
        %4121 = vmatprep.mubr.f32.mxu0 0.0
        %4122 = vmatmul.mubr.f32.gmra.mrb[0].mxu0 %v4055
        %v4123 = vpop.f32.mrb[0].mxu0
        %v4124 = vadd.f32 0.0, %v4123
        %v4125 = vpop.f32.mrb[0].mxu0
        %4126 = vdwg.mxu0
        %v4128 = vsel %vm555, %v3581, 0
        %4130 = vmatprep.subr.mxu0 0.0
        %4131 = vmatpush1.msra.mxu0 %v3612
        %4132 = vmatprep.subr.mxu0 0.0
        %4133 = vmatpush1.msra.mxu0 %v3613
        %4134 = vmatprep.subr.mxu0 0.0
        %4135 = vmatpush1.msra.mxu0 %v3614
        %4136 = vmatprep.subr.mxu0 0.0
        %4137 = vmatpush1.msra.mxu0 %v3615
        %4138 = vmatprep.subr.mxu0 0.0
        %4139 = vmatpush1.msra.mxu0 0.0
        %4140 = vmatprep.subr.mxu0 0.0
        %4141 = vmatpush1.msra.mxu0 0.0
        %4142 = vmatprep.subr.mxu0 0.0
        %4143 = vmatpush1.msra.mxu0 0.0
        %4144 = vmatprep.subr.mxu0 0.0
        %4145 = vmatpush1.msra.mxu0 0.0
        %4146 = vmatprep.subr.mxu0 0.0
        %4147 = vmatpush1.msra.mxu0 0.0
        %4148 = vmatprep.subr.mxu0 0.0
        %4149 = vmatpush1.msra.mxu0 0.0
        %4150 = vmatprep.subr.mxu0 0.0
        %4151 = vmatpush1.msra.mxu0 0.0
        %4152 = vmatprep.subr.mxu0 0.0
        %4153 = vmatpush1.msra.mxu0 0.0
        %4154 = vmatprep.subr.mxu0 0.0
        %4155 = vmatpush1.msra.mxu0 0.0
        %4156 = vmatprep.subr.mxu0 0.0
        %4157 = vmatpush1.msra.mxu0 0.0
        %4158 = vmatprep.subr.mxu0 0.0
        %4159 = vmatpush1.msra.mxu0 0.0
        %4160 = vmatprep.subr.mxu0 0.0
        %4161 = vmatpush1.msra.mxu0 0.0
        %4162 = vmatprep.subr.mxu0 0.0
        %4163 = vmatpush1.msra.mxu0 0.0
        %4164 = vmatprep.subr.mxu0 0.0
        %4165 = vmatpush1.msra.mxu0 0.0
        %4166 = vmatprep.subr.mxu0 0.0
        %4167 = vmatpush1.msra.mxu0 0.0
        %4168 = vmatprep.subr.mxu0 0.0
        %4169 = vmatpush1.msra.mxu0 0.0
        %4170 = vmatprep.subr.mxu0 0.0
        %4171 = vmatpush1.msra.mxu0 0.0
        %4172 = vmatprep.subr.mxu0 0.0
        %4173 = vmatpush1.msra.mxu0 0.0
        %4174 = vmatprep.subr.mxu0 0.0
        %4175 = vmatpush1.msra.mxu0 0.0
        %4176 = vmatprep.subr.mxu0 0.0
        %4177 = vmatpush1.msra.mxu0 0.0
        %4178 = vmatprep.subr.mxu0 0.0
        %4179 = vmatpush1.msra.mxu0 0.0
        %4180 = vmatprep.subr.mxu0 0.0
        %4181 = vmatpush1.msra.mxu0 0.0
        %4182 = vmatprep.subr.mxu0 0.0
        %4183 = vmatpush1.msra.mxu0 0.0
        %4184 = vmatprep.subr.mxu0 0.0
        %4185 = vmatpush1.msra.mxu0 0.0
        %4186 = vmatprep.subr.mxu0 0.0
        %4187 = vmatpush1.msra.mxu0 0.0
        %4188 = vmatprep.subr.mxu0 0.0
        %4189 = vmatpush1.msra.mxu0 0.0
        %4190 = vmatprep.subr.mxu0 0.0
        %4191 = vmatpush1.msra.mxu0 0.0
        %4192 = vmatprep.subr.mxu0 0.0
        %4193 = vmatpush1.msra.mxu0 0.0
        %4194 = vmatprep.mubr.f32.mxu0 0.0
        %4195 = vmatmul.mubr.f32.gmra.mrb[0].mxu0 %v4128
        %v4196 = vpop.f32.mrb[0].mxu0
        %v4197 = vadd.f32 0.0, %v4196
        %v4198 = vpop.f32.mrb[0].mxu0
        %4199 = vdwg.mxu0
        %v4200 = vld [vmem:[%s5] sm:$0x1]
        %v4202 = vlaneseq
        %v4203 = vshrl.u32 %v4202, 7
        %v4204 = vsub.s32 0, %v4203
        %v4205 = vrot.slane %v4200, %v4204
        %v4207 = vadd.f32 %v4205, %v3686
        %v4208 = vadd.f32 %v4207, %v3759
        %v4209 = vadd.f32 %v4208, %v3832
        %v4210 = vadd.f32 %v4209, %v3905
        %v4211 = vadd.f32 %v4210, %v3978
        %v4212 = vadd.f32 %v4211, %v4051
        %v4213 = vadd.f32 %v4212, %v4124
        %v4214 = vadd.f32 %v4213, %v4197
        %v4215 = vadd.f32 %v4214, %v522
        %v4216 = vld [vmem:[%s6] sm:$0x1]
        %v4217 = vld [vmem:[%s7] sm:$0x1]
        %v4218 = vsel %vm555, %v4215, 0.0
        %4219 = vadd.xlane.f32.xlu0 %v4218
        %v4220 = vpop.xlane.xlu0 %4219
        %v4221 = vrcp.pop 32.0
        %v4222 = vmul.f32 %v4220, %v4221
        %v4223 = vsub.f32 %v4215, %v4222
        %v4224 = vmul.f32 %v4223, %v4223
        %v4225 = vsel %vm555, %v4224, 0.0
        %4226 = vadd.xlane.f32.xlu0 %v4225
        %v4227 = vpop.xlane.xlu0 %4226
        %v4228 = vmul.f32 %v4227, %v4221
        %v4229 = vadd.f32 %v4228, 1e-05
        %v4230 = vrsqrt.pop %v4229
        %v4231 = vmul.f32 %v4229, %v4230
        %vm4232 = vcmp.eq.f32.partialorder %v4229, inf
        %v4233 = vsel %vm4232, %v4229, %v4231
        %vm4234 = vcmp.eq.f32.partialorder %v4229, 0.0
        %v4235 = vand.u32 %v4229, 2147483648
        %v4236 = vsel %vm4234, %v4235, %v4233
        %v4237 = vrcp.pop %v4236
        %v4238 = vmul.f32 1.0, %v4237
        %v4239 = vmul.f32 %v4223, %v4238
        %v4241 = vlaneseq
        %v4242 = vshrl.u32 %v4241, 7
        %v4243 = vsub.s32 0, %v4242
        %v4244 = vrot.slane %v4216, %v4243
        %v4246 = vmul.f32 %v4239, %v4244
        %v4248 = vlaneseq
        %v4249 = vshrl.u32 %v4248, 7
        %v4250 = vsub.s32 0, %v4249
        %v4251 = vrot.slane %v4217, %v4250
        %v4253 = vadd.f32 %v4246, %v4251
        %v4254 = vld [vmem:[%s8] sm:$0xff]
        %v4255 = vld [vmem:[%s8 + $0x8] sm:$0xff]
        %v4256 = vld [vmem:[%s8 + $0x10] sm:$0xff]
        %v4257 = vld [vmem:[%s8 + $0x18] sm:$0xff]
        %v4258 = vld [vmem:[%s9] sm:$0x1]
        %v4260 = vlaneseq
        %v4261 = vshrl.u32 %v4260, 7
        %v4262 = vsub.s32 0, %v4261
        %v4263 = vrot.slane %v4258, %v4262
        %v4266 = vsel %vm555, %v4253, 0
        %4268 = vmatprep.subr.mxu0 0.0
        %4269 = vmatpush1.msra.mxu0 %v4254
        %4270 = vmatprep.subr.mxu0 0.0
        %4271 = vmatpush1.msra.mxu0 %v4255
        %4272 = vmatprep.subr.mxu0 0.0
        %4273 = vmatpush1.msra.mxu0 %v4256
        %4274 = vmatprep.subr.mxu0 0.0
        %4275 = vmatpush1.msra.mxu0 %v4257
        %4276 = vmatprep.subr.mxu0 0.0
        %4277 = vmatpush1.msra.mxu0 0.0
        %4278 = vmatprep.subr.mxu0 0.0
        %4279 = vmatpush1.msra.mxu0 0.0
        %4280 = vmatprep.subr.mxu0 0.0
        %4281 = vmatpush1.msra.mxu0 0.0
        %4282 = vmatprep.subr.mxu0 0.0
        %4283 = vmatpush1.msra.mxu0 0.0
        %4284 = vmatprep.subr.mxu0 0.0
        %4285 = vmatpush1.msra.mxu0 0.0
        %4286 = vmatprep.subr.mxu0 0.0
        %4287 = vmatpush1.msra.mxu0 0.0
        %4288 = vmatprep.subr.mxu0 0.0
        %4289 = vmatpush1.msra.mxu0 0.0
        %4290 = vmatprep.subr.mxu0 0.0
        %4291 = vmatpush1.msra.mxu0 0.0
        %4292 = vmatprep.subr.mxu0 0.0
        %4293 = vmatpush1.msra.mxu0 0.0
        %4294 = vmatprep.subr.mxu0 0.0
        %4295 = vmatpush1.msra.mxu0 0.0
        %4296 = vmatprep.subr.mxu0 0.0
        %4297 = vmatpush1.msra.mxu0 0.0
        %4298 = vmatprep.subr.mxu0 0.0
        %4299 = vmatpush1.msra.mxu0 0.0
        %4300 = vmatprep.subr.mxu0 0.0
        %4301 = vmatpush1.msra.mxu0 0.0
        %4302 = vmatprep.subr.mxu0 0.0
        %4303 = vmatpush1.msra.mxu0 0.0
        %4304 = vmatprep.subr.mxu0 0.0
        %4305 = vmatpush1.msra.mxu0 0.0
        %4306 = vmatprep.subr.mxu0 0.0
        %4307 = vmatpush1.msra.mxu0 0.0
        %4308 = vmatprep.subr.mxu0 0.0
        %4309 = vmatpush1.msra.mxu0 0.0
        %4310 = vmatprep.subr.mxu0 0.0
        %4311 = vmatpush1.msra.mxu0 0.0
        %4312 = vmatprep.subr.mxu0 0.0
        %4313 = vmatpush1.msra.mxu0 0.0
        %4314 = vmatprep.subr.mxu0 0.0
        %4315 = vmatpush1.msra.mxu0 0.0
        %4316 = vmatprep.subr.mxu0 0.0
        %4317 = vmatpush1.msra.mxu0 0.0
        %4318 = vmatprep.subr.mxu0 0.0
        %4319 = vmatpush1.msra.mxu0 0.0
        %4320 = vmatprep.subr.mxu0 0.0
        %4321 = vmatpush1.msra.mxu0 0.0
        %4322 = vmatprep.subr.mxu0 0.0
        %4323 = vmatpush1.msra.mxu0 0.0
        %4324 = vmatprep.subr.mxu0 0.0
        %4325 = vmatpush1.msra.mxu0 0.0
        %4326 = vmatprep.subr.mxu0 0.0
        %4327 = vmatpush1.msra.mxu0 0.0
        %4328 = vmatprep.subr.mxu0 0.0
        %4329 = vmatpush1.msra.mxu0 0.0
        %4330 = vmatprep.subr.mxu0 0.0
        %4331 = vmatpush1.msra.mxu0 0.0
        %4332 = vmatprep.mubr.f32.mxu0 0.0
        %4333 = vmatmul.mubr.f32.gmra.mrb[0].mxu0 %v4266
        %v4334 = vpop.f32.mrb[0].mxu0
        %v4335 = vadd.f32 %v4263, %v4334
        %v4336 = vpop.f32.mrb[0].mxu0
        %4337 = vdwg.mxu0
        %v4338 = vmax.f32 %v4335, 0.0
        %v4339 = vld [vmem:[%s10] sm:$0xff]
        %v4340 = vld [vmem:[%s10 + $0x8] sm:$0xff]
        %v4341 = vld [vmem:[%s10 + $0x10] sm:$0xff]
        %v4342 = vld [vmem:[%s10 + $0x18] sm:$0xff]
        %v4343 = vld [vmem:[%s10 + $0x20] sm:$0xff]
        %v4344 = vld [vmem:[%s10 + $0x28] sm:$0xff]
        %v4345 = vld [vmem:[%s10 + $0x30] sm:$0xff]
        %v4346 = vld [vmem:[%s10 + $0x38] sm:$0xff]
        %v4347 = vld [vmem:[%s10 + $0x40] sm:$0xff]
        %v4348 = vld [vmem:[%s10 + $0x48] sm:$0xff]
        %v4349 = vld [vmem:[%s10 + $0x50] sm:$0xff]
        %v4350 = vld [vmem:[%s10 + $0x58] sm:$0xff]
        %v4351 = vld [vmem:[%s10 + $0x60] sm:$0xff]
        %v4352 = vld [vmem:[%s10 + $0x68] sm:$0xff]
        %v4353 = vld [vmem:[%s10 + $0x70] sm:$0xff]
        %v4354 = vld [vmem:[%s10 + $0x78] sm:$0xff]
        %v4355 = vld [vmem:[%s11] sm:$0x1]
        %v4357 = vlaneseq
        %v4358 = vshrl.u32 %v4357, 7
        %v4359 = vsub.s32 0, %v4358
        %v4360 = vrot.slane %v4355, %v4359
        %4362 = vmatprep.subr.mxu0 0.0
        %4363 = vmatpush1.msra.mxu0 %v4339
        %4364 = vmatprep.subr.mxu0 0.0
        %4365 = vmatpush1.msra.mxu0 %v4340
        %4366 = vmatprep.subr.mxu0 0.0
        %4367 = vmatpush1.msra.mxu0 %v4341
        %4368 = vmatprep.subr.mxu0 0.0
        %4369 = vmatpush1.msra.mxu0 %v4342
        %4370 = vmatprep.subr.mxu0 0.0
        %4371 = vmatpush1.msra.mxu0 %v4343
        %4372 = vmatprep.subr.mxu0 0.0
        %4373 = vmatpush1.msra.mxu0 %v4344
        %4374 = vmatprep.subr.mxu0 0.0
        %4375 = vmatpush1.msra.mxu0 %v4345
        %4376 = vmatprep.subr.mxu0 0.0
        %4377 = vmatpush1.msra.mxu0 %v4346
        %4378 = vmatprep.subr.mxu0 0.0
        %4379 = vmatpush1.msra.mxu0 %v4347
        %4380 = vmatprep.subr.mxu0 0.0
        %4381 = vmatpush1.msra.mxu0 %v4348
        %4382 = vmatprep.subr.mxu0 0.0
        %4383 = vmatpush1.msra.mxu0 %v4349
        %4384 = vmatprep.subr.mxu0 0.0
        %4385 = vmatpush1.msra.mxu0 %v4350
        %4386 = vmatprep.subr.mxu0 0.0
        %4387 = vmatpush1.msra.mxu0 %v4351
        %4388 = vmatprep.subr.mxu0 0.0
        %4389 = vmatpush1.msra.mxu0 %v4352
        %4390 = vmatprep.subr.mxu0 0.0
        %4391 = vmatpush1.msra.mxu0 %v4353
        %4392 = vmatprep.subr.mxu0 0.0
        %4393 = vmatpush1.msra.mxu0 %v4354
        %4394 = vmatprep.subr.mxu0 0.0
        %4395 = vmatpush1.msra.mxu0 0.0
        %4396 = vmatprep.subr.mxu0 0.0
        %4397 = vmatpush1.msra.mxu0 0.0
        %4398 = vmatprep.subr.mxu0 0.0
        %4399 = vmatpush1.msra.mxu0 0.0
        %4400 = vmatprep.subr.mxu0 0.0
        %4401 = vmatpush1.msra.mxu0 0.0
        %4402 = vmatprep.subr.mxu0 0.0
        %4403 = vmatpush1.msra.mxu0 0.0
        %4404 = vmatprep.subr.mxu0 0.0
        %4405 = vmatpush1.msra.mxu0 0.0
        %4406 = vmatprep.subr.mxu0 0.0
        %4407 = vmatpush1.msra.mxu0 0.0
        %4408 = vmatprep.subr.mxu0 0.0
        %4409 = vmatpush1.msra.mxu0 0.0
        %4410 = vmatprep.subr.mxu0 0.0
        %4411 = vmatpush1.msra.mxu0 0.0
        %4412 = vmatprep.subr.mxu0 0.0
        %4413 = vmatpush1.msra.mxu0 0.0
        %4414 = vmatprep.subr.mxu0 0.0
        %4415 = vmatpush1.msra.mxu0 0.0
        %4416 = vmatprep.subr.mxu0 0.0
        %4417 = vmatpush1.msra.mxu0 0.0
        %4418 = vmatprep.subr.mxu0 0.0
        %4419 = vmatpush1.msra.mxu0 0.0
        %4420 = vmatprep.subr.mxu0 0.0
        %4421 = vmatpush1.msra.mxu0 0.0
        %4422 = vmatprep.subr.mxu0 0.0
        %4423 = vmatpush1.msra.mxu0 0.0
        %4424 = vmatprep.subr.mxu0 0.0
        %4425 = vmatpush1.msra.mxu0 0.0
        %4426 = vmatprep.mubr.f32.mxu0 0.0
        %4427 = vmatmul.mubr.f32.gmra.mrb[0].mxu0 %v4338
        %v4428 = vpop.f32.mrb[0].mxu0
        %v4429 = vadd.f32 %v4360, %v4428
        %v4430 = vpop.f32.mrb[0].mxu0
        %4431 = vdwg.mxu0
        %v4432 = vadd.f32 %v4429, %v4253
        %v4433 = vld [vmem:[%s12] sm:$0x1]
        %v4434 = vld [vmem:[%s13] sm:$0x1]
        %v4435 = vsel %vm555, %v4432, 0.0
        %4436 = vadd.xlane.f32.xlu0 %v4435
        %v4437 = vpop.xlane.xlu0 %4436
        %v4438 = vmul.f32 %v4437, %v4221
        %v4439 = vsub.f32 %v4432, %v4438
        %v4440 = vmul.f32 %v4439, %v4439
        %v4441 = vsel %vm555, %v4440, 0.0
        %4442 = vadd.xlane.f32.xlu0 %v4441
        %v4443 = vpop.xlane.xlu0 %4442
        %v4444 = vmul.f32 %v4443, %v4221
        %v4445 = vadd.f32 %v4444, 1e-05
        %v4446 = vrsqrt.pop %v4445
        %v4447 = vmul.f32 %v4445, %v4446
        %vm4448 = vcmp.eq.f32.partialorder %v4445, inf
        %v4449 = vsel %vm4448, %v4445, %v4447
        %vm4450 = vcmp.eq.f32.partialorder %v4445, 0.0
        %v4451 = vand.u32 %v4445, 2147483648
        %v4452 = vsel %vm4450, %v4451, %v4449
        %v4453 = vrcp.pop %v4452
        %v4454 = vmul.f32 1.0, %v4453
        %v4455 = vmul.f32 %v4439, %v4454
        %v4457 = vlaneseq
        %v4458 = vshrl.u32 %v4457, 7
        %v4459 = vsub.s32 0, %v4458
        %v4460 = vrot.slane %v4433, %v4459
        %v4462 = vmul.f32 %v4455, %v4460
        %v4464 = vlaneseq
        %v4465 = vshrl.u32 %v4464, 7
        %v4466 = vsub.s32 0, %v4465
        %v4467 = vrot.slane %v4434, %v4466
        %v4469 = vadd.f32 %v4462, %v4467
        %4470 = vst.msk [vmem:[%s517] sm:$0xff] %vm555, %v4469
        %s4471 = sand.u32 %s338, 1
        %s4472 = scalar_lea.sflag [#allocation4], %s4471
        %s4473 = sand.u32 %s338, 1
        %s4474 = smul.addr %s4473, 8
        %s4475 = scalar_lea.vmem [#allocation10], %s4474
        // Predicated region
        $region93: #{basic_transformer_forward.1} parent=75 // pred_check
          %p4476 = pneg %p348
        $region94: #{basic_transformer_forward.1} parent=75 // pred_check_branch
          %4478 = sbr.rel (%p4476) target = $region96
        $region95: #{basic_transformer_forward.1} parent=75 // pred_region
          %s4480 = ssub.s32 128, 128
          %4481 = vsyncadd %s4472, %s4480
          %s4482 = smul.addr %s31, 128
          %s4483 = scalar_lea.hbm %s14, %s4482
          %s4485 = sshll.u32 %s4475, 4
          %s4486 = int_to_ptr.vmem [resolvable:$true] %s4485
          %4488 = dma.vmem_to_hbm [thread:$0]  %s4486, 128, %s4483, %s4472
        $region96: #{basic_transformer_forward.1} parent=75 // pred_fallthru
          _
      $region76: #{basic_transformer_forward.1} parent=5 // pred_fallthru
        _
      %p4489 = scmp.le.s32.totalorder 2, %s26
      // Predicated region
      $region97: #{basic_transformer_forward.1} parent=5 // pred_check
        %p4490 = pneg %p4489
      $region98: #{basic_transformer_forward.1} parent=5 // pred_check_branch
        %4492 = sbr.rel (%p4490) target = $region100
      $region99: #{basic_transformer_forward.1} parent=5 // pred_region
        %s4493 = ssub.s32 %s26, 2
        // Predicated region
        $region101: #{basic_transformer_forward.1} parent=99 // pred_check
          %p4494 = pneg %p354
        $region102: #{basic_transformer_forward.1} parent=99 // pred_check_branch
          %4496 = sbr.rel (%p4494) target = $region104
        $region103: #{basic_transformer_forward.1} parent=99 // pred_region
          %s4497 = sand.u32 %s339, 1
          %s4498 = scalar_lea.sflag [#allocation4], %s4497
          %s4499 = sand.u32 %s339, 1
          %s4500 = smul.addr %s4499, 8
          %s4501 = scalar_lea.vmem [#allocation10], %s4500
          %4502 = dma.done %s4498, 128
        $region104: #{basic_transformer_forward.1} parent=99 // pred_fallthru
          _
      $region100: #{basic_transformer_forward.1} parent=5 // pred_fallthru
        _
    $region6: #{basic_transformer_forward.1} parent=1 // loop_footer
      %s30 = sadd.s32 1, %s26
    $region7: #{basic_transformer_forward.1} parent=1 // loop_footer_branch
      %25 = sbr.rel target = $region3
    $region8: #{basic_transformer_forward.1} parent=1 // loop_exit
      _
    %4503 = vsyncpa [#allocation3], 1
    %s4504 = scalar_lea.sflag [#allocation3], 1
    %4505 = vsyncpa %s4504, 1
    %4506 = vsyncpa [#allocation6], 1
    %4507 = vsyncpa [#allocation9], 1
    %4508 = vsyncpa [#allocation4], 1
    %s4509 = scalar_lea.sflag [#allocation4], 1
    %4510 = vsyncpa %s4509, 1

</llo_original>
